<compile_context>
chip_gen: v6e
topology: v6e:2x2x1
jax: 0.10.0
libtpu: 0.0.40
codegen_flags: <defaults>
</compile_context>

<pallas_src>
from functools import partial

import numpy as np
import jax
import jax.numpy as jnp
from jax.experimental import pallas as pl
from jax.experimental.pallas import tpu as pltpu


def inception_aux_kernel(x_ref, qmat_ref, wc_ref, bc_ref,
                         w1r_ref, b1_ref, w2t_ref, b2_ref,
                         o_ref, conv_scr):
    # x_ref:    (BT*C, HW)  bf16   batch tile, rows are (sample, channel) pairs
    # qmat_ref: (HW, S)     bf16   0/1 window indicators for AvgPool2d(5, stride=3)
    # wc_ref:   (K, C)      f32    1x1 conv weight with the 1/25 pooling scale folded in
    # bc_ref:   (K, 1)      f32    conv bias
    # w1r_ref:  (K, S, HID) bf16   fc1 weight, w1r[k, s, :] == fc1_w.T[k*S + s, :]
    # b1_ref:   (1, HID)    f32
    # w2t_ref:  (HID, NCp)  bf16   fc2 weight, transposed, zero-padded to 128 lanes
    # b2_ref:   (1, NCp)    f32
    # o_ref:    (BT, NCp)   f32
    # conv_scr: (BT*K, S)   f32    staged ReLU(conv) activations, b-major rows
    K, C = wc_ref.shape
    _, S, HID = w1r_ref.shape
    BT = o_ref.shape[0]

    # 1) AvgPool2d(5, stride=3) for the whole batch tile as ONE fat MXU matmul
    #    (M = BT*C).  bf16 x bf16 inputs, f32 accumulation.
    pooled = jnp.dot(x_ref[...], qmat_ref[...],
                     preferred_element_type=jnp.float32)              # (BT*C, S) f32

    # 2) 1x1 conv + bias + ReLU per sample (BT is small and static, so this unrolls);
    #    results are staged b-major into the f32 scratch so fc1 can read sublane-
    #    aligned (BT, S) tiles per conv channel.  Kept in f32 (tiny matmul, exact-ish).
    for b in range(BT):
        p_b = pooled[b * C:(b + 1) * C, :]                            # (C, S), aligned
        cb = jnp.dot(wc_ref[...], p_b,
                     preferred_element_type=jnp.float32) + bc_ref[...]  # (K, S)
        conv_scr[pl.ds(b * K, K), :] = jnp.maximum(cb, 0.0)           # ReLU, f32

    # 3) fc1 over the torch Flatten(1) (k, s) feature order: K matmuls of
    #    (BT, S) @ (S, HID) accumulating in f32 -- batched M, no per-sample M=1
    #    pushes and no lane-crossing reshape.  The (BT, S) lhs tile is a strided
    #    sublane gather (rows k, K+k, 2K+k, ...) from the staging scratch.
    h = jnp.zeros((BT, HID), jnp.float32)
    for k in range(K):
        a_k = conv_scr[pl.ds(k, BT, stride=K), :].astype(jnp.bfloat16)  # (BT, S)
        h = h + jnp.dot(a_k, w1r_ref[k], preferred_element_type=jnp.float32)
    h = jnp.maximum(h + b1_ref[...], 0.0).astype(jnp.bfloat16)       # ReLU, (BT, HID)

    # 4) fc2; output lanes are zero-padded to a multiple of 128 -> lane-dense store.
    o_ref[...] = jnp.dot(h, w2t_ref[...],
                         preferred_element_type=jnp.float32) + b2_ref[...]


def _make_pool_matrix(H, W, ksize=5, stride=3):
    # Qmat[h*W + w, q*WO + p] = 1 iff (h, w) is inside pooling window (q, p).
    # x_flat @ Qmat == ksize^2 * AvgPool2d(ksize, stride);  the 1/ksize^2 scale is
    # folded into the conv weight so Qmat is exactly representable in bf16.
    HO = (H - ksize) // stride + 1
    WO = (W - ksize) // stride + 1
    Ph = np.zeros((HO, H), np.float32)
    for q in range(HO):
        Ph[q, stride * q:stride * q + ksize] = 1.0
    Pw = np.zeros((WO, W), np.float32)
    for p_ in range(WO):
        Pw[p_, stride * p_:stride * p_ + ksize] = 1.0
    qmat = np.einsum('qh,pw->hwqp', Ph, Pw).reshape(H * W, HO * WO)
    return qmat, HO * WO, ksize * ksize


def prepare_params(params, H, W):
    """One-time host-side weight packing (layout + bf16 cast + lane padding)."""
    qmat_np, S, win = _make_pool_matrix(H, W)
    K, C = params["conv_w"].shape
    HID = params["fc1_w"].shape[0]
    NC = params["fc2_w"].shape[0]
    NCp = ((NC + 127) // 128) * 128                 # lane-dense padded class count
    assert params["fc1_w"].shape[1] == K * S, "fc1 input dim must equal num_1x1 * 4 * 4"

    w2t_pad = np.zeros((HID, NCp), np.float32)
    w2t_pad[:, :NC] = np.asarray(params["fc2_w"]).T
    b2_pad = np.zeros((1, NCp), np.float32)
    b2_pad[0, :NC] = np.asarray(params["fc2_b"])

    return {
        "qmat": jnp.asarray(qmat_np, dtype=jnp.bfloat16),                 # (HW, S)  0/1
        "wc":   (params["conv_w"] / float(win)).astype(jnp.float32),      # (K, C)   f32
        "bc":   params["conv_b"].reshape(K, 1).astype(jnp.float32),       # (K, 1)   f32
        "w1r":  params["fc1_w"].T.reshape(K, S, HID).astype(jnp.bfloat16),
        "b1":   params["fc1_b"].reshape(1, HID).astype(jnp.float32),
        "w2t":  jnp.asarray(w2t_pad, dtype=jnp.bfloat16),                 # (HID,NCp) bf16
        "b2":   jnp.asarray(b2_pad, dtype=jnp.float32),                   # (1, NCp)  f32
    }


@partial(jax.jit, static_argnums=(2,))
def inception_aux_forward(x, p, num_classes):
    B, C, H, W = x.shape
    HW, S = p["qmat"].shape
    K, _, HID = p["w1r"].shape
    NCp = p["w2t"].shape[1]

    # Batch tile: 8 keeps all block sublane dims 8-aligned and leaves >= 2 grid steps
    # for the test batch; for real GoogLeNet sizes, sweep BT (VMEM-limited on v7x).
    BT = 8 if B % 8 == 0 else B
    assert B % BT == 0 and (BT * C) % 8 == 0

    x2d = x.reshape(B * C, H * W).astype(jnp.bfloat16)   # free reshape, bf16 streaming

    out = pl.pallas_call(
        inception_aux_kernel,
        out_shape=jax.ShapeDtypeStruct((B, NCp), jnp.float32),
        grid=(B // BT,),
        in_specs=[
            pl.BlockSpec((BT * C, HW), lambda i: (i, 0)),     # streamed activations
            pl.BlockSpec((HW, S),      lambda i: (0, 0)),     # pooling indicators
            pl.BlockSpec((K, C),       lambda i: (0, 0)),     # 1x1 conv weight
            pl.BlockSpec((K, 1),       lambda i: (0, 0)),     # conv bias
            pl.BlockSpec((K, S, HID),  lambda i: (0, 0, 0)),  # fc1 weight (bf16)
            pl.BlockSpec((1, HID),     lambda i: (0, 0)),     # fc1 bias
            pl.BlockSpec((HID, NCp),   lambda i: (0, 0)),     # fc2 weight (bf16, padded)
            pl.BlockSpec((1, NCp),     lambda i: (0, 0)),     # fc2 bias (padded)
        ],
        out_specs=pl.BlockSpec((BT, NCp), lambda i: (i, 0)),
        scratch_shapes=[pltpu.VMEM((BT * K, S), jnp.float32)],
        compiler_params=pltpu.CompilerParams(
            dimension_semantics=("parallel",),
            vmem_limit_bytes=48 * 1024 * 1024),
    )(x2d, p["qmat"], p["wc"], p["bc"], p["w1r"], p["b1"], p["w2t"], p["b2"])

    # TODO(synk): nn.Dropout2d(0.5) layers (training-mode stochastic) are implemented
    # as identity (eval semantics) rather than faking an RNG mask.
    return out[:, :num_classes]


def reference_forward(x, params):
    # Pure-JAX f32 reference of the same (eval-mode) forward pass.
    B = x.shape[0]
    pooled = jax.lax.reduce_window(x, 0.0, jax.lax.add,
                                   (1, 1, 5, 5), (1, 1, 3, 3), 'VALID') / 25.0
    conv = jnp.einsum('kc,bchw->bkhw', params["conv_w"], pooled)
    conv = conv + params["conv_b"][None, :, None, None]
    conv = jnp.maximum(conv, 0.0)
    feat = conv.reshape(B, -1)
    h = jnp.maximum(feat @ params["fc1_w"].T + params["fc1_b"], 0.0)
    return h @ params["fc2_w"].T + params["fc2_b"]


if __name__ == "__main__":
    # 14x14 input so AvgPool2d(5, stride=3) -> 4x4, matching Linear(num_1x1*4*4, 1024).
    B, C, H, W = 16, 8, 14, 14
    K = 16          # num_1x1
    NC = 10         # num_classes
    HID = 1024      # hard-coded hidden width in the module

    key = jax.random.PRNGKey(0)
    kx, k0, k1, k2, k3, k4, k5 = jax.random.split(key, 7)
    x = jax.random.normal(kx, (B, C, H, W), dtype=jnp.float32)

    params = {
        "conv_w": jax.random.normal(k0, (K, C), dtype=jnp.float32) * 0.1,   # (K,C,1,1) squeezed
        "conv_b": jax.random.normal(k1, (K,), dtype=jnp.float32) * 0.1,
        "fc1_w": jax.random.normal(k2, (HID, K * 4 * 4), dtype=jnp.float32) * 0.05,
        "fc1_b": jax.random.normal(k3, (HID,), dtype=jnp.float32) * 0.05,
        "fc2_w": jax.random.normal(k4, (NC, HID), dtype=jnp.float32) * 0.05,
        "fc2_b": jax.random.normal(k5, (NC,), dtype=jnp.float32) * 0.05,
    }

    prepped = prepare_params(params, H, W)
    out = jax.block_until_ready(inception_aux_forward(x, prepped, NC))

    ref = jax.block_until_ready(reference_forward(x, params))
    # bf16 input streaming + bf16 FC weights/activations (f32 accumulation)
    # -> slightly looser tolerance than a pure-f32 pipeline.
    np.testing.assert_allclose(np.asarray(out), np.asarray(ref), rtol=5e-2, atol=6e-3)
    assert out.shape == (B, NC)

    print("KERNEL_OK")
</pallas_src>

<mosaic_0001>
module attributes {stable_mosaic.version = 11 : i64} {
  func.func @inception_aux_kernel(%arg0: i32, %arg1: memref<64x196xbf16, #tpu.memory_space<vmem>>, %arg2: memref<196x16xbf16, #tpu.memory_space<vmem>>, %arg3: memref<16x8xf32, #tpu.memory_space<vmem>>, %arg4: memref<16x1xf32, #tpu.memory_space<vmem>>, %arg5: memref<16x16x1024xbf16, #tpu.memory_space<vmem>>, %arg6: memref<1x1024xf32, #tpu.memory_space<vmem>>, %arg7: memref<1024x128xbf16, #tpu.memory_space<vmem>>, %arg8: memref<1x128xf32, #tpu.memory_space<vmem>>, %arg9: memref<8x128xf32, #tpu.memory_space<vmem>>, %arg10: memref<128x16xf32, #tpu.memory_space<vmem>>) attributes {dimension_semantics = [#tpu.dimension_semantics<parallel>], iteration_bounds = array<i64: 2>, scalar_prefetch = 0 : i64, scratch_operands = 1 : i64, tpu.core_type = #tpu.core_type<tc>, window_params = [{transform_indices = @transform_0, window_bounds = array<i64: 64, 196>}, {pipeline_mode = #tpu.pipeline_mode<synchronous>, transform_indices = @transform_1, window_bounds = array<i64: 196, 16>}, {pipeline_mode = #tpu.pipeline_mode<synchronous>, transform_indices = @transform_2, window_bounds = array<i64: 16, 8>}, {pipeline_mode = #tpu.pipeline_mode<synchronous>, transform_indices = @transform_3, window_bounds = array<i64: 16, 1>}, {pipeline_mode = #tpu.pipeline_mode<synchronous>, transform_indices = @transform_4, window_bounds = array<i64: 16, 16, 1024>}, {pipeline_mode = #tpu.pipeline_mode<synchronous>, transform_indices = @transform_5, window_bounds = array<i64: 1, 1024>}, {pipeline_mode = #tpu.pipeline_mode<synchronous>, transform_indices = @transform_6, window_bounds = array<i64: 1024, 128>}, {pipeline_mode = #tpu.pipeline_mode<synchronous>, transform_indices = @transform_7, window_bounds = array<i64: 1, 128>}, {transform_indices = @transform_8, window_bounds = array<i64: 8, 128>}]} {
    %c0 = arith.constant 0 : index
    %c0_0 = arith.constant 0 : index
    %0 = vector.load %arg1[%c0, %c0_0] : memref<64x196xbf16, #tpu.memory_space<vmem>>, vector<64x196xbf16>
    %c0_1 = arith.constant 0 : index
    %c0_2 = arith.constant 0 : index
    %1 = vector.load %arg2[%c0_1, %c0_2] : memref<196x16xbf16, #tpu.memory_space<vmem>>, vector<196x16xbf16>
    %cst = arith.constant dense<0.000000e+00> : vector<64x16xf32>
    %2 = tpu.matmul %0, %1, %cst {dimension_numbers = #tpu.dot_dimension_numbers<[1], [0], [0], [1], [0, 0, 1, 1], [], []>} : vector<64x196xbf16>, vector<196x16xbf16>, vector<64x16xf32> -> vector<64x16xf32>
    %3 = vector.extract_strided_slice %2 {offsets = [0, 0], sizes = [8, 16], strides = [1, 1]} : vector<64x16xf32> to vector<8x16xf32>
    %c0_3 = arith.constant 0 : index
    %c0_4 = arith.constant 0 : index
    %4 = vector.load %arg3[%c0_3, %c0_4] : memref<16x8xf32, #tpu.memory_space<vmem>>, vector<16x8xf32>
    %cst_5 = arith.constant dense<0.000000e+00> : vector<16x16xf32>
    %5 = tpu.matmul %4, %3, %cst_5 {dimension_numbers = #tpu.dot_dimension_numbers<[1], [0], [0], [1], [0, 0, 1, 1], [], []>} : vector<16x8xf32>, vector<8x16xf32>, vector<16x16xf32> -> vector<16x16xf32>
    %c0_6 = arith.constant 0 : index
    %c0_7 = arith.constant 0 : index
    %6 = vector.load %arg4[%c0_6, %c0_7] : memref<16x1xf32, #tpu.memory_space<vmem>>, vector<16x1xf32>
    %7 = vector.broadcast %6 : vector<16x1xf32> to vector<16x16xf32>
    %8 = arith.addf %5, %7 : vector<16x16xf32>
    %cst_8 = arith.constant 0.000000e+00 : f32
    %9 = vector.broadcast %cst_8 : f32 to vector<16x16xf32>
    %10 = arith.maximumf %8, %9 : vector<16x16xf32>
    %c0_9 = arith.constant 0 : index
    %c0_10 = arith.constant 0 : index
    %11 = vector.load %arg10[%c0_9, %c0_10] : memref<128x16xf32, #tpu.memory_space<vmem>>, vector<16x16xf32>
    tpu.vector_store %arg10[%c0_9, %c0_10], %10 {strides = array<i32>} : memref<128x16xf32, #tpu.memory_space<vmem>>, vector<16x16xf32>,
    %12 = vector.extract_strided_slice %2 {offsets = [8, 0], sizes = [8, 16], strides = [1, 1]} : vector<64x16xf32> to vector<8x16xf32>
    %c0_11 = arith.constant 0 : index
    %c0_12 = arith.constant 0 : index
    %13 = vector.load %arg3[%c0_11, %c0_12] : memref<16x8xf32, #tpu.memory_space<vmem>>, vector<16x8xf32>
    %cst_13 = arith.constant dense<0.000000e+00> : vector<16x16xf32>
    %14 = tpu.matmul %13, %12, %cst_13 {dimension_numbers = #tpu.dot_dimension_numbers<[1], [0], [0], [1], [0, 0, 1, 1], [], []>} : vector<16x8xf32>, vector<8x16xf32>, vector<16x16xf32> -> vector<16x16xf32>
    %c0_14 = arith.constant 0 : index
    %c0_15 = arith.constant 0 : index
    %15 = vector.load %arg4[%c0_14, %c0_15] : memref<16x1xf32, #tpu.memory_space<vmem>>, vector<16x1xf32>
    %16 = vector.broadcast %15 : vector<16x1xf32> to vector<16x16xf32>
    %17 = arith.addf %14, %16 : vector<16x16xf32>
    %cst_16 = arith.constant 0.000000e+00 : f32
    %18 = vector.broadcast %cst_16 : f32 to vector<16x16xf32>
    %19 = arith.maximumf %17, %18 : vector<16x16xf32>
    %c16 = arith.constant 16 : index
    %c0_17 = arith.constant 0 : index
    %20 = vector.load %arg10[%c16, %c0_17] : memref<128x16xf32, #tpu.memory_space<vmem>>, vector<16x16xf32>
    tpu.vector_store %arg10[%c16, %c0_17], %19 {strides = array<i32>} : memref<128x16xf32, #tpu.memory_space<vmem>>, vector<16x16xf32>,
    %21 = vector.extract_strided_slice %2 {offsets = [16, 0], sizes = [8, 16], strides = [1, 1]} : vector<64x16xf32> to vector<8x16xf32>
    %c0_18 = arith.constant 0 : index
    %c0_19 = arith.constant 0 : index
    %22 = vector.load %arg3[%c0_18, %c0_19] : memref<16x8xf32, #tpu.memory_space<vmem>>, vector<16x8xf32>
    %cst_20 = arith.constant dense<0.000000e+00> : vector<16x16xf32>
    %23 = tpu.matmul %22, %21, %cst_20 {dimension_numbers = #tpu.dot_dimension_numbers<[1], [0], [0], [1], [0, 0, 1, 1], [], []>} : vector<16x8xf32>, vector<8x16xf32>, vector<16x16xf32> -> vector<16x16xf32>
    %c0_21 = arith.constant 0 : index
    %c0_22 = arith.constant 0 : index
    %24 = vector.load %arg4[%c0_21, %c0_22] : memref<16x1xf32, #tpu.memory_space<vmem>>, vector<16x1xf32>
    %25 = vector.broadcast %24 : vector<16x1xf32> to vector<16x16xf32>
    %26 = arith.addf %23, %25 : vector<16x16xf32>
    %cst_23 = arith.constant 0.000000e+00 : f32
    %27 = vector.broadcast %cst_23 : f32 to vector<16x16xf32>
    %28 = arith.maximumf %26, %27 : vector<16x16xf32>
    %c32 = arith.constant 32 : index
    %c0_24 = arith.constant 0 : index
    %29 = vector.load %arg10[%c32, %c0_24] : memref<128x16xf32, #tpu.memory_space<vmem>>, vector<16x16xf32>
    tpu.vector_store %arg10[%c32, %c0_24], %28 {strides = array<i32>} : memref<128x16xf32, #tpu.memory_space<vmem>>, vector<16x16xf32>,
    %30 = vector.extract_strided_slice %2 {offsets = [24, 0], sizes = [8, 16], strides = [1, 1]} : vector<64x16xf32> to vector<8x16xf32>
    %c0_25 = arith.constant 0 : index
    %c0_26 = arith.constant 0 : index
    %31 = vector.load %arg3[%c0_25, %c0_26] : memref<16x8xf32, #tpu.memory_space<vmem>>, vector<16x8xf32>
    %cst_27 = arith.constant dense<0.000000e+00> : vector<16x16xf32>
    %32 = tpu.matmul %31, %30, %cst_27 {dimension_numbers = #tpu.dot_dimension_numbers<[1], [0], [0], [1], [0, 0, 1, 1], [], []>} : vector<16x8xf32>, vector<8x16xf32>, vector<16x16xf32> -> vector<16x16xf32>
    %c0_28 = arith.constant 0 : index
    %c0_29 = arith.constant 0 : index
    %33 = vector.load %arg4[%c0_28, %c0_29] : memref<16x1xf32, #tpu.memory_space<vmem>>, vector<16x1xf32>
    %34 = vector.broadcast %33 : vector<16x1xf32> to vector<16x16xf32>
    %35 = arith.addf %32, %34 : vector<16x16xf32>
    %cst_30 = arith.constant 0.000000e+00 : f32
    %36 = vector.broadcast %cst_30 : f32 to vector<16x16xf32>
    %37 = arith.maximumf %35, %36 : vector<16x16xf32>
    %c48 = arith.constant 48 : index
    %c0_31 = arith.constant 0 : index
    %38 = vector.load %arg10[%c48, %c0_31] : memref<128x16xf32, #tpu.memory_space<vmem>>, vector<16x16xf32>
    tpu.vector_store %arg10[%c48, %c0_31], %37 {strides = array<i32>} : memref<128x16xf32, #tpu.memory_space<vmem>>, vector<16x16xf32>,
    %39 = vector.extract_strided_slice %2 {offsets = [32, 0], sizes = [8, 16], strides = [1, 1]} : vector<64x16xf32> to vector<8x16xf32>
    %c0_32 = arith.constant 0 : index
    %c0_33 = arith.constant 0 : index
    %40 = vector.load %arg3[%c0_32, %c0_33] : memref<16x8xf32, #tpu.memory_space<vmem>>, vector<16x8xf32>
    %cst_34 = arith.constant dense<0.000000e+00> : vector<16x16xf32>
    %41 = tpu.matmul %40, %39, %cst_34 {dimension_numbers = #tpu.dot_dimension_numbers<[1], [0], [0], [1], [0, 0, 1, 1], [], []>} : vector<16x8xf32>, vector<8x16xf32>, vector<16x16xf32> -> vector<16x16xf32>
    %c0_35 = arith.constant 0 : index
    %c0_36 = arith.constant 0 : index
    %42 = vector.load %arg4[%c0_35, %c0_36] : memref<16x1xf32, #tpu.memory_space<vmem>>, vector<16x1xf32>
    %43 = vector.broadcast %42 : vector<16x1xf32> to vector<16x16xf32>
    %44 = arith.addf %41, %43 : vector<16x16xf32>
    %cst_37 = arith.constant 0.000000e+00 : f32
    %45 = vector.broadcast %cst_37 : f32 to vector<16x16xf32>
    %46 = arith.maximumf %44, %45 : vector<16x16xf32>
    %c64 = arith.constant 64 : index
    %c0_38 = arith.constant 0 : index
    %47 = vector.load %arg10[%c64, %c0_38] : memref<128x16xf32, #tpu.memory_space<vmem>>, vector<16x16xf32>
    tpu.vector_store %arg10[%c64, %c0_38], %46 {strides = array<i32>} : memref<128x16xf32, #tpu.memory_space<vmem>>, vector<16x16xf32>,
    %48 = vector.extract_strided_slice %2 {offsets = [40, 0], sizes = [8, 16], strides = [1, 1]} : vector<64x16xf32> to vector<8x16xf32>
    %c0_39 = arith.constant 0 : index
    %c0_40 = arith.constant 0 : index
    %49 = vector.load %arg3[%c0_39, %c0_40] : memref<16x8xf32, #tpu.memory_space<vmem>>, vector<16x8xf32>
    %cst_41 = arith.constant dense<0.000000e+00> : vector<16x16xf32>
    %50 = tpu.matmul %49, %48, %cst_41 {dimension_numbers = #tpu.dot_dimension_numbers<[1], [0], [0], [1], [0, 0, 1, 1], [], []>} : vector<16x8xf32>, vector<8x16xf32>, vector<16x16xf32> -> vector<16x16xf32>
    %c0_42 = arith.constant 0 : index
    %c0_43 = arith.constant 0 : index
    %51 = vector.load %arg4[%c0_42, %c0_43] : memref<16x1xf32, #tpu.memory_space<vmem>>, vector<16x1xf32>
    %52 = vector.broadcast %51 : vector<16x1xf32> to vector<16x16xf32>
    %53 = arith.addf %50, %52 : vector<16x16xf32>
    %cst_44 = arith.constant 0.000000e+00 : f32
    %54 = vector.broadcast %cst_44 : f32 to vector<16x16xf32>
    %55 = arith.maximumf %53, %54 : vector<16x16xf32>
    %c80 = arith.constant 80 : index
    %c0_45 = arith.constant 0 : index
    %56 = vector.load %arg10[%c80, %c0_45] : memref<128x16xf32, #tpu.memory_space<vmem>>, vector<16x16xf32>
    tpu.vector_store %arg10[%c80, %c0_45], %55 {strides = array<i32>} : memref<128x16xf32, #tpu.memory_space<vmem>>, vector<16x16xf32>,
    %57 = vector.extract_strided_slice %2 {offsets = [48, 0], sizes = [8, 16], strides = [1, 1]} : vector<64x16xf32> to vector<8x16xf32>
    %c0_46 = arith.constant 0 : index
    %c0_47 = arith.constant 0 : index
    %58 = vector.load %arg3[%c0_46, %c0_47] : memref<16x8xf32, #tpu.memory_space<vmem>>, vector<16x8xf32>
    %cst_48 = arith.constant dense<0.000000e+00> : vector<16x16xf32>
    %59 = tpu.matmul %58, %57, %cst_48 {dimension_numbers = #tpu.dot_dimension_numbers<[1], [0], [0], [1], [0, 0, 1, 1], [], []>} : vector<16x8xf32>, vector<8x16xf32>, vector<16x16xf32> -> vector<16x16xf32>
    %c0_49 = arith.constant 0 : index
    %c0_50 = arith.constant 0 : index
    %60 = vector.load %arg4[%c0_49, %c0_50] : memref<16x1xf32, #tpu.memory_space<vmem>>, vector<16x1xf32>
    %61 = vector.broadcast %60 : vector<16x1xf32> to vector<16x16xf32>
    %62 = arith.addf %59, %61 : vector<16x16xf32>
    %cst_51 = arith.constant 0.000000e+00 : f32
    %63 = vector.broadcast %cst_51 : f32 to vector<16x16xf32>
    %64 = arith.maximumf %62, %63 : vector<16x16xf32>
    %c96 = arith.constant 96 : index
    %c0_52 = arith.constant 0 : index
    %65 = vector.load %arg10[%c96, %c0_52] : memref<128x16xf32, #tpu.memory_space<vmem>>, vector<16x16xf32>
    tpu.vector_store %arg10[%c96, %c0_52], %64 {strides = array<i32>} : memref<128x16xf32, #tpu.memory_space<vmem>>, vector<16x16xf32>,
    %66 = vector.extract_strided_slice %2 {offsets = [56, 0], sizes = [8, 16], strides = [1, 1]} : vector<64x16xf32> to vector<8x16xf32>
    %c0_53 = arith.constant 0 : index
    %c0_54 = arith.constant 0 : index
    %67 = vector.load %arg3[%c0_53, %c0_54] : memref<16x8xf32, #tpu.memory_space<vmem>>, vector<16x8xf32>
    %cst_55 = arith.constant dense<0.000000e+00> : vector<16x16xf32>
    %68 = tpu.matmul %67, %66, %cst_55 {dimension_numbers = #tpu.dot_dimension_numbers<[1], [0], [0], [1], [0, 0, 1, 1], [], []>} : vector<16x8xf32>, vector<8x16xf32>, vector<16x16xf32> -> vector<16x16xf32>
    %c0_56 = arith.constant 0 : index
    %c0_57 = arith.constant 0 : index
    %69 = vector.load %arg4[%c0_56, %c0_57] : memref<16x1xf32, #tpu.memory_space<vmem>>, vector<16x1xf32>
    %70 = vector.broadcast %69 : vector<16x1xf32> to vector<16x16xf32>
    %71 = arith.addf %68, %70 : vector<16x16xf32>
    %cst_58 = arith.constant 0.000000e+00 : f32
    %72 = vector.broadcast %cst_58 : f32 to vector<16x16xf32>
    %73 = arith.maximumf %71, %72 : vector<16x16xf32>
    %c112 = arith.constant 112 : index
    %c0_59 = arith.constant 0 : index
    %74 = vector.load %arg10[%c112, %c0_59] : memref<128x16xf32, #tpu.memory_space<vmem>>, vector<16x16xf32>
    tpu.vector_store %arg10[%c112, %c0_59], %73 {strides = array<i32>} : memref<128x16xf32, #tpu.memory_space<vmem>>, vector<16x16xf32>,
    %cst_60 = arith.constant 0.000000e+00 : f32
    %75 = vector.broadcast %cst_60 : f32 to vector<8x1024xf32>
    %c0_61 = arith.constant 0 : index
    %c0_62 = arith.constant 0 : index
    %76 = tpu.strided_load %arg10[%c0_61, %c0_62] {strides = array<i32: 16, 1>} : memref<128x16xf32, #tpu.memory_space<vmem>>, vector<8x16xf32>
    %77 = arith.truncf %76 : vector<8x16xf32> to vector<8x16xbf16>
    %c0_63 = arith.constant 0 : index
    %c0_64 = arith.constant 0 : index
    %c0_65 = arith.constant 0 : index
    %78 = vector.load %arg5[%c0_63, %c0_64, %c0_65] : memref<16x16x1024xbf16, #tpu.memory_space<vmem>>, vector<1x16x1024xbf16>
    %79 = vector.shape_cast %78 : vector<1x16x1024xbf16> to vector<16x1024xbf16>
    %cst_66 = arith.constant dense<0.000000e+00> : vector<8x1024xf32>
    %80 = tpu.matmul %77, %79, %cst_66 {dimension_numbers = #tpu.dot_dimension_numbers<[1], [0], [0], [1], [0, 0, 1, 1], [], []>} : vector<8x16xbf16>, vector<16x1024xbf16>, vector<8x1024xf32> -> vector<8x1024xf32>
    %81 = arith.addf %75, %80 : vector<8x1024xf32>
    %c1 = arith.constant 1 : index
    %c0_67 = arith.constant 0 : index
    %82 = tpu.strided_load %arg10[%c1, %c0_67] {strides = array<i32: 16, 1>} : memref<128x16xf32, #tpu.memory_space<vmem>>, vector<8x16xf32>
    %83 = arith.truncf %82 : vector<8x16xf32> to vector<8x16xbf16>
    %c1_68 = arith.constant 1 : index
    %c0_69 = arith.constant 0 : index
    %c0_70 = arith.constant 0 : index
    %84 = vector.load %arg5[%c1_68, %c0_69, %c0_70] : memref<16x16x1024xbf16, #tpu.memory_space<vmem>>, vector<1x16x1024xbf16>
    %85 = vector.shape_cast %84 : vector<1x16x1024xbf16> to vector<16x1024xbf16>
    %cst_71 = arith.constant dense<0.000000e+00> : vector<8x1024xf32>
    %86 = tpu.matmul %83, %85, %cst_71 {dimension_numbers = #tpu.dot_dimension_numbers<[1], [0], [0], [1], [0, 0, 1, 1], [], []>} : vector<8x16xbf16>, vector<16x1024xbf16>, vector<8x1024xf32> -> vector<8x1024xf32>
    %87 = arith.addf %81, %86 : vector<8x1024xf32>
    %c2 = arith.constant 2 : index
    %c0_72 = arith.constant 0 : index
    %88 = tpu.strided_load %arg10[%c2, %c0_72] {strides = array<i32: 16, 1>} : memref<128x16xf32, #tpu.memory_space<vmem>>, vector<8x16xf32>
    %89 = arith.truncf %88 : vector<8x16xf32> to vector<8x16xbf16>
    %c2_73 = arith.constant 2 : index
    %c0_74 = arith.constant 0 : index
    %c0_75 = arith.constant 0 : index
    %90 = vector.load %arg5[%c2_73, %c0_74, %c0_75] : memref<16x16x1024xbf16, #tpu.memory_space<vmem>>, vector<1x16x1024xbf16>
    %91 = vector.shape_cast %90 : vector<1x16x1024xbf16> to vector<16x1024xbf16>
    %cst_76 = arith.constant dense<0.000000e+00> : vector<8x1024xf32>
    %92 = tpu.matmul %89, %91, %cst_76 {dimension_numbers = #tpu.dot_dimension_numbers<[1], [0], [0], [1], [0, 0, 1, 1], [], []>} : vector<8x16xbf16>, vector<16x1024xbf16>, vector<8x1024xf32> -> vector<8x1024xf32>
    %93 = arith.addf %87, %92 : vector<8x1024xf32>
    %c3 = arith.constant 3 : index
    %c0_77 = arith.constant 0 : index
    %94 = tpu.strided_load %arg10[%c3, %c0_77] {strides = array<i32: 16, 1>} : memref<128x16xf32, #tpu.memory_space<vmem>>, vector<8x16xf32>
    %95 = arith.truncf %94 : vector<8x16xf32> to vector<8x16xbf16>
    %c3_78 = arith.constant 3 : index
    %c0_79 = arith.constant 0 : index
    %c0_80 = arith.constant 0 : index
    %96 = vector.load %arg5[%c3_78, %c0_79, %c0_80] : memref<16x16x1024xbf16, #tpu.memory_space<vmem>>, vector<1x16x1024xbf16>
    %97 = vector.shape_cast %96 : vector<1x16x1024xbf16> to vector<16x1024xbf16>
    %cst_81 = arith.constant dense<0.000000e+00> : vector<8x1024xf32>
    %98 = tpu.matmul %95, %97, %cst_81 {dimension_numbers = #tpu.dot_dimension_numbers<[1], [0], [0], [1], [0, 0, 1, 1], [], []>} : vector<8x16xbf16>, vector<16x1024xbf16>, vector<8x1024xf32> -> vector<8x1024xf32>
    %99 = arith.addf %93, %98 : vector<8x1024xf32>
    %c4 = arith.constant 4 : index
    %c0_82 = arith.constant 0 : index
    %100 = tpu.strided_load %arg10[%c4, %c0_82] {strides = array<i32: 16, 1>} : memref<128x16xf32, #tpu.memory_space<vmem>>, vector<8x16xf32>
    %101 = arith.truncf %100 : vector<8x16xf32> to vector<8x16xbf16>
    %c4_83 = arith.constant 4 : index
    %c0_84 = arith.constant 0 : index
    %c0_85 = arith.constant 0 : index
    %102 = vector.load %arg5[%c4_83, %c0_84, %c0_85] : memref<16x16x1024xbf16, #tpu.memory_space<vmem>>, vector<1x16x1024xbf16>
    %103 = vector.shape_cast %102 : vector<1x16x1024xbf16> to vector<16x1024xbf16>
    %cst_86 = arith.constant dense<0.000000e+00> : vector<8x1024xf32>
    %104 = tpu.matmul %101, %103, %cst_86 {dimension_numbers = #tpu.dot_dimension_numbers<[1], [0], [0], [1], [0, 0, 1, 1], [], []>} : vector<8x16xbf16>, vector<16x1024xbf16>, vector<8x1024xf32> -> vector<8x1024xf32>
    %105 = arith.addf %99, %104 : vector<8x1024xf32>
    %c5 = arith.constant 5 : index
    %c0_87 = arith.constant 0 : index
    %106 = tpu.strided_load %arg10[%c5, %c0_87] {strides = array<i32: 16, 1>} : memref<128x16xf32, #tpu.memory_space<vmem>>, vector<8x16xf32>
    %107 = arith.truncf %106 : vector<8x16xf32> to vector<8x16xbf16>
    %c5_88 = arith.constant 5 : index
    %c0_89 = arith.constant 0 : index
    %c0_90 = arith.constant 0 : index
    %108 = vector.load %arg5[%c5_88, %c0_89, %c0_90] : memref<16x16x1024xbf16, #tpu.memory_space<vmem>>, vector<1x16x1024xbf16>
    %109 = vector.shape_cast %108 : vector<1x16x1024xbf16> to vector<16x1024xbf16>
    %cst_91 = arith.constant dense<0.000000e+00> : vector<8x1024xf32>
    %110 = tpu.matmul %107, %109, %cst_91 {dimension_numbers = #tpu.dot_dimension_numbers<[1], [0], [0], [1], [0, 0, 1, 1], [], []>} : vector<8x16xbf16>, vector<16x1024xbf16>, vector<8x1024xf32> -> vector<8x1024xf32>
    %111 = arith.addf %105, %110 : vector<8x1024xf32>
    %c6 = arith.constant 6 : index
    %c0_92 = arith.constant 0 : index
    %112 = tpu.strided_load %arg10[%c6, %c0_92] {strides = array<i32: 16, 1>} : memref<128x16xf32, #tpu.memory_space<vmem>>, vector<8x16xf32>
    %113 = arith.truncf %112 : vector<8x16xf32> to vector<8x16xbf16>
    %c6_93 = arith.constant 6 : index
    %c0_94 = arith.constant 0 : index
    %c0_95 = arith.constant 0 : index
    %114 = vector.load %arg5[%c6_93, %c0_94, %c0_95] : memref<16x16x1024xbf16, #tpu.memory_space<vmem>>, vector<1x16x1024xbf16>
    %115 = vector.shape_cast %114 : vector<1x16x1024xbf16> to vector<16x1024xbf16>
    %cst_96 = arith.constant dense<0.000000e+00> : vector<8x1024xf32>
    %116 = tpu.matmul %113, %115, %cst_96 {dimension_numbers = #tpu.dot_dimension_numbers<[1], [0], [0], [1], [0, 0, 1, 1], [], []>} : vector<8x16xbf16>, vector<16x1024xbf16>, vector<8x1024xf32> -> vector<8x1024xf32>
    %117 = arith.addf %111, %116 : vector<8x1024xf32>
    %c7 = arith.constant 7 : index
    %c0_97 = arith.constant 0 : index
    %118 = tpu.strided_load %arg10[%c7, %c0_97] {strides = array<i32: 16, 1>} : memref<128x16xf32, #tpu.memory_space<vmem>>, vector<8x16xf32>
    %119 = arith.truncf %118 : vector<8x16xf32> to vector<8x16xbf16>
    %c7_98 = arith.constant 7 : index
    %c0_99 = arith.constant 0 : index
    %c0_100 = arith.constant 0 : index
    %120 = vector.load %arg5[%c7_98, %c0_99, %c0_100] : memref<16x16x1024xbf16, #tpu.memory_space<vmem>>, vector<1x16x1024xbf16>
    %121 = vector.shape_cast %120 : vector<1x16x1024xbf16> to vector<16x1024xbf16>
    %cst_101 = arith.constant dense<0.000000e+00> : vector<8x1024xf32>
    %122 = tpu.matmul %119, %121, %cst_101 {dimension_numbers = #tpu.dot_dimension_numbers<[1], [0], [0], [1], [0, 0, 1, 1], [], []>} : vector<8x16xbf16>, vector<16x1024xbf16>, vector<8x1024xf32> -> vector<8x1024xf32>
    %123 = arith.addf %117, %122 : vector<8x1024xf32>
    %c8 = arith.constant 8 : index
    %c0_102 = arith.constant 0 : index
    %124 = tpu.strided_load %arg10[%c8, %c0_102] {strides = array<i32: 16, 1>} : memref<128x16xf32, #tpu.memory_space<vmem>>, vector<8x16xf32>
    %125 = arith.truncf %124 : vector<8x16xf32> to vector<8x16xbf16>
    %c8_103 = arith.constant 8 : index
    %c0_104 = arith.constant 0 : index
    %c0_105 = arith.constant 0 : index
    %126 = vector.load %arg5[%c8_103, %c0_104, %c0_105] : memref<16x16x1024xbf16, #tpu.memory_space<vmem>>, vector<1x16x1024xbf16>
    %127 = vector.shape_cast %126 : vector<1x16x1024xbf16> to vector<16x1024xbf16>
    %cst_106 = arith.constant dense<0.000000e+00> : vector<8x1024xf32>
    %128 = tpu.matmul %125, %127, %cst_106 {dimension_numbers = #tpu.dot_dimension_numbers<[1], [0], [0], [1], [0, 0, 1, 1], [], []>} : vector<8x16xbf16>, vector<16x1024xbf16>, vector<8x1024xf32> -> vector<8x1024xf32>
    %129 = arith.addf %123, %128 : vector<8x1024xf32>
    %c9 = arith.constant 9 : index
    %c0_107 = arith.constant 0 : index
    %130 = tpu.strided_load %arg10[%c9, %c0_107] {strides = array<i32: 16, 1>} : memref<128x16xf32, #tpu.memory_space<vmem>>, vector<8x16xf32>
    %131 = arith.truncf %130 : vector<8x16xf32> to vector<8x16xbf16>
    %c9_108 = arith.constant 9 : index
    %c0_109 = arith.constant 0 : index
    %c0_110 = arith.constant 0 : index
    %132 = vector.load %arg5[%c9_108, %c0_109, %c0_110] : memref<16x16x1024xbf16, #tpu.memory_space<vmem>>, vector<1x16x1024xbf16>
    %133 = vector.shape_cast %132 : vector<1x16x1024xbf16> to vector<16x1024xbf16>
    %cst_111 = arith.constant dense<0.000000e+00> : vector<8x1024xf32>
    %134 = tpu.matmul %131, %133, %cst_111 {dimension_numbers = #tpu.dot_dimension_numbers<[1], [0], [0], [1], [0, 0, 1, 1], [], []>} : vector<8x16xbf16>, vector<16x1024xbf16>, vector<8x1024xf32> -> vector<8x1024xf32>
    %135 = arith.addf %129, %134 : vector<8x1024xf32>
    %c10 = arith.constant 10 : index
    %c0_112 = arith.constant 0 : index
    %136 = tpu.strided_load %arg10[%c10, %c0_112] {strides = array<i32: 16, 1>} : memref<128x16xf32, #tpu.memory_space<vmem>>, vector<8x16xf32>
    %137 = arith.truncf %136 : vector<8x16xf32> to vector<8x16xbf16>
    %c10_113 = arith.constant 10 : index
    %c0_114 = arith.constant 0 : index
    %c0_115 = arith.constant 0 : index
    %138 = vector.load %arg5[%c10_113, %c0_114, %c0_115] : memref<16x16x1024xbf16, #tpu.memory_space<vmem>>, vector<1x16x1024xbf16>
    %139 = vector.shape_cast %138 : vector<1x16x1024xbf16> to vector<16x1024xbf16>
    %cst_116 = arith.constant dense<0.000000e+00> : vector<8x1024xf32>
    %140 = tpu.matmul %137, %139, %cst_116 {dimension_numbers = #tpu.dot_dimension_numbers<[1], [0], [0], [1], [0, 0, 1, 1], [], []>} : vector<8x16xbf16>, vector<16x1024xbf16>, vector<8x1024xf32> -> vector<8x1024xf32>
    %141 = arith.addf %135, %140 : vector<8x1024xf32>
    %c11 = arith.constant 11 : index
    %c0_117 = arith.constant 0 : index
    %142 = tpu.strided_load %arg10[%c11, %c0_117] {strides = array<i32: 16, 1>} : memref<128x16xf32, #tpu.memory_space<vmem>>, vector<8x16xf32>
    %143 = arith.truncf %142 : vector<8x16xf32> to vector<8x16xbf16>
    %c11_118 = arith.constant 11 : index
    %c0_119 = arith.constant 0 : index
    %c0_120 = arith.constant 0 : index
    %144 = vector.load %arg5[%c11_118, %c0_119, %c0_120] : memref<16x16x1024xbf16, #tpu.memory_space<vmem>>, vector<1x16x1024xbf16>
    %145 = vector.shape_cast %144 : vector<1x16x1024xbf16> to vector<16x1024xbf16>
    %cst_121 = arith.constant dense<0.000000e+00> : vector<8x1024xf32>
    %146 = tpu.matmul %143, %145, %cst_121 {dimension_numbers = #tpu.dot_dimension_numbers<[1], [0], [0], [1], [0, 0, 1, 1], [], []>} : vector<8x16xbf16>, vector<16x1024xbf16>, vector<8x1024xf32> -> vector<8x1024xf32>
    %147 = arith.addf %141, %146 : vector<8x1024xf32>
    %c12 = arith.constant 12 : index
    %c0_122 = arith.constant 0 : index
    %148 = tpu.strided_load %arg10[%c12, %c0_122] {strides = array<i32: 16, 1>} : memref<128x16xf32, #tpu.memory_space<vmem>>, vector<8x16xf32>
    %149 = arith.truncf %148 : vector<8x16xf32> to vector<8x16xbf16>
    %c12_123 = arith.constant 12 : index
    %c0_124 = arith.constant 0 : index
    %c0_125 = arith.constant 0 : index
    %150 = vector.load %arg5[%c12_123, %c0_124, %c0_125] : memref<16x16x1024xbf16, #tpu.memory_space<vmem>>, vector<1x16x1024xbf16>
    %151 = vector.shape_cast %150 : vector<1x16x1024xbf16> to vector<16x1024xbf16>
    %cst_126 = arith.constant dense<0.000000e+00> : vector<8x1024xf32>
    %152 = tpu.matmul %149, %151, %cst_126 {dimension_numbers = #tpu.dot_dimension_numbers<[1], [0], [0], [1], [0, 0, 1, 1], [], []>} : vector<8x16xbf16>, vector<16x1024xbf16>, vector<8x1024xf32> -> vector<8x1024xf32>
    %153 = arith.addf %147, %152 : vector<8x1024xf32>
    %c13 = arith.constant 13 : index
    %c0_127 = arith.constant 0 : index
    %154 = tpu.strided_load %arg10[%c13, %c0_127] {strides = array<i32: 16, 1>} : memref<128x16xf32, #tpu.memory_space<vmem>>, vector<8x16xf32>
    %155 = arith.truncf %154 : vector<8x16xf32> to vector<8x16xbf16>
    %c13_128 = arith.constant 13 : index
    %c0_129 = arith.constant 0 : index
    %c0_130 = arith.constant 0 : index
    %156 = vector.load %arg5[%c13_128, %c0_129, %c0_130] : memref<16x16x1024xbf16, #tpu.memory_space<vmem>>, vector<1x16x1024xbf16>
    %157 = vector.shape_cast %156 : vector<1x16x1024xbf16> to vector<16x1024xbf16>
    %cst_131 = arith.constant dense<0.000000e+00> : vector<8x1024xf32>
    %158 = tpu.matmul %155, %157, %cst_131 {dimension_numbers = #tpu.dot_dimension_numbers<[1], [0], [0], [1], [0, 0, 1, 1], [], []>} : vector<8x16xbf16>, vector<16x1024xbf16>, vector<8x1024xf32> -> vector<8x1024xf32>
    %159 = arith.addf %153, %158 : vector<8x1024xf32>
    %c14 = arith.constant 14 : index
    %c0_132 = arith.constant 0 : index
    %160 = tpu.strided_load %arg10[%c14, %c0_132] {strides = array<i32: 16, 1>} : memref<128x16xf32, #tpu.memory_space<vmem>>, vector<8x16xf32>
    %161 = arith.truncf %160 : vector<8x16xf32> to vector<8x16xbf16>
    %c14_133 = arith.constant 14 : index
    %c0_134 = arith.constant 0 : index
    %c0_135 = arith.constant 0 : index
    %162 = vector.load %arg5[%c14_133, %c0_134, %c0_135] : memref<16x16x1024xbf16, #tpu.memory_space<vmem>>, vector<1x16x1024xbf16>
    %163 = vector.shape_cast %162 : vector<1x16x1024xbf16> to vector<16x1024xbf16>
    %cst_136 = arith.constant dense<0.000000e+00> : vector<8x1024xf32>
    %164 = tpu.matmul %161, %163, %cst_136 {dimension_numbers = #tpu.dot_dimension_numbers<[1], [0], [0], [1], [0, 0, 1, 1], [], []>} : vector<8x16xbf16>, vector<16x1024xbf16>, vector<8x1024xf32> -> vector<8x1024xf32>
    %165 = arith.addf %159, %164 : vector<8x1024xf32>
    %c15 = arith.constant 15 : index
    %c0_137 = arith.constant 0 : index
    %166 = tpu.strided_load %arg10[%c15, %c0_137] {strides = array<i32: 16, 1>} : memref<128x16xf32, #tpu.memory_space<vmem>>, vector<8x16xf32>
    %167 = arith.truncf %166 : vector<8x16xf32> to vector<8x16xbf16>
    %c15_138 = arith.constant 15 : index
    %c0_139 = arith.constant 0 : index
    %c0_140 = arith.constant 0 : index
    %168 = vector.load %arg5[%c15_138, %c0_139, %c0_140] : memref<16x16x1024xbf16, #tpu.memory_space<vmem>>, vector<1x16x1024xbf16>
    %169 = vector.shape_cast %168 : vector<1x16x1024xbf16> to vector<16x1024xbf16>
    %cst_141 = arith.constant dense<0.000000e+00> : vector<8x1024xf32>
    %170 = tpu.matmul %167, %169, %cst_141 {dimension_numbers = #tpu.dot_dimension_numbers<[1], [0], [0], [1], [0, 0, 1, 1], [], []>} : vector<8x16xbf16>, vector<16x1024xbf16>, vector<8x1024xf32> -> vector<8x1024xf32>
    %171 = arith.addf %165, %170 : vector<8x1024xf32>
    %c0_142 = arith.constant 0 : index
    %c0_143 = arith.constant 0 : index
    %172 = vector.load %arg6[%c0_142, %c0_143] : memref<1x1024xf32, #tpu.memory_space<vmem>>, vector<1x1024xf32>
    %173 = vector.broadcast %172 : vector<1x1024xf32> to vector<8x1024xf32>
    %174 = arith.addf %171, %173 : vector<8x1024xf32>
    %cst_144 = arith.constant 0.000000e+00 : f32
    %175 = vector.broadcast %cst_144 : f32 to vector<8x1024xf32>
    %176 = arith.maximumf %174, %175 : vector<8x1024xf32>
    %177 = arith.truncf %176 : vector<8x1024xf32> to vector<8x1024xbf16>
    %c0_145 = arith.constant 0 : index
    %c0_146 = arith.constant 0 : index
    %178 = vector.load %arg7[%c0_145, %c0_146] : memref<1024x128xbf16, #tpu.memory_space<vmem>>, vector<1024x128xbf16>
    %cst_147 = arith.constant dense<0.000000e+00> : vector<8x128xf32>
    %179 = tpu.matmul %177, %178, %cst_147 {dimension_numbers = #tpu.dot_dimension_numbers<[1], [0], [0], [1], [0, 0, 1, 1], [], []>} : vector<8x1024xbf16>, vector<1024x128xbf16>, vector<8x128xf32> -> vector<8x128xf32>
    %c0_148 = arith.constant 0 : index
    %c0_149 = arith.constant 0 : index
    %180 = vector.load %arg8[%c0_148, %c0_149] : memref<1x128xf32, #tpu.memory_space<vmem>>, vector<1x128xf32>
    %181 = vector.broadcast %180 : vector<1x128xf32> to vector<8x128xf32>
    %182 = arith.addf %179, %181 : vector<8x128xf32>
    %c0_150 = arith.constant 0 : index
    %c0_151 = arith.constant 0 : index
    %183 = vector.load %arg9[%c0_150, %c0_151] : memref<8x128xf32, #tpu.memory_space<vmem>>, vector<8x128xf32>
    tpu.vector_store %arg9[%c0_150, %c0_151], %182 {strides = array<i32>} : memref<8x128xf32, #tpu.memory_space<vmem>>, vector<8x128xf32>,
    return
  }
  func.func @transform_0(%arg0: i32) -> (i32, i32) {
    %c0_i32 = arith.constant 0 : i32
    %c0_i32_0 = arith.constant 0 : i32
    return %arg0, %c0_i32 : i32, i32
  }
  func.func @transform_1(%arg0: i32) -> (i32, i32) {
    %c0_i32 = arith.constant 0 : i32
    %c0_i32_0 = arith.constant 0 : i32
    %c0_i32_1 = arith.constant 0 : i32
    return %c0_i32, %c0_i32_0 : i32, i32
  }
  func.func @transform_2(%arg0: i32) -> (i32, i32) {
    %c0_i32 = arith.constant 0 : i32
    %c0_i32_0 = arith.constant 0 : i32
    %c0_i32_1 = arith.constant 0 : i32
    return %c0_i32, %c0_i32_0 : i32, i32
  }
  func.func @transform_3(%arg0: i32) -> (i32, i32) {
    %c0_i32 = arith.constant 0 : i32
    %c0_i32_0 = arith.constant 0 : i32
    %c0_i32_1 = arith.constant 0 : i32
    return %c0_i32, %c0_i32_0 : i32, i32
  }
  func.func @transform_4(%arg0: i32) -> (i32, i32, i32) {
    %c0_i32 = arith.constant 0 : i32
    %c0_i32_0 = arith.constant 0 : i32
    %c0_i32_1 = arith.constant 0 : i32
    %c0_i32_2 = arith.constant 0 : i32
    return %c0_i32, %c0_i32_0, %c0_i32_1 : i32, i32, i32
  }
  func.func @transform_5(%arg0: i32) -> (i32, i32) {
    %c0_i32 = arith.constant 0 : i32
    %c0_i32_0 = arith.constant 0 : i32
    %c0_i32_1 = arith.constant 0 : i32
    return %c0_i32, %c0_i32_0 : i32, i32
  }
  func.func @transform_6(%arg0: i32) -> (i32, i32) {
    %c0_i32 = arith.constant 0 : i32
    %c0_i32_0 = arith.constant 0 : i32
    %c0_i32_1 = arith.constant 0 : i32
    return %c0_i32, %c0_i32_0 : i32, i32
  }
  func.func @transform_7(%arg0: i32) -> (i32, i32) {
    %c0_i32 = arith.constant 0 : i32
    %c0_i32_0 = arith.constant 0 : i32
    %c0_i32_1 = arith.constant 0 : i32
    return %c0_i32, %c0_i32_0 : i32, i32
  }
  func.func @transform_8(%arg0: i32) -> (i32, i32) {
    %c0_i32 = arith.constant 0 : i32
    %c0_i32_0 = arith.constant 0 : i32
    return %arg0, %c0_i32 : i32, i32
  }
}

</mosaic_0001>

<llo_original>
// kernel: inception_aux_forward.1
$region0: #{inception_aux_forward.1}
  #allocation0 [shape = 'u32[]', space=smem, size = 0x4, offset = 0x4, fixed_abs, tag = 'smem constant byte address 0x4 - core index']
  #allocation1 [shape = 'u32[144,128]{1,0:T(1,128)}', space=vmem, size = 0x12000, scoped, tag = 'internal scratch']
  #allocation2 [shape = 'f32[128,16]{1,0:T(8,128)}', space=vmem, size = 0x10000, scoped, tag = 'scratch operand']
  %s0 = inlined_call_operand.vmem [shape: bf16[128,196], index: 0, kind: input, shape index: {}]
  %s1 = inlined_call_operand.vmem [shape: bf16[196,16], index: 1, kind: input, shape index: {}]
  %s2 = inlined_call_operand.vmem [shape: f32[16,8], index: 2, kind: input, shape index: {}]
  %s3 = inlined_call_operand.vmem [shape: f32[16,1], index: 3, kind: input, shape index: {}]
  %s4 = inlined_call_operand.vmem [shape: bf16[16,16,1024], index: 4, kind: input, shape index: {}]
  %s5 = inlined_call_operand.vmem [shape: f32[1,1024], index: 5, kind: input, shape index: {}]
  %s6 = inlined_call_operand.vmem [shape: bf16[1024,128], index: 6, kind: input, shape index: {}]
  %s7 = inlined_call_operand.vmem [shape: f32[1,128], index: 7, kind: input, shape index: {}]
  %s8 = inlined_call_operand.hbm [shape: f32[16,128], index: 8, kind: output, shape index: {}]
  %s9 = sld [smem:[#allocation0]]
  $region65: #{inception_aux_forward.1} parent=0
    _
  %s11 = ssub.s32 1, %s9
  %s12 = scalar_select 0, %s11, %s9
  $region1: #{inception_aux_forward.1} parent=0
    #allocation3 [shape = 'u8[8192]{0}', space=vmem, size = 0x2000, scoped, tag = 'output window, operand 0']
    #allocation4 [shape = 's32[2]{0}', space=sflag, size = 0x8, scoped, tag = 'scoped memory for inception_aux_forward.1']
    %13 = vsyncpa [#allocation4], 0
    %s14 = scalar_lea.sflag [#allocation4], 1
    %15 = vsyncpa %s14, 0
    loop: start=0, step=1, limit=4
    $region2: #{inception_aux_forward.1} parent=1 // loop_pre_header
      _
    $region3: #{inception_aux_forward.1} parent=1 // loop_header
      %s17 = sphi 0, %s21
      %p18 = scmp.ge.s32.totalorder %s17, 4
      %s27 = sphi 0, %s29
      %s30 = sphi 0, %s27
      %s31 = sphi 0, %s30
      %s47 = sphi 0, %s31
      %s51 = sphi 0, %s51
      %s53 = sphi 0, %s51
      %s54 = sphi 0, %s53
      %s68 = sphi 0, %s54
      %s72 = sphi 0, %s72
      %s74 = sphi 0, %s72
      %s75 = sphi 0, %s74
      %s89 = sphi 0, %s75
      %s93 = sphi 0, %s93
      %s95 = sphi 0, %s93
      %s96 = sphi 0, %s95
      %s110 = sphi 0, %s96
      %s114 = sphi 0, %s114
      %s116 = sphi 0, %s114
      %s117 = sphi 0, %s116
      %s131 = sphi 0, %s117
      %s135 = sphi 0, %s135
      %s137 = sphi 0, %s135
      %s138 = sphi 0, %s137
      %s152 = sphi 0, %s138
      %s156 = sphi 0, %s156
      %s158 = sphi 0, %s156
      %s159 = sphi 0, %s158
      %s173 = sphi 0, %s159
      %s177 = sphi 0, %s177
      %s179 = sphi 0, %s177
      %s180 = sphi 0, %s179
      %s194 = sphi 0, %s180
      %s200 = sphi 0, %s202
      %s203 = sphi 0, %s200
      %s204 = sphi 0, %s203
      %s220 = sphi 0, %s204
    $region4: #{inception_aux_forward.1} parent=1 // loop_header_branch
      %20 = sbr.rel (%p18) target = $region8
    $region5: #{inception_aux_forward.1} parent=1 // loop_body
      %s22 = ssub.s32 %s17, 1
      %s23 = ssub.s32 %s17, 2
      %s24 = sadd.s32 %s17, 1
      %s25 = ssub.s32 %s17, %s24
      %p26 = scmp.eq.s32.totalorder %s25, 0
      %s28 = sadd.s32 %s27, 1
      %s29 = scalar_select %p26, %s27, %s28
      %p32 = pneg %p26
      %p33 = scmp.eq.s32.totalorder %s17, 1
      %p34 = por %p32, %p33
      %p35 = scmp.ne.s32.totalorder %s27, %s30
      %p36 = scmp.eq.s32.totalorder %s17, 0
      %p37 = por %p35, %p36
      %p38 = scmp.ne.s32.totalorder %s27, %s30
      %p39 = scmp.eq.s32.totalorder %s22, 1
      %p40 = por %p38, %p39
      %p41 = scmp.ne.s32.totalorder %s30, %s31
      %p42 = scmp.eq.s32.totalorder %s22, 0
      %p43 = por %p41, %p42
      %p44 = scmp.ne.s32.totalorder %s30, %s31
      %p45 = scmp.eq.s32.totalorder %s23, 1
      %p46 = por %p44, %p45
      %p48 = scmp.ne.s32.totalorder %s31, %s47
      %p49 = scmp.eq.s32.totalorder %s23, 0
      %p50 = por %p48, %p49
      %s52 = sadd.s32 %s51, 1
      %p55 = scmp.eq.s32.totalorder %s17, 1
      %p56 = scmp.ne.s32.totalorder %s51, %s53
      %p57 = scmp.eq.s32.totalorder %s17, 0
      %p58 = por %p56, %p57
      %p59 = scmp.ne.s32.totalorder %s51, %s53
      %p60 = scmp.eq.s32.totalorder %s22, 1
      %p61 = por %p59, %p60
      %p62 = scmp.ne.s32.totalorder %s53, %s54
      %p63 = scmp.eq.s32.totalorder %s22, 0
      %p64 = por %p62, %p63
      %p65 = scmp.ne.s32.totalorder %s53, %s54
      %p66 = scmp.eq.s32.totalorder %s23, 1
      %p67 = por %p65, %p66
      %p69 = scmp.ne.s32.totalorder %s54, %s68
      %p70 = scmp.eq.s32.totalorder %s23, 0
      %p71 = por %p69, %p70
      %s73 = sadd.s32 %s72, 1
      %p76 = scmp.eq.s32.totalorder %s17, 1
      %p77 = scmp.ne.s32.totalorder %s72, %s74
      %p78 = scmp.eq.s32.totalorder %s17, 0
      %p79 = por %p77, %p78
      %p80 = scmp.ne.s32.totalorder %s72, %s74
      %p81 = scmp.eq.s32.totalorder %s22, 1
      %p82 = por %p80, %p81
      %p83 = scmp.ne.s32.totalorder %s74, %s75
      %p84 = scmp.eq.s32.totalorder %s22, 0
      %p85 = por %p83, %p84
      %p86 = scmp.ne.s32.totalorder %s74, %s75
      %p87 = scmp.eq.s32.totalorder %s23, 1
      %p88 = por %p86, %p87
      %p90 = scmp.ne.s32.totalorder %s75, %s89
      %p91 = scmp.eq.s32.totalorder %s23, 0
      %p92 = por %p90, %p91
      %s94 = sadd.s32 %s93, 1
      %p97 = scmp.eq.s32.totalorder %s17, 1
      %p98 = scmp.ne.s32.totalorder %s93, %s95
      %p99 = scmp.eq.s32.totalorder %s17, 0
      %p100 = por %p98, %p99
      %p101 = scmp.ne.s32.totalorder %s93, %s95
      %p102 = scmp.eq.s32.totalorder %s22, 1
      %p103 = por %p101, %p102
      %p104 = scmp.ne.s32.totalorder %s95, %s96
      %p105 = scmp.eq.s32.totalorder %s22, 0
      %p106 = por %p104, %p105
      %p107 = scmp.ne.s32.totalorder %s95, %s96
      %p108 = scmp.eq.s32.totalorder %s23, 1
      %p109 = por %p107, %p108
      %p111 = scmp.ne.s32.totalorder %s96, %s110
      %p112 = scmp.eq.s32.totalorder %s23, 0
      %p113 = por %p111, %p112
      %s115 = sadd.s32 %s114, 1
      %p118 = scmp.eq.s32.totalorder %s17, 1
      %p119 = scmp.ne.s32.totalorder %s114, %s116
      %p120 = scmp.eq.s32.totalorder %s17, 0
      %p121 = por %p119, %p120
      %p122 = scmp.ne.s32.totalorder %s114, %s116
      %p123 = scmp.eq.s32.totalorder %s22, 1
      %p124 = por %p122, %p123
      %p125 = scmp.ne.s32.totalorder %s116, %s117
      %p126 = scmp.eq.s32.totalorder %s22, 0
      %p127 = por %p125, %p126
      %p128 = scmp.ne.s32.totalorder %s116, %s117
      %p129 = scmp.eq.s32.totalorder %s23, 1
      %p130 = por %p128, %p129
      %p132 = scmp.ne.s32.totalorder %s117, %s131
      %p133 = scmp.eq.s32.totalorder %s23, 0
      %p134 = por %p132, %p133
      %s136 = sadd.s32 %s135, 1
      %p139 = scmp.eq.s32.totalorder %s17, 1
      %p140 = scmp.ne.s32.totalorder %s135, %s137
      %p141 = scmp.eq.s32.totalorder %s17, 0
      %p142 = por %p140, %p141
      %p143 = scmp.ne.s32.totalorder %s135, %s137
      %p144 = scmp.eq.s32.totalorder %s22, 1
      %p145 = por %p143, %p144
      %p146 = scmp.ne.s32.totalorder %s137, %s138
      %p147 = scmp.eq.s32.totalorder %s22, 0
      %p148 = por %p146, %p147
      %p149 = scmp.ne.s32.totalorder %s137, %s138
      %p150 = scmp.eq.s32.totalorder %s23, 1
      %p151 = por %p149, %p150
      %p153 = scmp.ne.s32.totalorder %s138, %s152
      %p154 = scmp.eq.s32.totalorder %s23, 0
      %p155 = por %p153, %p154
      %s157 = sadd.s32 %s156, 1
      %p160 = scmp.eq.s32.totalorder %s17, 1
      %p161 = scmp.ne.s32.totalorder %s156, %s158
      %p162 = scmp.eq.s32.totalorder %s17, 0
      %p163 = por %p161, %p162
      %p164 = scmp.ne.s32.totalorder %s156, %s158
      %p165 = scmp.eq.s32.totalorder %s22, 1
      %p166 = por %p164, %p165
      %p167 = scmp.ne.s32.totalorder %s158, %s159
      %p168 = scmp.eq.s32.totalorder %s22, 0
      %p169 = por %p167, %p168
      %p170 = scmp.ne.s32.totalorder %s158, %s159
      %p171 = scmp.eq.s32.totalorder %s23, 1
      %p172 = por %p170, %p171
      %p174 = scmp.ne.s32.totalorder %s159, %s173
      %p175 = scmp.eq.s32.totalorder %s23, 0
      %p176 = por %p174, %p175
      %s178 = sadd.s32 %s177, 1
      %p181 = scmp.eq.s32.totalorder %s17, 1
      %p182 = scmp.ne.s32.totalorder %s177, %s179
      %p183 = scmp.eq.s32.totalorder %s17, 0
      %p184 = por %p182, %p183
      %p185 = scmp.ne.s32.totalorder %s177, %s179
      %p186 = scmp.eq.s32.totalorder %s22, 1
      %p187 = por %p185, %p186
      %p188 = scmp.ne.s32.totalorder %s179, %s180
      %p189 = scmp.eq.s32.totalorder %s22, 0
      %p190 = por %p188, %p189
      %p191 = scmp.ne.s32.totalorder %s179, %s180
      %p192 = scmp.eq.s32.totalorder %s23, 1
      %p193 = por %p191, %p192
      %p195 = scmp.ne.s32.totalorder %s180, %s194
      %p196 = scmp.eq.s32.totalorder %s23, 0
      %p197 = por %p195, %p196
      %s198 = ssub.s32 %s17, %s24
      %p199 = scmp.eq.s32.totalorder %s198, 0
      %s201 = sadd.s32 %s200, 1
      %s202 = scalar_select %p199, %s200, %s201
      %p205 = pneg %p199
      %p206 = scmp.eq.s32.totalorder %s17, 1
      %p207 = por %p205, %p206
      %p208 = scmp.ne.s32.totalorder %s200, %s203
      %p209 = scmp.eq.s32.totalorder %s17, 0
      %p210 = por %p208, %p209
      %p211 = scmp.ne.s32.totalorder %s200, %s203
      %p212 = scmp.eq.s32.totalorder %s22, 1
      %p213 = por %p211, %p212
      %p214 = scmp.ne.s32.totalorder %s203, %s204
      %p215 = scmp.eq.s32.totalorder %s22, 0
      %p216 = por %p214, %p215
      %p217 = scmp.ne.s32.totalorder %s203, %s204
      %p218 = scmp.eq.s32.totalorder %s23, 1
      %p219 = por %p217, %p218
      %p221 = scmp.ne.s32.totalorder %s204, %s220
      %p222 = scmp.eq.s32.totalorder %s23, 0
      %p223 = por %p221, %p222
      %p224 = scmp.le.s32.totalorder 1, %s17
      %p225 = scmp.lt.s32.totalorder %s17, 3
      %p226 = pnand %p224, %p225
      %p227 = pneg %p226
      // Predicated region
      $region9: #{inception_aux_forward.1} parent=5 // pred_check
        _
      $region10: #{inception_aux_forward.1} parent=5 // pred_check_branch
        %229 = sbr.rel (%p226) target = $region12
      $region11: #{inception_aux_forward.1} parent=5 // pred_region
        %s230 = ssub.s32 %s17, 1
        // Predicated region
        $region13: #{inception_aux_forward.1} parent=11 // pred_check
          %p231 = pneg %p64
        $region14: #{inception_aux_forward.1} parent=11 // pred_check_branch
          %233 = sbr.rel (%p231) target = $region16
        $region15: #{inception_aux_forward.1} parent=11 // pred_region
          _
        $region16: #{inception_aux_forward.1} parent=11 // pred_fallthru
          _
        // Predicated region
        $region17: #{inception_aux_forward.1} parent=11 // pred_check
          %p234 = pneg %p85
        $region18: #{inception_aux_forward.1} parent=11 // pred_check_branch
          %236 = sbr.rel (%p234) target = $region20
        $region19: #{inception_aux_forward.1} parent=11 // pred_region
          _
        $region20: #{inception_aux_forward.1} parent=11 // pred_fallthru
          _
        // Predicated region
        $region21: #{inception_aux_forward.1} parent=11 // pred_check
          %p237 = pneg %p106
        $region22: #{inception_aux_forward.1} parent=11 // pred_check_branch
          %239 = sbr.rel (%p237) target = $region24
        $region23: #{inception_aux_forward.1} parent=11 // pred_region
          _
        $region24: #{inception_aux_forward.1} parent=11 // pred_fallthru
          _
        // Predicated region
        $region25: #{inception_aux_forward.1} parent=11 // pred_check
          %p240 = pneg %p127
        $region26: #{inception_aux_forward.1} parent=11 // pred_check_branch
          %242 = sbr.rel (%p240) target = $region28
        $region27: #{inception_aux_forward.1} parent=11 // pred_region
          _
        $region28: #{inception_aux_forward.1} parent=11 // pred_fallthru
          _
        // Predicated region
        $region29: #{inception_aux_forward.1} parent=11 // pred_check
          %p243 = pneg %p148
        $region30: #{inception_aux_forward.1} parent=11 // pred_check_branch
          %245 = sbr.rel (%p243) target = $region32
        $region31: #{inception_aux_forward.1} parent=11 // pred_region
          _
        $region32: #{inception_aux_forward.1} parent=11 // pred_fallthru
          _
        // Predicated region
        $region33: #{inception_aux_forward.1} parent=11 // pred_check
          %p246 = pneg %p169
        $region34: #{inception_aux_forward.1} parent=11 // pred_check_branch
          %248 = sbr.rel (%p246) target = $region36
        $region35: #{inception_aux_forward.1} parent=11 // pred_region
          _
        $region36: #{inception_aux_forward.1} parent=11 // pred_fallthru
          _
        // Predicated region
        $region37: #{inception_aux_forward.1} parent=11 // pred_check
          %p249 = pneg %p190
        $region38: #{inception_aux_forward.1} parent=11 // pred_check_branch
          %251 = sbr.rel (%p249) target = $region40
        $region39: #{inception_aux_forward.1} parent=11 // pred_region
          _
        $region40: #{inception_aux_forward.1} parent=11 // pred_fallthru
          _
      $region12: #{inception_aux_forward.1} parent=5 // pred_fallthru
        _
      %p252 = scmp.lt.s32.totalorder %s17, 2
      // Predicated region
      $region41: #{inception_aux_forward.1} parent=5 // pred_check
        %p253 = pneg %p252
      $region42: #{inception_aux_forward.1} parent=5 // pred_check_branch
        %255 = sbr.rel (%p253) target = $region44
      $region43: #{inception_aux_forward.1} parent=5 // pred_region
        // Predicated region
        $region45: #{inception_aux_forward.1} parent=43 // pred_check
          %p256 = pneg %p37
        $region46: #{inception_aux_forward.1} parent=43 // pred_check_branch
          %258 = sbr.rel (%p256) target = $region48
        $region47: #{inception_aux_forward.1} parent=43 // pred_region
          %s259 = smul.u32 8, %s17
          %p260 = scmp.lt.s32.totalorder %s259, 15
          %s261 = scalar_select %p260, %s259, 15
          %s262 = smul.addr %s261, 2
          %s263 = smul.addr %s262, 4
          %s264 = scalar_lea.vmem %s0, %s263
          %s265 = smul.u32 8, %s17
        $region48: #{inception_aux_forward.1} parent=43 // pred_fallthru
          _
      $region44: #{inception_aux_forward.1} parent=5 // pred_fallthru
        _
      %p266 = scmp.le.s32.totalorder 1, %s17
      %p267 = scmp.lt.s32.totalorder %s17, 3
      %p268 = pnand %p266, %p267
      %p269 = pneg %p268
      // Predicated region
      $region49: #{inception_aux_forward.1} parent=5 // pred_check
        _
      $region50: #{inception_aux_forward.1} parent=5 // pred_check_branch
        %271 = sbr.rel (%p268) target = $region52
      $region51: #{inception_aux_forward.1} parent=5 // pred_region
        %s272 = ssub.s32 %s17, 1
        %s273 = smul.u32 8, %s22
        %p274 = scmp.lt.s32.totalorder %s273, 15
        %s275 = scalar_select %p274, %s273, 15
        %s276 = smul.addr %s275, 2
        %s277 = smul.addr %s276, 4
        %s278 = scalar_lea.vmem %s0, %s277
        %p279 = pneg %p43
        %p280 = pneg %p40
        %p281 = pneg %p64
        %p282 = pneg %p61
        %p283 = pneg %p85
        %p284 = pneg %p82
        %p285 = pneg %p106
        %p286 = pneg %p103
        %p287 = pneg %p127
        %p288 = pneg %p124
        %p289 = pneg %p148
        %p290 = pneg %p145
        %p291 = pneg %p169
        %p292 = pneg %p166
        %p293 = pneg %p190
        %p294 = pneg %p187
        %p295 = pneg %p216
        %p296 = pneg %p213
        %s297 = sand.u32 %s203, 1
        %s298 = scalar_lea.sflag [#allocation4], %s297
        %s299 = sand.u32 %s203, 1
        %s300 = smul.addr %s299, 8
        %s301 = scalar_lea.vmem [#allocation3], %s300
        %s302 = smul.u32 8, %s22
        %p303 = scmp.lt.s32.totalorder %s302, 15
        %s304 = scalar_select %p303, %s302, 15
        %s305 = smul.addr %s304, 2
        %s306 = smul.addr %s305, 4
        %s307 = scalar_lea.vmem %s0, %s306
        %s308 = smul.u32 8, %s22
        %v310 = vld [vmem:[%s307] sm:$0xff]
        %v311 = vld [vmem:[%s307 + $0x8] sm:$0xff]
        %v312 = vld [vmem:[%s307 + $0x10] sm:$0xff]
        %v313 = vld [vmem:[%s307 + $0x18] sm:$0xff]
        %v314 = vld [vmem:[%s307 + $0x20] sm:$0xff]
        %v315 = vld [vmem:[%s307 + $0x28] sm:$0xff]
        %v316 = vld [vmem:[%s307 + $0x30] sm:$0xff]
        %v317 = vld [vmem:[%s307 + $0x38] sm:$0xff]
        %v318 = vld [vmem:[%s1] sm:$0xf]
        %v319 = vld [vmem:[%s1 + $0x4] sm:$0xf]
        %v320 = vld [vmem:[%s1 + $0x8] sm:$0xf]
        %v321 = vld [vmem:[%s1 + $0xc] sm:$0xf]
        %v322 = vld [vmem:[%s1 + $0x10] sm:$0xf]
        %v323 = vld [vmem:[%s1 + $0x14] sm:$0xf]
        %v324 = vld [vmem:[%s1 + $0x18] sm:$0xf]
        %v325 = vld [vmem:[%s1 + $0x1c] sm:$0xf]
        %v326 = vld [vmem:[%s1 + $0x20] sm:$0xf]
        %v327 = vld [vmem:[%s1 + $0x24] sm:$0xf]
        %v328 = vld [vmem:[%s1 + $0x28] sm:$0xf]
        %v329 = vld [vmem:[%s1 + $0x2c] sm:$0xf]
        %v330 = vld [vmem:[%s1 + $0x30] sm:$0xf]
        %v331 = vld [vmem:[%s1 + $0x34] sm:$0xf]
        %v332 = vld [vmem:[%s1 + $0x38] sm:$0xf]
        %v333 = vld [vmem:[%s1 + $0x3c] sm:$0xf]
        %v334 = vld [vmem:[%s1 + $0x40] sm:$0xf]
        %v335 = vld [vmem:[%s1 + $0x44] sm:$0xf]
        %v336 = vld [vmem:[%s1 + $0x48] sm:$0xf]
        %v337 = vld [vmem:[%s1 + $0x4c] sm:$0xf]
        %v338 = vld [vmem:[%s1 + $0x50] sm:$0xf]
        %v339 = vld [vmem:[%s1 + $0x54] sm:$0xf]
        %v340 = vld [vmem:[%s1 + $0x58] sm:$0xf]
        %v341 = vld [vmem:[%s1 + $0x5c] sm:$0xf]
        %v342 = vld [vmem:[%s1 + $0x60] sm:$0x3]
        %v351 = vunpack.c.l.b16 %v310
        %v352 = vunpack.c.h.b16 %v310
        %v353 = vunpack.c.l.b16 %v311
        %v354 = vunpack.c.h.b16 %v311
        %v355 = vunpack.c.l.b16 %v312
        %v356 = vunpack.c.h.b16 %v312
        %v357 = vunpack.c.l.b16 %v313
        %v358 = vunpack.c.h.b16 %v313
        %v359 = vunpack.c.l.b16 %v314
        %v360 = vunpack.c.h.b16 %v314
        %v361 = vunpack.c.l.b16 %v315
        %v362 = vunpack.c.h.b16 %v315
        %v363 = vunpack.c.l.b16 %v316
        %v364 = vunpack.c.h.b16 %v316
        %v365 = vunpack.c.l.b16 %v317
        %v366 = vunpack.c.h.b16 %v317
        %v367 = vpack.c.b16 %v353, %v351
        %v368 = vpack.c.b16 %v354, %v352
        %v369 = vpack.c.b16 %v357, %v355
        %v370 = vpack.c.b16 %v358, %v356
        %v371 = vpack.c.b16 %v361, %v359
        %v372 = vpack.c.b16 %v362, %v360
        %v373 = vpack.c.b16 %v365, %v363
        %v374 = vpack.c.b16 %v366, %v364
        %v404 = vunpack.c.l.b16 %v318
        %v405 = vunpack.c.l.b16 %v319
        %v406 = vunpack.c.l.b16 %v320
        %v407 = vunpack.c.l.b16 %v321
        %v408 = vunpack.c.l.b16 %v322
        %v409 = vunpack.c.l.b16 %v323
        %v410 = vunpack.c.l.b16 %v324
        %v411 = vunpack.c.l.b16 %v325
        %v412 = vunpack.c.l.b16 %v326
        %v413 = vunpack.c.l.b16 %v327
        %v414 = vunpack.c.l.b16 %v328
        %v415 = vunpack.c.l.b16 %v329
        %v416 = vunpack.c.l.b16 %v330
        %v417 = vunpack.c.l.b16 %v331
        %v418 = vunpack.c.l.b16 %v332
        %v419 = vunpack.c.l.b16 %v333
        %v420 = vunpack.c.l.b16 %v334
        %v421 = vunpack.c.l.b16 %v335
        %v422 = vunpack.c.l.b16 %v336
        %v423 = vunpack.c.l.b16 %v337
        %v424 = vunpack.c.l.b16 %v338
        %v425 = vunpack.c.l.b16 %v339
        %v426 = vunpack.c.l.b16 %v340
        %v427 = vunpack.c.l.b16 %v341
        %v428 = vunpack.c.l.b16 %v342
        %v429 = vpack.c.b16 %v405, %v404
        %v430 = vpack.c.b16 %v407, %v406
        %v431 = vpack.c.b16 %v409, %v408
        %v432 = vpack.c.b16 %v411, %v410
        %v433 = vpack.c.b16 %v413, %v412
        %v434 = vpack.c.b16 %v415, %v414
        %v435 = vpack.c.b16 %v417, %v416
        %v436 = vpack.c.b16 %v419, %v418
        %v437 = vpack.c.b16 %v421, %v420
        %v438 = vpack.c.b16 %v423, %v422
        %v439 = vpack.c.b16 %v425, %v424
        %v440 = vpack.c.b16 %v427, %v426
        %v441 = vpack.c.b16 %v428, %v428
        %vm454 = vcmask 556032
        %v456 = vsel %vm454, %v368, 0
        %v459 = vsel %vm454, %v370, 0
        %v462 = vsel %vm454, %v372, 0
        %v465 = vsel %vm454, %v374, 0
        %vm467 = vcmask 1041408
        %v469 = vsel %vm467, %v441, 0
        %471 = vmatprep.subr.bf16.mxu0 0
        %472 = vmatpush1.bf16.msra.mxu0 %v436
        %473 = vmatprep.subr.bf16.mxu0 0
        %474 = vmatpush1.bf16.msra.mxu0 %v435
        %475 = vmatprep.subr.bf16.mxu0 0
        %476 = vmatpush1.bf16.msra.mxu0 %v434
        %477 = vmatprep.subr.bf16.mxu0 0
        %478 = vmatpush1.bf16.msra.mxu0 %v433
        %479 = vmatprep.subr.bf16.mxu0 0
        %480 = vmatpush1.bf16.msra.mxu0 %v432
        %481 = vmatprep.subr.bf16.mxu0 0
        %482 = vmatpush1.bf16.msra.mxu0 %v431
        %483 = vmatprep.subr.bf16.mxu0 0
        %484 = vmatpush1.bf16.msra.mxu0 %v430
        %485 = vmatprep.subr.bf16.mxu0 0
        %486 = vmatpush1.bf16.msra.mxu0 %v429
        %487 = vmatprep.subr.bf16.mxu0 0
        %488 = vmatpush2.bf16.msra.mxu0 0
        %489 = vmatprep.subr.bf16.mxu0 0
        %490 = vmatpush2.bf16.msra.mxu0 0
        %491 = vmatprep.subr.bf16.mxu0 0
        %492 = vmatpush2.bf16.msra.mxu0 0
        %493 = vmatprep.subr.bf16.mxu0 0
        %494 = vmatpush2.bf16.msra.mxu0 %v469
        %495 = vmatprep.subr.bf16.mxu0 0
        %496 = vmatpush2.bf16.msra.mxu0 %v440
        %497 = vmatprep.subr.bf16.mxu0 0
        %498 = vmatpush2.bf16.msra.mxu0 %v439
        %499 = vmatprep.subr.bf16.mxu0 0
        %500 = vmatpush2.bf16.msra.mxu0 %v438
        %501 = vmatprep.subr.bf16.mxu0 0
        %502 = vmatpush2.bf16.msra.mxu0 %v437
        %503 = vmatprep.mubr.bf16.mxu0 %v456
        %504 = vmatmul.mubr.bf16.gmra.mxu0 %v367
        %v505 = vpop.f32.mrf.mxu0
        %v506 = vadd.f32 0.0, %v505
        %v507 = vpop.f32.mrf.mxu0
        %v508 = vpop.f32.mrf.mxu0
        %v509 = vadd.f32 0.0, %v508
        %v510 = vpop.f32.mrf.mxu0
        %511 = vmatprep.mubr.bf16.mxu0 %v459
        %512 = vmatmul.mubr.bf16.gmra.mxu0 %v369
        %v513 = vpop.f32.mrf.mxu0
        %v514 = vadd.f32 0.0, %v513
        %v515 = vpop.f32.mrf.mxu0
        %v516 = vpop.f32.mrf.mxu0
        %v517 = vadd.f32 0.0, %v516
        %v518 = vpop.f32.mrf.mxu0
        %519 = vmatprep.mubr.bf16.mxu0 %v462
        %520 = vmatmul.mubr.bf16.gmra.mxu0 %v371
        %v521 = vpop.f32.mrf.mxu0
        %v522 = vadd.f32 0.0, %v521
        %v523 = vpop.f32.mrf.mxu0
        %v524 = vpop.f32.mrf.mxu0
        %v525 = vadd.f32 0.0, %v524
        %v526 = vpop.f32.mrf.mxu0
        %527 = vmatprep.mubr.bf16.mxu0 %v465
        %528 = vmatmul.mubr.bf16.gmra.mxu0 %v373
        %v529 = vpop.f32.mrf.mxu0
        %v530 = vadd.f32 0.0, %v529
        %v531 = vpop.f32.mrf.mxu0
        %v532 = vpop.f32.mrf.mxu0
        %v533 = vadd.f32 0.0, %v532
        %v534 = vpop.f32.mrf.mxu0
        %535 = vdwg.mxu0
        %v536 = vld [vmem:[%s2] sm:$0xff]
        %v537 = vld [vmem:[%s2 + $0x8] sm:$0xff]
        %v538 = vld [vmem:[%s3] sm:$0xff]
        %v539 = vld [vmem:[%s3 + $0x8] sm:$0xff]
        %541 = vset.pattern.permute.xlu0 0
        %542 = vperm.xlu0 %541, %v538
        %v543 = vpop.permute.xlu0 %542
        %546 = vset.pattern.permute.xlu0 0
        %547 = vperm.xlu0 %546, %v539
        %v548 = vpop.permute.xlu0 %547
        %vm550 = vcmask 64512
        %v552 = vsel %vm550, %v536, 0
        %v555 = vsel %vm550, %v537, 0
        %557 = vmatprep.subr.mxu0 0.0
        %558 = vmatpush1.msra.mxu0 0.0
        %559 = vmatprep.subr.mxu0 0.0
        %560 = vmatpush1.msra.mxu0 0.0
        %561 = vmatprep.subr.mxu0 0.0
        %562 = vmatpush1.msra.mxu0 0.0
        %563 = vmatprep.subr.mxu0 0.0
        %564 = vmatpush1.msra.mxu0 0.0
        %565 = vmatprep.subr.mxu0 0.0
        %566 = vmatpush1.msra.mxu0 0.0
        %567 = vmatprep.subr.mxu0 0.0
        %568 = vmatpush1.msra.mxu0 0.0
        %569 = vmatprep.subr.mxu0 0.0
        %570 = vmatpush1.msra.mxu0 0.0
        %571 = vmatprep.subr.mxu0 0.0
        %572 = vmatpush1.msra.mxu0 0.0
        %573 = vmatprep.subr.mxu0 0.0
        %574 = vmatpush1.msra.mxu0 0.0
        %575 = vmatprep.subr.mxu0 0.0
        %576 = vmatpush1.msra.mxu0 0.0
        %577 = vmatprep.subr.mxu0 0.0
        %578 = vmatpush1.msra.mxu0 0.0
        %579 = vmatprep.subr.mxu0 0.0
        %580 = vmatpush1.msra.mxu0 0.0
        %581 = vmatprep.subr.mxu0 0.0
        %582 = vmatpush1.msra.mxu0 0.0
        %583 = vmatprep.subr.mxu0 0.0
        %584 = vmatpush1.msra.mxu0 0.0
        %585 = vmatprep.subr.mxu0 0.0
        %586 = vmatpush1.msra.mxu0 0.0
        %587 = vmatprep.subr.mxu0 0.0
        %588 = vmatpush1.msra.mxu0 %v506
        %589 = vmatprep.subr.mxu0 0.0
        %590 = vmatpush2.msra.mxu0 0.0
        %591 = vmatprep.subr.mxu0 0.0
        %592 = vmatpush2.msra.mxu0 0.0
        %593 = vmatprep.subr.mxu0 0.0
        %594 = vmatpush2.msra.mxu0 0.0
        %595 = vmatprep.subr.mxu0 0.0
        %596 = vmatpush2.msra.mxu0 0.0
        %597 = vmatprep.subr.mxu0 0.0
        %598 = vmatpush2.msra.mxu0 0.0
        %599 = vmatprep.subr.mxu0 0.0
        %600 = vmatpush2.msra.mxu0 0.0
        %601 = vmatprep.subr.mxu0 0.0
        %602 = vmatpush2.msra.mxu0 0.0
        %603 = vmatprep.subr.mxu0 0.0
        %604 = vmatpush2.msra.mxu0 0.0
        %605 = vmatprep.subr.mxu0 0.0
        %606 = vmatpush2.msra.mxu0 0.0
        %607 = vmatprep.subr.mxu0 0.0
        %608 = vmatpush2.msra.mxu0 0.0
        %609 = vmatprep.subr.mxu0 0.0
        %610 = vmatpush2.msra.mxu0 0.0
        %611 = vmatprep.subr.mxu0 0.0
        %612 = vmatpush2.msra.mxu0 0.0
        %613 = vmatprep.subr.mxu0 0.0
        %614 = vmatpush2.msra.mxu0 0.0
        %615 = vmatprep.subr.mxu0 0.0
        %616 = vmatpush2.msra.mxu0 0.0
        %617 = vmatprep.subr.mxu0 0.0
        %618 = vmatpush2.msra.mxu0 0.0
        %619 = vmatprep.subr.mxu0 0.0
        %620 = vmatpush2.msra.mxu0 0.0
        %621 = vmatprep.mubr.f32.mxu0 0.0
        %622 = vmatmul.mubr.f32.gmra.mxu0 %v552
        %v623 = vpop.f32.mrf.mxu0
        %v624 = vadd.f32 %v543, %v623
        %v625 = vpop.f32.mrf.mxu0
        %626 = vmatprep.mubr.f32.mxu0 0.0
        %627 = vmatmul.mubr.f32.gmra.mxu0 %v555
        %v628 = vpop.f32.mrf.mxu0
        %v629 = vadd.f32 %v548, %v628
        %v630 = vpop.f32.mrf.mxu0
        %631 = vdwg.mxu0
        %v632 = vmax.f32 %v624, 0.0
        %v633 = vmax.f32 %v629, 0.0
        %vm634 = vcmask 130048
        %635 = vst.msk [vmem:[#allocation2] sm:$0xff] %vm634, %v632
        %636 = vst.msk [vmem:[#allocation2 + $0x8] sm:$0xff] %vm634, %v633
        %v637 = vld [vmem:[%s2] sm:$0xff]
        %v638 = vld [vmem:[%s2 + $0x8] sm:$0xff]
        %v639 = vld [vmem:[%s3] sm:$0xff]
        %v640 = vld [vmem:[%s3 + $0x8] sm:$0xff]
        %642 = vset.pattern.permute.xlu0 0
        %643 = vperm.xlu0 %642, %v639
        %v644 = vpop.permute.xlu0 %643
        %647 = vset.pattern.permute.xlu0 0
        %648 = vperm.xlu0 %647, %v640
        %v649 = vpop.permute.xlu0 %648
        %v652 = vsel %vm550, %v637, 0
        %v655 = vsel %vm550, %v638, 0
        %657 = vmatprep.subr.mxu0 0.0
        %658 = vmatpush1.msra.mxu0 0.0
        %659 = vmatprep.subr.mxu0 0.0
        %660 = vmatpush1.msra.mxu0 0.0
        %661 = vmatprep.subr.mxu0 0.0
        %662 = vmatpush1.msra.mxu0 0.0
        %663 = vmatprep.subr.mxu0 0.0
        %664 = vmatpush1.msra.mxu0 0.0
        %665 = vmatprep.subr.mxu0 0.0
        %666 = vmatpush1.msra.mxu0 0.0
        %667 = vmatprep.subr.mxu0 0.0
        %668 = vmatpush1.msra.mxu0 0.0
        %669 = vmatprep.subr.mxu0 0.0
        %670 = vmatpush1.msra.mxu0 0.0
        %671 = vmatprep.subr.mxu0 0.0
        %672 = vmatpush1.msra.mxu0 0.0
        %673 = vmatprep.subr.mxu0 0.0
        %674 = vmatpush1.msra.mxu0 0.0
        %675 = vmatprep.subr.mxu0 0.0
        %676 = vmatpush1.msra.mxu0 0.0
        %677 = vmatprep.subr.mxu0 0.0
        %678 = vmatpush1.msra.mxu0 0.0
        %679 = vmatprep.subr.mxu0 0.0
        %680 = vmatpush1.msra.mxu0 0.0
        %681 = vmatprep.subr.mxu0 0.0
        %682 = vmatpush1.msra.mxu0 0.0
        %683 = vmatprep.subr.mxu0 0.0
        %684 = vmatpush1.msra.mxu0 0.0
        %685 = vmatprep.subr.mxu0 0.0
        %686 = vmatpush1.msra.mxu0 0.0
        %687 = vmatprep.subr.mxu0 0.0
        %688 = vmatpush1.msra.mxu0 %v509
        %689 = vmatprep.subr.mxu0 0.0
        %690 = vmatpush2.msra.mxu0 0.0
        %691 = vmatprep.subr.mxu0 0.0
        %692 = vmatpush2.msra.mxu0 0.0
        %693 = vmatprep.subr.mxu0 0.0
        %694 = vmatpush2.msra.mxu0 0.0
        %695 = vmatprep.subr.mxu0 0.0
        %696 = vmatpush2.msra.mxu0 0.0
        %697 = vmatprep.subr.mxu0 0.0
        %698 = vmatpush2.msra.mxu0 0.0
        %699 = vmatprep.subr.mxu0 0.0
        %700 = vmatpush2.msra.mxu0 0.0
        %701 = vmatprep.subr.mxu0 0.0
        %702 = vmatpush2.msra.mxu0 0.0
        %703 = vmatprep.subr.mxu0 0.0
        %704 = vmatpush2.msra.mxu0 0.0
        %705 = vmatprep.subr.mxu0 0.0
        %706 = vmatpush2.msra.mxu0 0.0
        %707 = vmatprep.subr.mxu0 0.0
        %708 = vmatpush2.msra.mxu0 0.0
        %709 = vmatprep.subr.mxu0 0.0
        %710 = vmatpush2.msra.mxu0 0.0
        %711 = vmatprep.subr.mxu0 0.0
        %712 = vmatpush2.msra.mxu0 0.0
        %713 = vmatprep.subr.mxu0 0.0
        %714 = vmatpush2.msra.mxu0 0.0
        %715 = vmatprep.subr.mxu0 0.0
        %716 = vmatpush2.msra.mxu0 0.0
        %717 = vmatprep.subr.mxu0 0.0
        %718 = vmatpush2.msra.mxu0 0.0
        %719 = vmatprep.subr.mxu0 0.0
        %720 = vmatpush2.msra.mxu0 0.0
        %721 = vmatprep.mubr.f32.mxu0 0.0
        %722 = vmatmul.mubr.f32.gmra.mxu0 %v652
        %v723 = vpop.f32.mrf.mxu0
        %v724 = vadd.f32 %v644, %v723
        %v725 = vpop.f32.mrf.mxu0
        %726 = vmatprep.mubr.f32.mxu0 0.0
        %727 = vmatmul.mubr.f32.gmra.mxu0 %v655
        %v728 = vpop.f32.mrf.mxu0
        %v729 = vadd.f32 %v649, %v728
        %v730 = vpop.f32.mrf.mxu0
        %731 = vdwg.mxu0
        %v732 = vmax.f32 %v724, 0.0
        %v733 = vmax.f32 %v729, 0.0
        %734 = vst.msk [vmem:[#allocation2 + $0x10] sm:$0xff] %vm634, %v732
        %735 = vst.msk [vmem:[#allocation2 + $0x18] sm:$0xff] %vm634, %v733
        %v736 = vld [vmem:[%s2] sm:$0xff]
        %v737 = vld [vmem:[%s2 + $0x8] sm:$0xff]
        %v738 = vld [vmem:[%s3] sm:$0xff]
        %v739 = vld [vmem:[%s3 + $0x8] sm:$0xff]
        %741 = vset.pattern.permute.xlu0 0
        %742 = vperm.xlu0 %741, %v738
        %v743 = vpop.permute.xlu0 %742
        %746 = vset.pattern.permute.xlu0 0
        %747 = vperm.xlu0 %746, %v739
        %v748 = vpop.permute.xlu0 %747
        %v751 = vsel %vm550, %v736, 0
        %v754 = vsel %vm550, %v737, 0
        %756 = vmatprep.subr.mxu0 0.0
        %757 = vmatpush1.msra.mxu0 0.0
        %758 = vmatprep.subr.mxu0 0.0
        %759 = vmatpush1.msra.mxu0 0.0
        %760 = vmatprep.subr.mxu0 0.0
        %761 = vmatpush1.msra.mxu0 0.0
        %762 = vmatprep.subr.mxu0 0.0
        %763 = vmatpush1.msra.mxu0 0.0
        %764 = vmatprep.subr.mxu0 0.0
        %765 = vmatpush1.msra.mxu0 0.0
        %766 = vmatprep.subr.mxu0 0.0
        %767 = vmatpush1.msra.mxu0 0.0
        %768 = vmatprep.subr.mxu0 0.0
        %769 = vmatpush1.msra.mxu0 0.0
        %770 = vmatprep.subr.mxu0 0.0
        %771 = vmatpush1.msra.mxu0 0.0
        %772 = vmatprep.subr.mxu0 0.0
        %773 = vmatpush1.msra.mxu0 0.0
        %774 = vmatprep.subr.mxu0 0.0
        %775 = vmatpush1.msra.mxu0 0.0
        %776 = vmatprep.subr.mxu0 0.0
        %777 = vmatpush1.msra.mxu0 0.0
        %778 = vmatprep.subr.mxu0 0.0
        %779 = vmatpush1.msra.mxu0 0.0
        %780 = vmatprep.subr.mxu0 0.0
        %781 = vmatpush1.msra.mxu0 0.0
        %782 = vmatprep.subr.mxu0 0.0
        %783 = vmatpush1.msra.mxu0 0.0
        %784 = vmatprep.subr.mxu0 0.0
        %785 = vmatpush1.msra.mxu0 0.0
        %786 = vmatprep.subr.mxu0 0.0
        %787 = vmatpush1.msra.mxu0 %v514
        %788 = vmatprep.subr.mxu0 0.0
        %789 = vmatpush2.msra.mxu0 0.0
        %790 = vmatprep.subr.mxu0 0.0
        %791 = vmatpush2.msra.mxu0 0.0
        %792 = vmatprep.subr.mxu0 0.0
        %793 = vmatpush2.msra.mxu0 0.0
        %794 = vmatprep.subr.mxu0 0.0
        %795 = vmatpush2.msra.mxu0 0.0
        %796 = vmatprep.subr.mxu0 0.0
        %797 = vmatpush2.msra.mxu0 0.0
        %798 = vmatprep.subr.mxu0 0.0
        %799 = vmatpush2.msra.mxu0 0.0
        %800 = vmatprep.subr.mxu0 0.0
        %801 = vmatpush2.msra.mxu0 0.0
        %802 = vmatprep.subr.mxu0 0.0
        %803 = vmatpush2.msra.mxu0 0.0
        %804 = vmatprep.subr.mxu0 0.0
        %805 = vmatpush2.msra.mxu0 0.0
        %806 = vmatprep.subr.mxu0 0.0
        %807 = vmatpush2.msra.mxu0 0.0
        %808 = vmatprep.subr.mxu0 0.0
        %809 = vmatpush2.msra.mxu0 0.0
        %810 = vmatprep.subr.mxu0 0.0
        %811 = vmatpush2.msra.mxu0 0.0
        %812 = vmatprep.subr.mxu0 0.0
        %813 = vmatpush2.msra.mxu0 0.0
        %814 = vmatprep.subr.mxu0 0.0
        %815 = vmatpush2.msra.mxu0 0.0
        %816 = vmatprep.subr.mxu0 0.0
        %817 = vmatpush2.msra.mxu0 0.0
        %818 = vmatprep.subr.mxu0 0.0
        %819 = vmatpush2.msra.mxu0 0.0
        %820 = vmatprep.mubr.f32.mxu0 0.0
        %821 = vmatmul.mubr.f32.gmra.mxu0 %v751
        %v822 = vpop.f32.mrf.mxu0
        %v823 = vadd.f32 %v743, %v822
        %v824 = vpop.f32.mrf.mxu0
        %825 = vmatprep.mubr.f32.mxu0 0.0
        %826 = vmatmul.mubr.f32.gmra.mxu0 %v754
        %v827 = vpop.f32.mrf.mxu0
        %v828 = vadd.f32 %v748, %v827
        %v829 = vpop.f32.mrf.mxu0
        %830 = vdwg.mxu0
        %v831 = vmax.f32 %v823, 0.0
        %v832 = vmax.f32 %v828, 0.0
        %833 = vst.msk [vmem:[#allocation2 + $0x20] sm:$0xff] %vm634, %v831
        %834 = vst.msk [vmem:[#allocation2 + $0x28] sm:$0xff] %vm634, %v832
        %v835 = vld [vmem:[%s2] sm:$0xff]
        %v836 = vld [vmem:[%s2 + $0x8] sm:$0xff]
        %v837 = vld [vmem:[%s3] sm:$0xff]
        %v838 = vld [vmem:[%s3 + $0x8] sm:$0xff]
        %840 = vset.pattern.permute.xlu0 0
        %841 = vperm.xlu0 %840, %v837
        %v842 = vpop.permute.xlu0 %841
        %845 = vset.pattern.permute.xlu0 0
        %846 = vperm.xlu0 %845, %v838
        %v847 = vpop.permute.xlu0 %846
        %v850 = vsel %vm550, %v835, 0
        %v853 = vsel %vm550, %v836, 0
        %855 = vmatprep.subr.mxu0 0.0
        %856 = vmatpush1.msra.mxu0 0.0
        %857 = vmatprep.subr.mxu0 0.0
        %858 = vmatpush1.msra.mxu0 0.0
        %859 = vmatprep.subr.mxu0 0.0
        %860 = vmatpush1.msra.mxu0 0.0
        %861 = vmatprep.subr.mxu0 0.0
        %862 = vmatpush1.msra.mxu0 0.0
        %863 = vmatprep.subr.mxu0 0.0
        %864 = vmatpush1.msra.mxu0 0.0
        %865 = vmatprep.subr.mxu0 0.0
        %866 = vmatpush1.msra.mxu0 0.0
        %867 = vmatprep.subr.mxu0 0.0
        %868 = vmatpush1.msra.mxu0 0.0
        %869 = vmatprep.subr.mxu0 0.0
        %870 = vmatpush1.msra.mxu0 0.0
        %871 = vmatprep.subr.mxu0 0.0
        %872 = vmatpush1.msra.mxu0 0.0
        %873 = vmatprep.subr.mxu0 0.0
        %874 = vmatpush1.msra.mxu0 0.0
        %875 = vmatprep.subr.mxu0 0.0
        %876 = vmatpush1.msra.mxu0 0.0
        %877 = vmatprep.subr.mxu0 0.0
        %878 = vmatpush1.msra.mxu0 0.0
        %879 = vmatprep.subr.mxu0 0.0
        %880 = vmatpush1.msra.mxu0 0.0
        %881 = vmatprep.subr.mxu0 0.0
        %882 = vmatpush1.msra.mxu0 0.0
        %883 = vmatprep.subr.mxu0 0.0
        %884 = vmatpush1.msra.mxu0 0.0
        %885 = vmatprep.subr.mxu0 0.0
        %886 = vmatpush1.msra.mxu0 %v517
        %887 = vmatprep.subr.mxu0 0.0
        %888 = vmatpush2.msra.mxu0 0.0
        %889 = vmatprep.subr.mxu0 0.0
        %890 = vmatpush2.msra.mxu0 0.0
        %891 = vmatprep.subr.mxu0 0.0
        %892 = vmatpush2.msra.mxu0 0.0
        %893 = vmatprep.subr.mxu0 0.0
        %894 = vmatpush2.msra.mxu0 0.0
        %895 = vmatprep.subr.mxu0 0.0
        %896 = vmatpush2.msra.mxu0 0.0
        %897 = vmatprep.subr.mxu0 0.0
        %898 = vmatpush2.msra.mxu0 0.0
        %899 = vmatprep.subr.mxu0 0.0
        %900 = vmatpush2.msra.mxu0 0.0
        %901 = vmatprep.subr.mxu0 0.0
        %902 = vmatpush2.msra.mxu0 0.0
        %903 = vmatprep.subr.mxu0 0.0
        %904 = vmatpush2.msra.mxu0 0.0
        %905 = vmatprep.subr.mxu0 0.0
        %906 = vmatpush2.msra.mxu0 0.0
        %907 = vmatprep.subr.mxu0 0.0
        %908 = vmatpush2.msra.mxu0 0.0
        %909 = vmatprep.subr.mxu0 0.0
        %910 = vmatpush2.msra.mxu0 0.0
        %911 = vmatprep.subr.mxu0 0.0
        %912 = vmatpush2.msra.mxu0 0.0
        %913 = vmatprep.subr.mxu0 0.0
        %914 = vmatpush2.msra.mxu0 0.0
        %915 = vmatprep.subr.mxu0 0.0
        %916 = vmatpush2.msra.mxu0 0.0
        %917 = vmatprep.subr.mxu0 0.0
        %918 = vmatpush2.msra.mxu0 0.0
        %919 = vmatprep.mubr.f32.mxu0 0.0
        %920 = vmatmul.mubr.f32.gmra.mxu0 %v850
        %v921 = vpop.f32.mrf.mxu0
        %v922 = vadd.f32 %v842, %v921
        %v923 = vpop.f32.mrf.mxu0
        %924 = vmatprep.mubr.f32.mxu0 0.0
        %925 = vmatmul.mubr.f32.gmra.mxu0 %v853
        %v926 = vpop.f32.mrf.mxu0
        %v927 = vadd.f32 %v847, %v926
        %v928 = vpop.f32.mrf.mxu0
        %929 = vdwg.mxu0
        %v930 = vmax.f32 %v922, 0.0
        %v931 = vmax.f32 %v927, 0.0
        %932 = vst.msk [vmem:[#allocation2 + $0x30] sm:$0xff] %vm634, %v930
        %933 = vst.msk [vmem:[#allocation2 + $0x38] sm:$0xff] %vm634, %v931
        %v934 = vld [vmem:[%s2] sm:$0xff]
        %v935 = vld [vmem:[%s2 + $0x8] sm:$0xff]
        %v936 = vld [vmem:[%s3] sm:$0xff]
        %v937 = vld [vmem:[%s3 + $0x8] sm:$0xff]
        %939 = vset.pattern.permute.xlu0 0
        %940 = vperm.xlu0 %939, %v936
        %v941 = vpop.permute.xlu0 %940
        %944 = vset.pattern.permute.xlu0 0
        %945 = vperm.xlu0 %944, %v937
        %v946 = vpop.permute.xlu0 %945
        %v949 = vsel %vm550, %v934, 0
        %v952 = vsel %vm550, %v935, 0
        %954 = vmatprep.subr.mxu0 0.0
        %955 = vmatpush1.msra.mxu0 0.0
        %956 = vmatprep.subr.mxu0 0.0
        %957 = vmatpush1.msra.mxu0 0.0
        %958 = vmatprep.subr.mxu0 0.0
        %959 = vmatpush1.msra.mxu0 0.0
        %960 = vmatprep.subr.mxu0 0.0
        %961 = vmatpush1.msra.mxu0 0.0
        %962 = vmatprep.subr.mxu0 0.0
        %963 = vmatpush1.msra.mxu0 0.0
        %964 = vmatprep.subr.mxu0 0.0
        %965 = vmatpush1.msra.mxu0 0.0
        %966 = vmatprep.subr.mxu0 0.0
        %967 = vmatpush1.msra.mxu0 0.0
        %968 = vmatprep.subr.mxu0 0.0
        %969 = vmatpush1.msra.mxu0 0.0
        %970 = vmatprep.subr.mxu0 0.0
        %971 = vmatpush1.msra.mxu0 0.0
        %972 = vmatprep.subr.mxu0 0.0
        %973 = vmatpush1.msra.mxu0 0.0
        %974 = vmatprep.subr.mxu0 0.0
        %975 = vmatpush1.msra.mxu0 0.0
        %976 = vmatprep.subr.mxu0 0.0
        %977 = vmatpush1.msra.mxu0 0.0
        %978 = vmatprep.subr.mxu0 0.0
        %979 = vmatpush1.msra.mxu0 0.0
        %980 = vmatprep.subr.mxu0 0.0
        %981 = vmatpush1.msra.mxu0 0.0
        %982 = vmatprep.subr.mxu0 0.0
        %983 = vmatpush1.msra.mxu0 0.0
        %984 = vmatprep.subr.mxu0 0.0
        %985 = vmatpush1.msra.mxu0 %v522
        %986 = vmatprep.subr.mxu0 0.0
        %987 = vmatpush2.msra.mxu0 0.0
        %988 = vmatprep.subr.mxu0 0.0
        %989 = vmatpush2.msra.mxu0 0.0
        %990 = vmatprep.subr.mxu0 0.0
        %991 = vmatpush2.msra.mxu0 0.0
        %992 = vmatprep.subr.mxu0 0.0
        %993 = vmatpush2.msra.mxu0 0.0
        %994 = vmatprep.subr.mxu0 0.0
        %995 = vmatpush2.msra.mxu0 0.0
        %996 = vmatprep.subr.mxu0 0.0
        %997 = vmatpush2.msra.mxu0 0.0
        %998 = vmatprep.subr.mxu0 0.0
        %999 = vmatpush2.msra.mxu0 0.0
        %1000 = vmatprep.subr.mxu0 0.0
        %1001 = vmatpush2.msra.mxu0 0.0
        %1002 = vmatprep.subr.mxu0 0.0
        %1003 = vmatpush2.msra.mxu0 0.0
        %1004 = vmatprep.subr.mxu0 0.0
        %1005 = vmatpush2.msra.mxu0 0.0
        %1006 = vmatprep.subr.mxu0 0.0
        %1007 = vmatpush2.msra.mxu0 0.0
        %1008 = vmatprep.subr.mxu0 0.0
        %1009 = vmatpush2.msra.mxu0 0.0
        %1010 = vmatprep.subr.mxu0 0.0
        %1011 = vmatpush2.msra.mxu0 0.0
        %1012 = vmatprep.subr.mxu0 0.0
        %1013 = vmatpush2.msra.mxu0 0.0
        %1014 = vmatprep.subr.mxu0 0.0
        %1015 = vmatpush2.msra.mxu0 0.0
        %1016 = vmatprep.subr.mxu0 0.0
        %1017 = vmatpush2.msra.mxu0 0.0
        %1018 = vmatprep.mubr.f32.mxu0 0.0
        %1019 = vmatmul.mubr.f32.gmra.mxu0 %v949
        %v1020 = vpop.f32.mrf.mxu0
        %v1021 = vadd.f32 %v941, %v1020
        %v1022 = vpop.f32.mrf.mxu0
        %1023 = vmatprep.mubr.f32.mxu0 0.0
        %1024 = vmatmul.mubr.f32.gmra.mxu0 %v952
        %v1025 = vpop.f32.mrf.mxu0
        %v1026 = vadd.f32 %v946, %v1025
        %v1027 = vpop.f32.mrf.mxu0
        %1028 = vdwg.mxu0
        %v1029 = vmax.f32 %v1021, 0.0
        %v1030 = vmax.f32 %v1026, 0.0
        %1031 = vst.msk [vmem:[#allocation2 + $0x40] sm:$0xff] %vm634, %v1029
        %1032 = vst.msk [vmem:[#allocation2 + $0x48] sm:$0xff] %vm634, %v1030
        %v1033 = vld [vmem:[%s2] sm:$0xff]
        %v1034 = vld [vmem:[%s2 + $0x8] sm:$0xff]
        %v1035 = vld [vmem:[%s3] sm:$0xff]
        %v1036 = vld [vmem:[%s3 + $0x8] sm:$0xff]
        %1038 = vset.pattern.permute.xlu0 0
        %1039 = vperm.xlu0 %1038, %v1035
        %v1040 = vpop.permute.xlu0 %1039
        %1043 = vset.pattern.permute.xlu0 0
        %1044 = vperm.xlu0 %1043, %v1036
        %v1045 = vpop.permute.xlu0 %1044
        %v1048 = vsel %vm550, %v1033, 0
        %v1051 = vsel %vm550, %v1034, 0
        %1053 = vmatprep.subr.mxu0 0.0
        %1054 = vmatpush1.msra.mxu0 0.0
        %1055 = vmatprep.subr.mxu0 0.0
        %1056 = vmatpush1.msra.mxu0 0.0
        %1057 = vmatprep.subr.mxu0 0.0
        %1058 = vmatpush1.msra.mxu0 0.0
        %1059 = vmatprep.subr.mxu0 0.0
        %1060 = vmatpush1.msra.mxu0 0.0
        %1061 = vmatprep.subr.mxu0 0.0
        %1062 = vmatpush1.msra.mxu0 0.0
        %1063 = vmatprep.subr.mxu0 0.0
        %1064 = vmatpush1.msra.mxu0 0.0
        %1065 = vmatprep.subr.mxu0 0.0
        %1066 = vmatpush1.msra.mxu0 0.0
        %1067 = vmatprep.subr.mxu0 0.0
        %1068 = vmatpush1.msra.mxu0 0.0
        %1069 = vmatprep.subr.mxu0 0.0
        %1070 = vmatpush1.msra.mxu0 0.0
        %1071 = vmatprep.subr.mxu0 0.0
        %1072 = vmatpush1.msra.mxu0 0.0
        %1073 = vmatprep.subr.mxu0 0.0
        %1074 = vmatpush1.msra.mxu0 0.0
        %1075 = vmatprep.subr.mxu0 0.0
        %1076 = vmatpush1.msra.mxu0 0.0
        %1077 = vmatprep.subr.mxu0 0.0
        %1078 = vmatpush1.msra.mxu0 0.0
        %1079 = vmatprep.subr.mxu0 0.0
        %1080 = vmatpush1.msra.mxu0 0.0
        %1081 = vmatprep.subr.mxu0 0.0
        %1082 = vmatpush1.msra.mxu0 0.0
        %1083 = vmatprep.subr.mxu0 0.0
        %1084 = vmatpush1.msra.mxu0 %v525
        %1085 = vmatprep.subr.mxu0 0.0
        %1086 = vmatpush2.msra.mxu0 0.0
        %1087 = vmatprep.subr.mxu0 0.0
        %1088 = vmatpush2.msra.mxu0 0.0
        %1089 = vmatprep.subr.mxu0 0.0
        %1090 = vmatpush2.msra.mxu0 0.0
        %1091 = vmatprep.subr.mxu0 0.0
        %1092 = vmatpush2.msra.mxu0 0.0
        %1093 = vmatprep.subr.mxu0 0.0
        %1094 = vmatpush2.msra.mxu0 0.0
        %1095 = vmatprep.subr.mxu0 0.0
        %1096 = vmatpush2.msra.mxu0 0.0
        %1097 = vmatprep.subr.mxu0 0.0
        %1098 = vmatpush2.msra.mxu0 0.0
        %1099 = vmatprep.subr.mxu0 0.0
        %1100 = vmatpush2.msra.mxu0 0.0
        %1101 = vmatprep.subr.mxu0 0.0
        %1102 = vmatpush2.msra.mxu0 0.0
        %1103 = vmatprep.subr.mxu0 0.0
        %1104 = vmatpush2.msra.mxu0 0.0
        %1105 = vmatprep.subr.mxu0 0.0
        %1106 = vmatpush2.msra.mxu0 0.0
        %1107 = vmatprep.subr.mxu0 0.0
        %1108 = vmatpush2.msra.mxu0 0.0
        %1109 = vmatprep.subr.mxu0 0.0
        %1110 = vmatpush2.msra.mxu0 0.0
        %1111 = vmatprep.subr.mxu0 0.0
        %1112 = vmatpush2.msra.mxu0 0.0
        %1113 = vmatprep.subr.mxu0 0.0
        %1114 = vmatpush2.msra.mxu0 0.0
        %1115 = vmatprep.subr.mxu0 0.0
        %1116 = vmatpush2.msra.mxu0 0.0
        %1117 = vmatprep.mubr.f32.mxu0 0.0
        %1118 = vmatmul.mubr.f32.gmra.mxu0 %v1048
        %v1119 = vpop.f32.mrf.mxu0
        %v1120 = vadd.f32 %v1040, %v1119
        %v1121 = vpop.f32.mrf.mxu0
        %1122 = vmatprep.mubr.f32.mxu0 0.0
        %1123 = vmatmul.mubr.f32.gmra.mxu0 %v1051
        %v1124 = vpop.f32.mrf.mxu0
        %v1125 = vadd.f32 %v1045, %v1124
        %v1126 = vpop.f32.mrf.mxu0
        %1127 = vdwg.mxu0
        %v1128 = vmax.f32 %v1120, 0.0
        %v1129 = vmax.f32 %v1125, 0.0
        %1130 = vst.msk [vmem:[#allocation2 + $0x50] sm:$0xff] %vm634, %v1128
        %1131 = vst.msk [vmem:[#allocation2 + $0x58] sm:$0xff] %vm634, %v1129
        %v1132 = vld [vmem:[%s2] sm:$0xff]
        %v1133 = vld [vmem:[%s2 + $0x8] sm:$0xff]
        %v1134 = vld [vmem:[%s3] sm:$0xff]
        %v1135 = vld [vmem:[%s3 + $0x8] sm:$0xff]
        %1137 = vset.pattern.permute.xlu0 0
        %1138 = vperm.xlu0 %1137, %v1134
        %v1139 = vpop.permute.xlu0 %1138
        %1142 = vset.pattern.permute.xlu0 0
        %1143 = vperm.xlu0 %1142, %v1135
        %v1144 = vpop.permute.xlu0 %1143
        %v1147 = vsel %vm550, %v1132, 0
        %v1150 = vsel %vm550, %v1133, 0
        %1152 = vmatprep.subr.mxu0 0.0
        %1153 = vmatpush1.msra.mxu0 0.0
        %1154 = vmatprep.subr.mxu0 0.0
        %1155 = vmatpush1.msra.mxu0 0.0
        %1156 = vmatprep.subr.mxu0 0.0
        %1157 = vmatpush1.msra.mxu0 0.0
        %1158 = vmatprep.subr.mxu0 0.0
        %1159 = vmatpush1.msra.mxu0 0.0
        %1160 = vmatprep.subr.mxu0 0.0
        %1161 = vmatpush1.msra.mxu0 0.0
        %1162 = vmatprep.subr.mxu0 0.0
        %1163 = vmatpush1.msra.mxu0 0.0
        %1164 = vmatprep.subr.mxu0 0.0
        %1165 = vmatpush1.msra.mxu0 0.0
        %1166 = vmatprep.subr.mxu0 0.0
        %1167 = vmatpush1.msra.mxu0 0.0
        %1168 = vmatprep.subr.mxu0 0.0
        %1169 = vmatpush1.msra.mxu0 0.0
        %1170 = vmatprep.subr.mxu0 0.0
        %1171 = vmatpush1.msra.mxu0 0.0
        %1172 = vmatprep.subr.mxu0 0.0
        %1173 = vmatpush1.msra.mxu0 0.0
        %1174 = vmatprep.subr.mxu0 0.0
        %1175 = vmatpush1.msra.mxu0 0.0
        %1176 = vmatprep.subr.mxu0 0.0
        %1177 = vmatpush1.msra.mxu0 0.0
        %1178 = vmatprep.subr.mxu0 0.0
        %1179 = vmatpush1.msra.mxu0 0.0
        %1180 = vmatprep.subr.mxu0 0.0
        %1181 = vmatpush1.msra.mxu0 0.0
        %1182 = vmatprep.subr.mxu0 0.0
        %1183 = vmatpush1.msra.mxu0 %v530
        %1184 = vmatprep.subr.mxu0 0.0
        %1185 = vmatpush2.msra.mxu0 0.0
        %1186 = vmatprep.subr.mxu0 0.0
        %1187 = vmatpush2.msra.mxu0 0.0
        %1188 = vmatprep.subr.mxu0 0.0
        %1189 = vmatpush2.msra.mxu0 0.0
        %1190 = vmatprep.subr.mxu0 0.0
        %1191 = vmatpush2.msra.mxu0 0.0
        %1192 = vmatprep.subr.mxu0 0.0
        %1193 = vmatpush2.msra.mxu0 0.0
        %1194 = vmatprep.subr.mxu0 0.0
        %1195 = vmatpush2.msra.mxu0 0.0
        %1196 = vmatprep.subr.mxu0 0.0
        %1197 = vmatpush2.msra.mxu0 0.0
        %1198 = vmatprep.subr.mxu0 0.0
        %1199 = vmatpush2.msra.mxu0 0.0
        %1200 = vmatprep.subr.mxu0 0.0
        %1201 = vmatpush2.msra.mxu0 0.0
        %1202 = vmatprep.subr.mxu0 0.0
        %1203 = vmatpush2.msra.mxu0 0.0
        %1204 = vmatprep.subr.mxu0 0.0
        %1205 = vmatpush2.msra.mxu0 0.0
        %1206 = vmatprep.subr.mxu0 0.0
        %1207 = vmatpush2.msra.mxu0 0.0
        %1208 = vmatprep.subr.mxu0 0.0
        %1209 = vmatpush2.msra.mxu0 0.0
        %1210 = vmatprep.subr.mxu0 0.0
        %1211 = vmatpush2.msra.mxu0 0.0
        %1212 = vmatprep.subr.mxu0 0.0
        %1213 = vmatpush2.msra.mxu0 0.0
        %1214 = vmatprep.subr.mxu0 0.0
        %1215 = vmatpush2.msra.mxu0 0.0
        %1216 = vmatprep.mubr.f32.mxu0 0.0
        %1217 = vmatmul.mubr.f32.gmra.mxu0 %v1147
        %v1218 = vpop.f32.mrf.mxu0
        %v1219 = vadd.f32 %v1139, %v1218
        %v1220 = vpop.f32.mrf.mxu0
        %1221 = vmatprep.mubr.f32.mxu0 0.0
        %1222 = vmatmul.mubr.f32.gmra.mxu0 %v1150
        %v1223 = vpop.f32.mrf.mxu0
        %v1224 = vadd.f32 %v1144, %v1223
        %v1225 = vpop.f32.mrf.mxu0
        %1226 = vdwg.mxu0
        %v1227 = vmax.f32 %v1219, 0.0
        %v1228 = vmax.f32 %v1224, 0.0
        %1229 = vst.msk [vmem:[#allocation2 + $0x60] sm:$0xff] %vm634, %v1227
        %1230 = vst.msk [vmem:[#allocation2 + $0x68] sm:$0xff] %vm634, %v1228
        %v1231 = vld [vmem:[%s2] sm:$0xff]
        %v1232 = vld [vmem:[%s2 + $0x8] sm:$0xff]
        %v1233 = vld [vmem:[%s3] sm:$0xff]
        %v1234 = vld [vmem:[%s3 + $0x8] sm:$0xff]
        %1236 = vset.pattern.permute.xlu0 0
        %1237 = vperm.xlu0 %1236, %v1233
        %v1238 = vpop.permute.xlu0 %1237
        %1241 = vset.pattern.permute.xlu0 0
        %1242 = vperm.xlu0 %1241, %v1234
        %v1243 = vpop.permute.xlu0 %1242
        %v1246 = vsel %vm550, %v1231, 0
        %v1249 = vsel %vm550, %v1232, 0
        %1251 = vmatprep.subr.mxu0 0.0
        %1252 = vmatpush1.msra.mxu0 0.0
        %1253 = vmatprep.subr.mxu0 0.0
        %1254 = vmatpush1.msra.mxu0 0.0
        %1255 = vmatprep.subr.mxu0 0.0
        %1256 = vmatpush1.msra.mxu0 0.0
        %1257 = vmatprep.subr.mxu0 0.0
        %1258 = vmatpush1.msra.mxu0 0.0
        %1259 = vmatprep.subr.mxu0 0.0
        %1260 = vmatpush1.msra.mxu0 0.0
        %1261 = vmatprep.subr.mxu0 0.0
        %1262 = vmatpush1.msra.mxu0 0.0
        %1263 = vmatprep.subr.mxu0 0.0
        %1264 = vmatpush1.msra.mxu0 0.0
        %1265 = vmatprep.subr.mxu0 0.0
        %1266 = vmatpush1.msra.mxu0 0.0
        %1267 = vmatprep.subr.mxu0 0.0
        %1268 = vmatpush1.msra.mxu0 0.0
        %1269 = vmatprep.subr.mxu0 0.0
        %1270 = vmatpush1.msra.mxu0 0.0
        %1271 = vmatprep.subr.mxu0 0.0
        %1272 = vmatpush1.msra.mxu0 0.0
        %1273 = vmatprep.subr.mxu0 0.0
        %1274 = vmatpush1.msra.mxu0 0.0
        %1275 = vmatprep.subr.mxu0 0.0
        %1276 = vmatpush1.msra.mxu0 0.0
        %1277 = vmatprep.subr.mxu0 0.0
        %1278 = vmatpush1.msra.mxu0 0.0
        %1279 = vmatprep.subr.mxu0 0.0
        %1280 = vmatpush1.msra.mxu0 0.0
        %1281 = vmatprep.subr.mxu0 0.0
        %1282 = vmatpush1.msra.mxu0 %v533
        %1283 = vmatprep.subr.mxu0 0.0
        %1284 = vmatpush2.msra.mxu0 0.0
        %1285 = vmatprep.subr.mxu0 0.0
        %1286 = vmatpush2.msra.mxu0 0.0
        %1287 = vmatprep.subr.mxu0 0.0
        %1288 = vmatpush2.msra.mxu0 0.0
        %1289 = vmatprep.subr.mxu0 0.0
        %1290 = vmatpush2.msra.mxu0 0.0
        %1291 = vmatprep.subr.mxu0 0.0
        %1292 = vmatpush2.msra.mxu0 0.0
        %1293 = vmatprep.subr.mxu0 0.0
        %1294 = vmatpush2.msra.mxu0 0.0
        %1295 = vmatprep.subr.mxu0 0.0
        %1296 = vmatpush2.msra.mxu0 0.0
        %1297 = vmatprep.subr.mxu0 0.0
        %1298 = vmatpush2.msra.mxu0 0.0
        %1299 = vmatprep.subr.mxu0 0.0
        %1300 = vmatpush2.msra.mxu0 0.0
        %1301 = vmatprep.subr.mxu0 0.0
        %1302 = vmatpush2.msra.mxu0 0.0
        %1303 = vmatprep.subr.mxu0 0.0
        %1304 = vmatpush2.msra.mxu0 0.0
        %1305 = vmatprep.subr.mxu0 0.0
        %1306 = vmatpush2.msra.mxu0 0.0
        %1307 = vmatprep.subr.mxu0 0.0
        %1308 = vmatpush2.msra.mxu0 0.0
        %1309 = vmatprep.subr.mxu0 0.0
        %1310 = vmatpush2.msra.mxu0 0.0
        %1311 = vmatprep.subr.mxu0 0.0
        %1312 = vmatpush2.msra.mxu0 0.0
        %1313 = vmatprep.subr.mxu0 0.0
        %1314 = vmatpush2.msra.mxu0 0.0
        %1315 = vmatprep.mubr.f32.mxu0 0.0
        %1316 = vmatmul.mubr.f32.gmra.mxu0 %v1246
        %v1317 = vpop.f32.mrf.mxu0
        %v1318 = vadd.f32 %v1238, %v1317
        %v1319 = vpop.f32.mrf.mxu0
        %1320 = vmatprep.mubr.f32.mxu0 0.0
        %1321 = vmatmul.mubr.f32.gmra.mxu0 %v1249
        %v1322 = vpop.f32.mrf.mxu0
        %v1323 = vadd.f32 %v1243, %v1322
        %v1324 = vpop.f32.mrf.mxu0
        %1325 = vdwg.mxu0
        %v1326 = vmax.f32 %v1318, 0.0
        %v1327 = vmax.f32 %v1323, 0.0
        %1328 = vst.msk [vmem:[#allocation2 + $0x70] sm:$0xff] %vm634, %v1326
        %1329 = vst.msk [vmem:[#allocation2 + $0x78] sm:$0xff] %vm634, %v1327
        %v1330 = vld [vmem:[#allocation2] ss:$16 sm:$0x3]
        %v1331 = vld [vmem:[#allocation2] ss:$16 sm:$0xc]
        %v1332 = vor.u32 %v1330, %v1331
        %v1333 = vld [vmem:[#allocation2] ss:$16 sm:$0x30]
        %v1334 = vor.u32 %v1332, %v1333
        %v1335 = vld [vmem:[#allocation2] ss:$16 sm:$0xc0]
        %v1336 = vor.u32 %v1334, %v1335
        %v1337 = vpack.c.bf16 %v1336, %v1336
        %v1338 = vld [vmem:[%s4] sm:$0xff]
        %v1339 = vld [vmem:[%s4 + $0x8] sm:$0xff]
        %v1340 = vld [vmem:[%s4 + $0x10] sm:$0xff]
        %v1341 = vld [vmem:[%s4 + $0x18] sm:$0xff]
        %v1342 = vld [vmem:[%s4 + $0x20] sm:$0xff]
        %v1343 = vld [vmem:[%s4 + $0x28] sm:$0xff]
        %v1344 = vld [vmem:[%s4 + $0x30] sm:$0xff]
        %v1345 = vld [vmem:[%s4 + $0x38] sm:$0xff]
        %s1346 = scalar_lea.vmem [#allocation2], 1
        %v1347 = vld [vmem:[%s1346] ss:$16 sm:$0x3]
        %v1348 = vld [vmem:[%s1346] ss:$16 sm:$0xc]
        %v1349 = vor.u32 %v1347, %v1348
        %v1350 = vld [vmem:[%s1346] ss:$16 sm:$0x30]
        %v1351 = vor.u32 %v1349, %v1350
        %v1352 = vld [vmem:[%s1346] ss:$16 sm:$0xc0]
        %v1353 = vor.u32 %v1351, %v1352
        %v1354 = vpack.c.bf16 %v1353, %v1353
        %s1355 = scalar_lea.vmem %s4, 64
        %v1356 = vld [vmem:[%s1355] sm:$0xff]
        %v1357 = vld [vmem:[%s1355 + $0x8] sm:$0xff]
        %v1358 = vld [vmem:[%s1355 + $0x10] sm:$0xff]
        %v1359 = vld [vmem:[%s1355 + $0x18] sm:$0xff]
        %v1360 = vld [vmem:[%s1355 + $0x20] sm:$0xff]
        %v1361 = vld [vmem:[%s1355 + $0x28] sm:$0xff]
        %v1362 = vld [vmem:[%s1355 + $0x30] sm:$0xff]
        %v1363 = vld [vmem:[%s1355 + $0x38] sm:$0xff]
        %v1372 = vunpack.c.l.b16 %v1356
        %v1373 = vunpack.c.h.b16 %v1356
        %v1374 = vunpack.c.l.b16 %v1357
        %v1375 = vunpack.c.h.b16 %v1357
        %v1376 = vunpack.c.l.b16 %v1358
        %v1377 = vunpack.c.h.b16 %v1358
        %v1378 = vunpack.c.l.b16 %v1359
        %v1379 = vunpack.c.h.b16 %v1359
        %v1380 = vunpack.c.l.b16 %v1360
        %v1381 = vunpack.c.h.b16 %v1360
        %v1382 = vunpack.c.l.b16 %v1361
        %v1383 = vunpack.c.h.b16 %v1361
        %v1384 = vunpack.c.l.b16 %v1362
        %v1385 = vunpack.c.h.b16 %v1362
        %v1386 = vunpack.c.l.b16 %v1363
        %v1387 = vunpack.c.h.b16 %v1363
        %v1388 = vpack.c.b16 %v1380, %v1372
        %v1389 = vpack.c.b16 %v1381, %v1373
        %v1390 = vpack.c.b16 %v1382, %v1374
        %v1391 = vpack.c.b16 %v1383, %v1375
        %v1392 = vpack.c.b16 %v1384, %v1376
        %v1393 = vpack.c.b16 %v1385, %v1377
        %v1394 = vpack.c.b16 %v1386, %v1378
        %v1395 = vpack.c.b16 %v1387, %v1379
        %v1405 = vsel %vm634, %v1354, 0
        %1407 = vmatprep.subr.bf16.mxu0 0
        %1408 = vmatpush1.bf16.msra.mxu0 0
        %1409 = vmatprep.subr.bf16.mxu0 0
        %1410 = vmatpush1.bf16.msra.mxu0 0
        %1411 = vmatprep.subr.bf16.mxu0 0
        %1412 = vmatpush1.bf16.msra.mxu0 0
        %1413 = vmatprep.subr.bf16.mxu0 0
        %1414 = vmatpush1.bf16.msra.mxu0 0
        %1415 = vmatprep.subr.bf16.mxu0 0
        %1416 = vmatpush1.bf16.msra.mxu0 0
        %1417 = vmatprep.subr.bf16.mxu0 0
        %1418 = vmatpush1.bf16.msra.mxu0 0
        %1419 = vmatprep.subr.bf16.mxu0 0
        %1420 = vmatpush1.bf16.msra.mxu0 0
        %1421 = vmatprep.subr.bf16.mxu0 %v1389
        %1422 = vmatpush1.bf16.msra.mxu0 %v1388
        %1423 = vmatprep.subr.bf16.mxu0 0
        %1424 = vmatpush2.bf16.msra.mxu0 0
        %1425 = vmatprep.subr.bf16.mxu0 0
        %1426 = vmatpush2.bf16.msra.mxu0 0
        %1427 = vmatprep.subr.bf16.mxu0 0
        %1428 = vmatpush2.bf16.msra.mxu0 0
        %1429 = vmatprep.subr.bf16.mxu0 0
        %1430 = vmatpush2.bf16.msra.mxu0 0
        %1431 = vmatprep.subr.bf16.mxu0 0
        %1432 = vmatpush2.bf16.msra.mxu0 0
        %1433 = vmatprep.subr.bf16.mxu0 0
        %1434 = vmatpush2.bf16.msra.mxu0 0
        %1435 = vmatprep.subr.bf16.mxu0 0
        %1436 = vmatpush2.bf16.msra.mxu0 0
        %1437 = vmatprep.subr.bf16.mxu0 0
        %1438 = vmatpush2.bf16.msra.mxu0 0
        %1439 = vmatprep.mubr.bf16.mxu0 0
        %1440 = vmatmul.mubr.bf16.gmra.mxu0 %v1405
        %v1441 = vpop.f32.mrf.mxu0
        %v1442 = vadd.f32 0.0, %v1441
        %v1443 = vpop.f32.mrf.mxu0
        %v1444 = vadd.f32 0.0, %v1443
        %v1445 = vpop.f32.mrf.mxu0
        %v1446 = vpop.f32.mrf.mxu0
        %1447 = vdwg.mxu0
        %1448 = vmatprep.subr.bf16.mxu0 0
        %1449 = vmatpush1.bf16.msra.mxu0 0
        %1450 = vmatprep.subr.bf16.mxu0 0
        %1451 = vmatpush1.bf16.msra.mxu0 0
        %1452 = vmatprep.subr.bf16.mxu0 0
        %1453 = vmatpush1.bf16.msra.mxu0 0
        %1454 = vmatprep.subr.bf16.mxu0 0
        %1455 = vmatpush1.bf16.msra.mxu0 0
        %1456 = vmatprep.subr.bf16.mxu0 0
        %1457 = vmatpush1.bf16.msra.mxu0 0
        %1458 = vmatprep.subr.bf16.mxu0 0
        %1459 = vmatpush1.bf16.msra.mxu0 0
        %1460 = vmatprep.subr.bf16.mxu0 0
        %1461 = vmatpush1.bf16.msra.mxu0 0
        %1462 = vmatprep.subr.bf16.mxu0 %v1391
        %1463 = vmatpush1.bf16.msra.mxu0 %v1390
        %1464 = vmatprep.subr.bf16.mxu0 0
        %1465 = vmatpush2.bf16.msra.mxu0 0
        %1466 = vmatprep.subr.bf16.mxu0 0
        %1467 = vmatpush2.bf16.msra.mxu0 0
        %1468 = vmatprep.subr.bf16.mxu0 0
        %1469 = vmatpush2.bf16.msra.mxu0 0
        %1470 = vmatprep.subr.bf16.mxu0 0
        %1471 = vmatpush2.bf16.msra.mxu0 0
        %1472 = vmatprep.subr.bf16.mxu0 0
        %1473 = vmatpush2.bf16.msra.mxu0 0
        %1474 = vmatprep.subr.bf16.mxu0 0
        %1475 = vmatpush2.bf16.msra.mxu0 0
        %1476 = vmatprep.subr.bf16.mxu0 0
        %1477 = vmatpush2.bf16.msra.mxu0 0
        %1478 = vmatprep.subr.bf16.mxu0 0
        %1479 = vmatpush2.bf16.msra.mxu0 0
        %1480 = vmatprep.mubr.bf16.mxu0 0
        %1481 = vmatmul.mubr.bf16.gmra.mxu0 %v1405
        %v1482 = vpop.f32.mrf.mxu0
        %v1483 = vadd.f32 0.0, %v1482
        %v1484 = vpop.f32.mrf.mxu0
        %v1485 = vadd.f32 0.0, %v1484
        %v1486 = vpop.f32.mrf.mxu0
        %v1487 = vpop.f32.mrf.mxu0
        %1488 = vdwg.mxu0
        %1489 = vmatprep.subr.bf16.mxu0 0
        %1490 = vmatpush1.bf16.msra.mxu0 0
        %1491 = vmatprep.subr.bf16.mxu0 0
        %1492 = vmatpush1.bf16.msra.mxu0 0
        %1493 = vmatprep.subr.bf16.mxu0 0
        %1494 = vmatpush1.bf16.msra.mxu0 0
        %1495 = vmatprep.subr.bf16.mxu0 0
        %1496 = vmatpush1.bf16.msra.mxu0 0
        %1497 = vmatprep.subr.bf16.mxu0 0
        %1498 = vmatpush1.bf16.msra.mxu0 0
        %1499 = vmatprep.subr.bf16.mxu0 0
        %1500 = vmatpush1.bf16.msra.mxu0 0
        %1501 = vmatprep.subr.bf16.mxu0 0
        %1502 = vmatpush1.bf16.msra.mxu0 0
        %1503 = vmatprep.subr.bf16.mxu0 %v1393
        %1504 = vmatpush1.bf16.msra.mxu0 %v1392
        %1505 = vmatprep.subr.bf16.mxu0 0
        %1506 = vmatpush2.bf16.msra.mxu0 0
        %1507 = vmatprep.subr.bf16.mxu0 0
        %1508 = vmatpush2.bf16.msra.mxu0 0
        %1509 = vmatprep.subr.bf16.mxu0 0
        %1510 = vmatpush2.bf16.msra.mxu0 0
        %1511 = vmatprep.subr.bf16.mxu0 0
        %1512 = vmatpush2.bf16.msra.mxu0 0
        %1513 = vmatprep.subr.bf16.mxu0 0
        %1514 = vmatpush2.bf16.msra.mxu0 0
        %1515 = vmatprep.subr.bf16.mxu0 0
        %1516 = vmatpush2.bf16.msra.mxu0 0
        %1517 = vmatprep.subr.bf16.mxu0 0
        %1518 = vmatpush2.bf16.msra.mxu0 0
        %1519 = vmatprep.subr.bf16.mxu0 0
        %1520 = vmatpush2.bf16.msra.mxu0 0
        %1521 = vmatprep.mubr.bf16.mxu0 0
        %1522 = vmatmul.mubr.bf16.gmra.mxu0 %v1405
        %v1523 = vpop.f32.mrf.mxu0
        %v1524 = vadd.f32 0.0, %v1523
        %v1525 = vpop.f32.mrf.mxu0
        %v1526 = vadd.f32 0.0, %v1525
        %v1527 = vpop.f32.mrf.mxu0
        %v1528 = vpop.f32.mrf.mxu0
        %1529 = vdwg.mxu0
        %1530 = vmatprep.subr.bf16.mxu0 0
        %1531 = vmatpush1.bf16.msra.mxu0 0
        %1532 = vmatprep.subr.bf16.mxu0 0
        %1533 = vmatpush1.bf16.msra.mxu0 0
        %1534 = vmatprep.subr.bf16.mxu0 0
        %1535 = vmatpush1.bf16.msra.mxu0 0
        %1536 = vmatprep.subr.bf16.mxu0 0
        %1537 = vmatpush1.bf16.msra.mxu0 0
        %1538 = vmatprep.subr.bf16.mxu0 0
        %1539 = vmatpush1.bf16.msra.mxu0 0
        %1540 = vmatprep.subr.bf16.mxu0 0
        %1541 = vmatpush1.bf16.msra.mxu0 0
        %1542 = vmatprep.subr.bf16.mxu0 0
        %1543 = vmatpush1.bf16.msra.mxu0 0
        %1544 = vmatprep.subr.bf16.mxu0 %v1395
        %1545 = vmatpush1.bf16.msra.mxu0 %v1394
        %1546 = vmatprep.subr.bf16.mxu0 0
        %1547 = vmatpush2.bf16.msra.mxu0 0
        %1548 = vmatprep.subr.bf16.mxu0 0
        %1549 = vmatpush2.bf16.msra.mxu0 0
        %1550 = vmatprep.subr.bf16.mxu0 0
        %1551 = vmatpush2.bf16.msra.mxu0 0
        %1552 = vmatprep.subr.bf16.mxu0 0
        %1553 = vmatpush2.bf16.msra.mxu0 0
        %1554 = vmatprep.subr.bf16.mxu0 0
        %1555 = vmatpush2.bf16.msra.mxu0 0
        %1556 = vmatprep.subr.bf16.mxu0 0
        %1557 = vmatpush2.bf16.msra.mxu0 0
        %1558 = vmatprep.subr.bf16.mxu0 0
        %1559 = vmatpush2.bf16.msra.mxu0 0
        %1560 = vmatprep.subr.bf16.mxu0 0
        %1561 = vmatpush2.bf16.msra.mxu0 0
        %1562 = vmatprep.mubr.bf16.mxu0 0
        %1563 = vmatmul.mubr.bf16.gmra.mxu0 %v1405
        %v1564 = vpop.f32.mrf.mxu0
        %v1565 = vadd.f32 0.0, %v1564
        %v1566 = vpop.f32.mrf.mxu0
        %v1567 = vadd.f32 0.0, %v1566
        %v1568 = vpop.f32.mrf.mxu0
        %v1569 = vpop.f32.mrf.mxu0
        %1570 = vdwg.mxu0
        %v1579 = vunpack.c.l.b16 %v1338
        %v1580 = vunpack.c.h.b16 %v1338
        %v1581 = vunpack.c.l.b16 %v1339
        %v1582 = vunpack.c.h.b16 %v1339
        %v1583 = vunpack.c.l.b16 %v1340
        %v1584 = vunpack.c.h.b16 %v1340
        %v1585 = vunpack.c.l.b16 %v1341
        %v1586 = vunpack.c.h.b16 %v1341
        %v1587 = vunpack.c.l.b16 %v1342
        %v1588 = vunpack.c.h.b16 %v1342
        %v1589 = vunpack.c.l.b16 %v1343
        %v1590 = vunpack.c.h.b16 %v1343
        %v1591 = vunpack.c.l.b16 %v1344
        %v1592 = vunpack.c.h.b16 %v1344
        %v1593 = vunpack.c.l.b16 %v1345
        %v1594 = vunpack.c.h.b16 %v1345
        %v1595 = vpack.c.b16 %v1587, %v1579
        %v1596 = vpack.c.b16 %v1588, %v1580
        %v1597 = vpack.c.b16 %v1589, %v1581
        %v1598 = vpack.c.b16 %v1590, %v1582
        %v1599 = vpack.c.b16 %v1591, %v1583
        %v1600 = vpack.c.b16 %v1592, %v1584
        %v1601 = vpack.c.b16 %v1593, %v1585
        %v1602 = vpack.c.b16 %v1594, %v1586
        %v1612 = vsel %vm634, %v1337, 0
        %1614 = vmatprep.subr.bf16.mxu0 0
        %1615 = vmatpush1.bf16.msra.mxu0 0
        %1616 = vmatprep.subr.bf16.mxu0 0
        %1617 = vmatpush1.bf16.msra.mxu0 0
        %1618 = vmatprep.subr.bf16.mxu0 0
        %1619 = vmatpush1.bf16.msra.mxu0 0
        %1620 = vmatprep.subr.bf16.mxu0 0
        %1621 = vmatpush1.bf16.msra.mxu0 0
        %1622 = vmatprep.subr.bf16.mxu0 0
        %1623 = vmatpush1.bf16.msra.mxu0 0
        %1624 = vmatprep.subr.bf16.mxu0 0
        %1625 = vmatpush1.bf16.msra.mxu0 0
        %1626 = vmatprep.subr.bf16.mxu0 0
        %1627 = vmatpush1.bf16.msra.mxu0 0
        %1628 = vmatprep.subr.bf16.mxu0 %v1596
        %1629 = vmatpush1.bf16.msra.mxu0 %v1595
        %1630 = vmatprep.subr.bf16.mxu0 0
        %1631 = vmatpush2.bf16.msra.mxu0 0
        %1632 = vmatprep.subr.bf16.mxu0 0
        %1633 = vmatpush2.bf16.msra.mxu0 0
        %1634 = vmatprep.subr.bf16.mxu0 0
        %1635 = vmatpush2.bf16.msra.mxu0 0
        %1636 = vmatprep.subr.bf16.mxu0 0
        %1637 = vmatpush2.bf16.msra.mxu0 0
        %1638 = vmatprep.subr.bf16.mxu0 0
        %1639 = vmatpush2.bf16.msra.mxu0 0
        %1640 = vmatprep.subr.bf16.mxu0 0
        %1641 = vmatpush2.bf16.msra.mxu0 0
        %1642 = vmatprep.subr.bf16.mxu0 0
        %1643 = vmatpush2.bf16.msra.mxu0 0
        %1644 = vmatprep.subr.bf16.mxu0 0
        %1645 = vmatpush2.bf16.msra.mxu0 0
        %1646 = vmatprep.mubr.bf16.mxu0 0
        %1647 = vmatmul.mubr.bf16.gmra.mxu0 %v1612
        %v1648 = vpop.f32.mrf.mxu0
        %v1649 = vadd.f32 %v1442, %v1648
        %v1650 = vpop.f32.mrf.mxu0
        %v1651 = vadd.f32 %v1444, %v1650
        %v1652 = vpop.f32.mrf.mxu0
        %v1653 = vpop.f32.mrf.mxu0
        %1654 = vdwg.mxu0
        %1655 = vmatprep.subr.bf16.mxu0 0
        %1656 = vmatpush1.bf16.msra.mxu0 0
        %1657 = vmatprep.subr.bf16.mxu0 0
        %1658 = vmatpush1.bf16.msra.mxu0 0
        %1659 = vmatprep.subr.bf16.mxu0 0
        %1660 = vmatpush1.bf16.msra.mxu0 0
        %1661 = vmatprep.subr.bf16.mxu0 0
        %1662 = vmatpush1.bf16.msra.mxu0 0
        %1663 = vmatprep.subr.bf16.mxu0 0
        %1664 = vmatpush1.bf16.msra.mxu0 0
        %1665 = vmatprep.subr.bf16.mxu0 0
        %1666 = vmatpush1.bf16.msra.mxu0 0
        %1667 = vmatprep.subr.bf16.mxu0 0
        %1668 = vmatpush1.bf16.msra.mxu0 0
        %1669 = vmatprep.subr.bf16.mxu0 %v1598
        %1670 = vmatpush1.bf16.msra.mxu0 %v1597
        %1671 = vmatprep.subr.bf16.mxu0 0
        %1672 = vmatpush2.bf16.msra.mxu0 0
        %1673 = vmatprep.subr.bf16.mxu0 0
        %1674 = vmatpush2.bf16.msra.mxu0 0
        %1675 = vmatprep.subr.bf16.mxu0 0
        %1676 = vmatpush2.bf16.msra.mxu0 0
        %1677 = vmatprep.subr.bf16.mxu0 0
        %1678 = vmatpush2.bf16.msra.mxu0 0
        %1679 = vmatprep.subr.bf16.mxu0 0
        %1680 = vmatpush2.bf16.msra.mxu0 0
        %1681 = vmatprep.subr.bf16.mxu0 0
        %1682 = vmatpush2.bf16.msra.mxu0 0
        %1683 = vmatprep.subr.bf16.mxu0 0
        %1684 = vmatpush2.bf16.msra.mxu0 0
        %1685 = vmatprep.subr.bf16.mxu0 0
        %1686 = vmatpush2.bf16.msra.mxu0 0
        %1687 = vmatprep.mubr.bf16.mxu0 0
        %1688 = vmatmul.mubr.bf16.gmra.mxu0 %v1612
        %v1689 = vpop.f32.mrf.mxu0
        %v1690 = vadd.f32 %v1483, %v1689
        %v1691 = vpop.f32.mrf.mxu0
        %v1692 = vadd.f32 %v1485, %v1691
        %v1693 = vpop.f32.mrf.mxu0
        %v1694 = vpop.f32.mrf.mxu0
        %1695 = vdwg.mxu0
        %1696 = vmatprep.subr.bf16.mxu0 0
        %1697 = vmatpush1.bf16.msra.mxu0 0
        %1698 = vmatprep.subr.bf16.mxu0 0
        %1699 = vmatpush1.bf16.msra.mxu0 0
        %1700 = vmatprep.subr.bf16.mxu0 0
        %1701 = vmatpush1.bf16.msra.mxu0 0
        %1702 = vmatprep.subr.bf16.mxu0 0
        %1703 = vmatpush1.bf16.msra.mxu0 0
        %1704 = vmatprep.subr.bf16.mxu0 0
        %1705 = vmatpush1.bf16.msra.mxu0 0
        %1706 = vmatprep.subr.bf16.mxu0 0
        %1707 = vmatpush1.bf16.msra.mxu0 0
        %1708 = vmatprep.subr.bf16.mxu0 0
        %1709 = vmatpush1.bf16.msra.mxu0 0
        %1710 = vmatprep.subr.bf16.mxu0 %v1600
        %1711 = vmatpush1.bf16.msra.mxu0 %v1599
        %1712 = vmatprep.subr.bf16.mxu0 0
        %1713 = vmatpush2.bf16.msra.mxu0 0
        %1714 = vmatprep.subr.bf16.mxu0 0
        %1715 = vmatpush2.bf16.msra.mxu0 0
        %1716 = vmatprep.subr.bf16.mxu0 0
        %1717 = vmatpush2.bf16.msra.mxu0 0
        %1718 = vmatprep.subr.bf16.mxu0 0
        %1719 = vmatpush2.bf16.msra.mxu0 0
        %1720 = vmatprep.subr.bf16.mxu0 0
        %1721 = vmatpush2.bf16.msra.mxu0 0
        %1722 = vmatprep.subr.bf16.mxu0 0
        %1723 = vmatpush2.bf16.msra.mxu0 0
        %1724 = vmatprep.subr.bf16.mxu0 0
        %1725 = vmatpush2.bf16.msra.mxu0 0
        %1726 = vmatprep.subr.bf16.mxu0 0
        %1727 = vmatpush2.bf16.msra.mxu0 0
        %1728 = vmatprep.mubr.bf16.mxu0 0
        %1729 = vmatmul.mubr.bf16.gmra.mxu0 %v1612
        %v1730 = vpop.f32.mrf.mxu0
        %v1731 = vadd.f32 %v1524, %v1730
        %v1732 = vpop.f32.mrf.mxu0
        %v1733 = vadd.f32 %v1526, %v1732
        %v1734 = vpop.f32.mrf.mxu0
        %v1735 = vpop.f32.mrf.mxu0
        %1736 = vdwg.mxu0
        %1737 = vmatprep.subr.bf16.mxu0 0
        %1738 = vmatpush1.bf16.msra.mxu0 0
        %1739 = vmatprep.subr.bf16.mxu0 0
        %1740 = vmatpush1.bf16.msra.mxu0 0
        %1741 = vmatprep.subr.bf16.mxu0 0
        %1742 = vmatpush1.bf16.msra.mxu0 0
        %1743 = vmatprep.subr.bf16.mxu0 0
        %1744 = vmatpush1.bf16.msra.mxu0 0
        %1745 = vmatprep.subr.bf16.mxu0 0
        %1746 = vmatpush1.bf16.msra.mxu0 0
        %1747 = vmatprep.subr.bf16.mxu0 0
        %1748 = vmatpush1.bf16.msra.mxu0 0
        %1749 = vmatprep.subr.bf16.mxu0 0
        %1750 = vmatpush1.bf16.msra.mxu0 0
        %1751 = vmatprep.subr.bf16.mxu0 %v1602
        %1752 = vmatpush1.bf16.msra.mxu0 %v1601
        %1753 = vmatprep.subr.bf16.mxu0 0
        %1754 = vmatpush2.bf16.msra.mxu0 0
        %1755 = vmatprep.subr.bf16.mxu0 0
        %1756 = vmatpush2.bf16.msra.mxu0 0
        %1757 = vmatprep.subr.bf16.mxu0 0
        %1758 = vmatpush2.bf16.msra.mxu0 0
        %1759 = vmatprep.subr.bf16.mxu0 0
        %1760 = vmatpush2.bf16.msra.mxu0 0
        %1761 = vmatprep.subr.bf16.mxu0 0
        %1762 = vmatpush2.bf16.msra.mxu0 0
        %1763 = vmatprep.subr.bf16.mxu0 0
        %1764 = vmatpush2.bf16.msra.mxu0 0
        %1765 = vmatprep.subr.bf16.mxu0 0
        %1766 = vmatpush2.bf16.msra.mxu0 0
        %1767 = vmatprep.subr.bf16.mxu0 0
        %1768 = vmatpush2.bf16.msra.mxu0 0
        %1769 = vmatprep.mubr.bf16.mxu0 0
        %1770 = vmatmul.mubr.bf16.gmra.mxu0 %v1612
        %v1771 = vpop.f32.mrf.mxu0
        %v1772 = vadd.f32 %v1565, %v1771
        %v1773 = vpop.f32.mrf.mxu0
        %v1774 = vadd.f32 %v1567, %v1773
        %v1775 = vpop.f32.mrf.mxu0
        %v1776 = vpop.f32.mrf.mxu0
        %1777 = vdwg.mxu0
        %s1778 = scalar_lea.vmem [#allocation2], 2
        %v1779 = vld [vmem:[%s1778] ss:$16 sm:$0x3]
        %v1780 = vld [vmem:[%s1778] ss:$16 sm:$0xc]
        %v1781 = vor.u32 %v1779, %v1780
        %v1782 = vld [vmem:[%s1778] ss:$16 sm:$0x30]
        %v1783 = vor.u32 %v1781, %v1782
        %v1784 = vld [vmem:[%s1778] ss:$16 sm:$0xc0]
        %v1785 = vor.u32 %v1783, %v1784
        %v1786 = vpack.c.bf16 %v1785, %v1785
        %s1787 = scalar_lea.vmem %s4, 128
        %v1788 = vld [vmem:[%s1787] sm:$0xff]
        %v1789 = vld [vmem:[%s1787 + $0x8] sm:$0xff]
        %v1790 = vld [vmem:[%s1787 + $0x10] sm:$0xff]
        %v1791 = vld [vmem:[%s1787 + $0x18] sm:$0xff]
        %v1792 = vld [vmem:[%s1787 + $0x20] sm:$0xff]
        %v1793 = vld [vmem:[%s1787 + $0x28] sm:$0xff]
        %v1794 = vld [vmem:[%s1787 + $0x30] sm:$0xff]
        %v1795 = vld [vmem:[%s1787 + $0x38] sm:$0xff]
        %v1804 = vunpack.c.l.b16 %v1788
        %v1805 = vunpack.c.h.b16 %v1788
        %v1806 = vunpack.c.l.b16 %v1789
        %v1807 = vunpack.c.h.b16 %v1789
        %v1808 = vunpack.c.l.b16 %v1790
        %v1809 = vunpack.c.h.b16 %v1790
        %v1810 = vunpack.c.l.b16 %v1791
        %v1811 = vunpack.c.h.b16 %v1791
        %v1812 = vunpack.c.l.b16 %v1792
        %v1813 = vunpack.c.h.b16 %v1792
        %v1814 = vunpack.c.l.b16 %v1793
        %v1815 = vunpack.c.h.b16 %v1793
        %v1816 = vunpack.c.l.b16 %v1794
        %v1817 = vunpack.c.h.b16 %v1794
        %v1818 = vunpack.c.l.b16 %v1795
        %v1819 = vunpack.c.h.b16 %v1795
        %v1820 = vpack.c.b16 %v1812, %v1804
        %v1821 = vpack.c.b16 %v1813, %v1805
        %v1822 = vpack.c.b16 %v1814, %v1806
        %v1823 = vpack.c.b16 %v1815, %v1807
        %v1824 = vpack.c.b16 %v1816, %v1808
        %v1825 = vpack.c.b16 %v1817, %v1809
        %v1826 = vpack.c.b16 %v1818, %v1810
        %v1827 = vpack.c.b16 %v1819, %v1811
        %v1837 = vsel %vm634, %v1786, 0
        %1839 = vmatprep.subr.bf16.mxu0 0
        %1840 = vmatpush1.bf16.msra.mxu0 0
        %1841 = vmatprep.subr.bf16.mxu0 0
        %1842 = vmatpush1.bf16.msra.mxu0 0
        %1843 = vmatprep.subr.bf16.mxu0 0
        %1844 = vmatpush1.bf16.msra.mxu0 0
        %1845 = vmatprep.subr.bf16.mxu0 0
        %1846 = vmatpush1.bf16.msra.mxu0 0
        %1847 = vmatprep.subr.bf16.mxu0 0
        %1848 = vmatpush1.bf16.msra.mxu0 0
        %1849 = vmatprep.subr.bf16.mxu0 0
        %1850 = vmatpush1.bf16.msra.mxu0 0
        %1851 = vmatprep.subr.bf16.mxu0 0
        %1852 = vmatpush1.bf16.msra.mxu0 0
        %1853 = vmatprep.subr.bf16.mxu0 %v1821
        %1854 = vmatpush1.bf16.msra.mxu0 %v1820
        %1855 = vmatprep.subr.bf16.mxu0 0
        %1856 = vmatpush2.bf16.msra.mxu0 0
        %1857 = vmatprep.subr.bf16.mxu0 0
        %1858 = vmatpush2.bf16.msra.mxu0 0
        %1859 = vmatprep.subr.bf16.mxu0 0
        %1860 = vmatpush2.bf16.msra.mxu0 0
        %1861 = vmatprep.subr.bf16.mxu0 0
        %1862 = vmatpush2.bf16.msra.mxu0 0
        %1863 = vmatprep.subr.bf16.mxu0 0
        %1864 = vmatpush2.bf16.msra.mxu0 0
        %1865 = vmatprep.subr.bf16.mxu0 0
        %1866 = vmatpush2.bf16.msra.mxu0 0
        %1867 = vmatprep.subr.bf16.mxu0 0
        %1868 = vmatpush2.bf16.msra.mxu0 0
        %1869 = vmatprep.subr.bf16.mxu0 0
        %1870 = vmatpush2.bf16.msra.mxu0 0
        %1871 = vmatprep.mubr.bf16.mxu0 0
        %1872 = vmatmul.mubr.bf16.gmra.mxu0 %v1837
        %v1873 = vpop.f32.mrf.mxu0
        %v1874 = vadd.f32 0.0, %v1873
        %v1875 = vpop.f32.mrf.mxu0
        %v1876 = vadd.f32 0.0, %v1875
        %v1877 = vpop.f32.mrf.mxu0
        %v1878 = vpop.f32.mrf.mxu0
        %1879 = vdwg.mxu0
        %1880 = vmatprep.subr.bf16.mxu0 0
        %1881 = vmatpush1.bf16.msra.mxu0 0
        %1882 = vmatprep.subr.bf16.mxu0 0
        %1883 = vmatpush1.bf16.msra.mxu0 0
        %1884 = vmatprep.subr.bf16.mxu0 0
        %1885 = vmatpush1.bf16.msra.mxu0 0
        %1886 = vmatprep.subr.bf16.mxu0 0
        %1887 = vmatpush1.bf16.msra.mxu0 0
        %1888 = vmatprep.subr.bf16.mxu0 0
        %1889 = vmatpush1.bf16.msra.mxu0 0
        %1890 = vmatprep.subr.bf16.mxu0 0
        %1891 = vmatpush1.bf16.msra.mxu0 0
        %1892 = vmatprep.subr.bf16.mxu0 0
        %1893 = vmatpush1.bf16.msra.mxu0 0
        %1894 = vmatprep.subr.bf16.mxu0 %v1823
        %1895 = vmatpush1.bf16.msra.mxu0 %v1822
        %1896 = vmatprep.subr.bf16.mxu0 0
        %1897 = vmatpush2.bf16.msra.mxu0 0
        %1898 = vmatprep.subr.bf16.mxu0 0
        %1899 = vmatpush2.bf16.msra.mxu0 0
        %1900 = vmatprep.subr.bf16.mxu0 0
        %1901 = vmatpush2.bf16.msra.mxu0 0
        %1902 = vmatprep.subr.bf16.mxu0 0
        %1903 = vmatpush2.bf16.msra.mxu0 0
        %1904 = vmatprep.subr.bf16.mxu0 0
        %1905 = vmatpush2.bf16.msra.mxu0 0
        %1906 = vmatprep.subr.bf16.mxu0 0
        %1907 = vmatpush2.bf16.msra.mxu0 0
        %1908 = vmatprep.subr.bf16.mxu0 0
        %1909 = vmatpush2.bf16.msra.mxu0 0
        %1910 = vmatprep.subr.bf16.mxu0 0
        %1911 = vmatpush2.bf16.msra.mxu0 0
        %1912 = vmatprep.mubr.bf16.mxu0 0
        %1913 = vmatmul.mubr.bf16.gmra.mxu0 %v1837
        %v1914 = vpop.f32.mrf.mxu0
        %v1915 = vadd.f32 0.0, %v1914
        %v1916 = vpop.f32.mrf.mxu0
        %v1917 = vadd.f32 0.0, %v1916
        %v1918 = vpop.f32.mrf.mxu0
        %v1919 = vpop.f32.mrf.mxu0
        %1920 = vdwg.mxu0
        %1921 = vmatprep.subr.bf16.mxu0 0
        %1922 = vmatpush1.bf16.msra.mxu0 0
        %1923 = vmatprep.subr.bf16.mxu0 0
        %1924 = vmatpush1.bf16.msra.mxu0 0
        %1925 = vmatprep.subr.bf16.mxu0 0
        %1926 = vmatpush1.bf16.msra.mxu0 0
        %1927 = vmatprep.subr.bf16.mxu0 0
        %1928 = vmatpush1.bf16.msra.mxu0 0
        %1929 = vmatprep.subr.bf16.mxu0 0
        %1930 = vmatpush1.bf16.msra.mxu0 0
        %1931 = vmatprep.subr.bf16.mxu0 0
        %1932 = vmatpush1.bf16.msra.mxu0 0
        %1933 = vmatprep.subr.bf16.mxu0 0
        %1934 = vmatpush1.bf16.msra.mxu0 0
        %1935 = vmatprep.subr.bf16.mxu0 %v1825
        %1936 = vmatpush1.bf16.msra.mxu0 %v1824
        %1937 = vmatprep.subr.bf16.mxu0 0
        %1938 = vmatpush2.bf16.msra.mxu0 0
        %1939 = vmatprep.subr.bf16.mxu0 0
        %1940 = vmatpush2.bf16.msra.mxu0 0
        %1941 = vmatprep.subr.bf16.mxu0 0
        %1942 = vmatpush2.bf16.msra.mxu0 0
        %1943 = vmatprep.subr.bf16.mxu0 0
        %1944 = vmatpush2.bf16.msra.mxu0 0
        %1945 = vmatprep.subr.bf16.mxu0 0
        %1946 = vmatpush2.bf16.msra.mxu0 0
        %1947 = vmatprep.subr.bf16.mxu0 0
        %1948 = vmatpush2.bf16.msra.mxu0 0
        %1949 = vmatprep.subr.bf16.mxu0 0
        %1950 = vmatpush2.bf16.msra.mxu0 0
        %1951 = vmatprep.subr.bf16.mxu0 0
        %1952 = vmatpush2.bf16.msra.mxu0 0
        %1953 = vmatprep.mubr.bf16.mxu0 0
        %1954 = vmatmul.mubr.bf16.gmra.mxu0 %v1837
        %v1955 = vpop.f32.mrf.mxu0
        %v1956 = vadd.f32 0.0, %v1955
        %v1957 = vpop.f32.mrf.mxu0
        %v1958 = vadd.f32 0.0, %v1957
        %v1959 = vpop.f32.mrf.mxu0
        %v1960 = vpop.f32.mrf.mxu0
        %1961 = vdwg.mxu0
        %1962 = vmatprep.subr.bf16.mxu0 0
        %1963 = vmatpush1.bf16.msra.mxu0 0
        %1964 = vmatprep.subr.bf16.mxu0 0
        %1965 = vmatpush1.bf16.msra.mxu0 0
        %1966 = vmatprep.subr.bf16.mxu0 0
        %1967 = vmatpush1.bf16.msra.mxu0 0
        %1968 = vmatprep.subr.bf16.mxu0 0
        %1969 = vmatpush1.bf16.msra.mxu0 0
        %1970 = vmatprep.subr.bf16.mxu0 0
        %1971 = vmatpush1.bf16.msra.mxu0 0
        %1972 = vmatprep.subr.bf16.mxu0 0
        %1973 = vmatpush1.bf16.msra.mxu0 0
        %1974 = vmatprep.subr.bf16.mxu0 0
        %1975 = vmatpush1.bf16.msra.mxu0 0
        %1976 = vmatprep.subr.bf16.mxu0 %v1827
        %1977 = vmatpush1.bf16.msra.mxu0 %v1826
        %1978 = vmatprep.subr.bf16.mxu0 0
        %1979 = vmatpush2.bf16.msra.mxu0 0
        %1980 = vmatprep.subr.bf16.mxu0 0
        %1981 = vmatpush2.bf16.msra.mxu0 0
        %1982 = vmatprep.subr.bf16.mxu0 0
        %1983 = vmatpush2.bf16.msra.mxu0 0
        %1984 = vmatprep.subr.bf16.mxu0 0
        %1985 = vmatpush2.bf16.msra.mxu0 0
        %1986 = vmatprep.subr.bf16.mxu0 0
        %1987 = vmatpush2.bf16.msra.mxu0 0
        %1988 = vmatprep.subr.bf16.mxu0 0
        %1989 = vmatpush2.bf16.msra.mxu0 0
        %1990 = vmatprep.subr.bf16.mxu0 0
        %1991 = vmatpush2.bf16.msra.mxu0 0
        %1992 = vmatprep.subr.bf16.mxu0 0
        %1993 = vmatpush2.bf16.msra.mxu0 0
        %1994 = vmatprep.mubr.bf16.mxu0 0
        %1995 = vmatmul.mubr.bf16.gmra.mxu0 %v1837
        %v1996 = vpop.f32.mrf.mxu0
        %v1997 = vadd.f32 0.0, %v1996
        %v1998 = vpop.f32.mrf.mxu0
        %v1999 = vadd.f32 0.0, %v1998
        %v2000 = vpop.f32.mrf.mxu0
        %v2001 = vpop.f32.mrf.mxu0
        %2002 = vdwg.mxu0
        %v2003 = vadd.f32 %v1649, %v1874
        %v2004 = vadd.f32 %v1651, %v1876
        %v2005 = vadd.f32 %v1690, %v1915
        %v2006 = vadd.f32 %v1692, %v1917
        %v2007 = vadd.f32 %v1731, %v1956
        %v2008 = vadd.f32 %v1733, %v1958
        %v2009 = vadd.f32 %v1772, %v1997
        %v2010 = vadd.f32 %v1774, %v1999
        %s2011 = scalar_lea.vmem [#allocation2], 3
        %v2012 = vld [vmem:[%s2011] ss:$16 sm:$0x3]
        %v2013 = vld [vmem:[%s2011] ss:$16 sm:$0xc]
        %v2014 = vor.u32 %v2012, %v2013
        %v2015 = vld [vmem:[%s2011] ss:$16 sm:$0x30]
        %v2016 = vor.u32 %v2014, %v2015
        %v2017 = vld [vmem:[%s2011] ss:$16 sm:$0xc0]
        %v2018 = vor.u32 %v2016, %v2017
        %v2019 = vpack.c.bf16 %v2018, %v2018
        %s2020 = scalar_lea.vmem %s4, 192
        %v2021 = vld [vmem:[%s2020] sm:$0xff]
        %v2022 = vld [vmem:[%s2020 + $0x8] sm:$0xff]
        %v2023 = vld [vmem:[%s2020 + $0x10] sm:$0xff]
        %v2024 = vld [vmem:[%s2020 + $0x18] sm:$0xff]
        %v2025 = vld [vmem:[%s2020 + $0x20] sm:$0xff]
        %v2026 = vld [vmem:[%s2020 + $0x28] sm:$0xff]
        %v2027 = vld [vmem:[%s2020 + $0x30] sm:$0xff]
        %v2028 = vld [vmem:[%s2020 + $0x38] sm:$0xff]
        %v2037 = vunpack.c.l.b16 %v2021
        %v2038 = vunpack.c.h.b16 %v2021
        %v2039 = vunpack.c.l.b16 %v2022
        %v2040 = vunpack.c.h.b16 %v2022
        %v2041 = vunpack.c.l.b16 %v2023
        %v2042 = vunpack.c.h.b16 %v2023
        %v2043 = vunpack.c.l.b16 %v2024
        %v2044 = vunpack.c.h.b16 %v2024
        %v2045 = vunpack.c.l.b16 %v2025
        %v2046 = vunpack.c.h.b16 %v2025
        %v2047 = vunpack.c.l.b16 %v2026
        %v2048 = vunpack.c.h.b16 %v2026
        %v2049 = vunpack.c.l.b16 %v2027
        %v2050 = vunpack.c.h.b16 %v2027
        %v2051 = vunpack.c.l.b16 %v2028
        %v2052 = vunpack.c.h.b16 %v2028
        %v2053 = vpack.c.b16 %v2045, %v2037
        %v2054 = vpack.c.b16 %v2046, %v2038
        %v2055 = vpack.c.b16 %v2047, %v2039
        %v2056 = vpack.c.b16 %v2048, %v2040
        %v2057 = vpack.c.b16 %v2049, %v2041
        %v2058 = vpack.c.b16 %v2050, %v2042
        %v2059 = vpack.c.b16 %v2051, %v2043
        %v2060 = vpack.c.b16 %v2052, %v2044
        %v2070 = vsel %vm634, %v2019, 0
        %2072 = vmatprep.subr.bf16.mxu0 0
        %2073 = vmatpush1.bf16.msra.mxu0 0
        %2074 = vmatprep.subr.bf16.mxu0 0
        %2075 = vmatpush1.bf16.msra.mxu0 0
        %2076 = vmatprep.subr.bf16.mxu0 0
        %2077 = vmatpush1.bf16.msra.mxu0 0
        %2078 = vmatprep.subr.bf16.mxu0 0
        %2079 = vmatpush1.bf16.msra.mxu0 0
        %2080 = vmatprep.subr.bf16.mxu0 0
        %2081 = vmatpush1.bf16.msra.mxu0 0
        %2082 = vmatprep.subr.bf16.mxu0 0
        %2083 = vmatpush1.bf16.msra.mxu0 0
        %2084 = vmatprep.subr.bf16.mxu0 0
        %2085 = vmatpush1.bf16.msra.mxu0 0
        %2086 = vmatprep.subr.bf16.mxu0 %v2054
        %2087 = vmatpush1.bf16.msra.mxu0 %v2053
        %2088 = vmatprep.subr.bf16.mxu0 0
        %2089 = vmatpush2.bf16.msra.mxu0 0
        %2090 = vmatprep.subr.bf16.mxu0 0
        %2091 = vmatpush2.bf16.msra.mxu0 0
        %2092 = vmatprep.subr.bf16.mxu0 0
        %2093 = vmatpush2.bf16.msra.mxu0 0
        %2094 = vmatprep.subr.bf16.mxu0 0
        %2095 = vmatpush2.bf16.msra.mxu0 0
        %2096 = vmatprep.subr.bf16.mxu0 0
        %2097 = vmatpush2.bf16.msra.mxu0 0
        %2098 = vmatprep.subr.bf16.mxu0 0
        %2099 = vmatpush2.bf16.msra.mxu0 0
        %2100 = vmatprep.subr.bf16.mxu0 0
        %2101 = vmatpush2.bf16.msra.mxu0 0
        %2102 = vmatprep.subr.bf16.mxu0 0
        %2103 = vmatpush2.bf16.msra.mxu0 0
        %2104 = vmatprep.mubr.bf16.mxu0 0
        %2105 = vmatmul.mubr.bf16.gmra.mxu0 %v2070
        %v2106 = vpop.f32.mrf.mxu0
        %v2107 = vadd.f32 0.0, %v2106
        %v2108 = vpop.f32.mrf.mxu0
        %v2109 = vadd.f32 0.0, %v2108
        %v2110 = vpop.f32.mrf.mxu0
        %v2111 = vpop.f32.mrf.mxu0
        %2112 = vdwg.mxu0
        %2113 = vmatprep.subr.bf16.mxu0 0
        %2114 = vmatpush1.bf16.msra.mxu0 0
        %2115 = vmatprep.subr.bf16.mxu0 0
        %2116 = vmatpush1.bf16.msra.mxu0 0
        %2117 = vmatprep.subr.bf16.mxu0 0
        %2118 = vmatpush1.bf16.msra.mxu0 0
        %2119 = vmatprep.subr.bf16.mxu0 0
        %2120 = vmatpush1.bf16.msra.mxu0 0
        %2121 = vmatprep.subr.bf16.mxu0 0
        %2122 = vmatpush1.bf16.msra.mxu0 0
        %2123 = vmatprep.subr.bf16.mxu0 0
        %2124 = vmatpush1.bf16.msra.mxu0 0
        %2125 = vmatprep.subr.bf16.mxu0 0
        %2126 = vmatpush1.bf16.msra.mxu0 0
        %2127 = vmatprep.subr.bf16.mxu0 %v2056
        %2128 = vmatpush1.bf16.msra.mxu0 %v2055
        %2129 = vmatprep.subr.bf16.mxu0 0
        %2130 = vmatpush2.bf16.msra.mxu0 0
        %2131 = vmatprep.subr.bf16.mxu0 0
        %2132 = vmatpush2.bf16.msra.mxu0 0
        %2133 = vmatprep.subr.bf16.mxu0 0
        %2134 = vmatpush2.bf16.msra.mxu0 0
        %2135 = vmatprep.subr.bf16.mxu0 0
        %2136 = vmatpush2.bf16.msra.mxu0 0
        %2137 = vmatprep.subr.bf16.mxu0 0
        %2138 = vmatpush2.bf16.msra.mxu0 0
        %2139 = vmatprep.subr.bf16.mxu0 0
        %2140 = vmatpush2.bf16.msra.mxu0 0
        %2141 = vmatprep.subr.bf16.mxu0 0
        %2142 = vmatpush2.bf16.msra.mxu0 0
        %2143 = vmatprep.subr.bf16.mxu0 0
        %2144 = vmatpush2.bf16.msra.mxu0 0
        %2145 = vmatprep.mubr.bf16.mxu0 0
        %2146 = vmatmul.mubr.bf16.gmra.mxu0 %v2070
        %v2147 = vpop.f32.mrf.mxu0
        %v2148 = vadd.f32 0.0, %v2147
        %v2149 = vpop.f32.mrf.mxu0
        %v2150 = vadd.f32 0.0, %v2149
        %v2151 = vpop.f32.mrf.mxu0
        %v2152 = vpop.f32.mrf.mxu0
        %2153 = vdwg.mxu0
        %2154 = vmatprep.subr.bf16.mxu0 0
        %2155 = vmatpush1.bf16.msra.mxu0 0
        %2156 = vmatprep.subr.bf16.mxu0 0
        %2157 = vmatpush1.bf16.msra.mxu0 0
        %2158 = vmatprep.subr.bf16.mxu0 0
        %2159 = vmatpush1.bf16.msra.mxu0 0
        %2160 = vmatprep.subr.bf16.mxu0 0
        %2161 = vmatpush1.bf16.msra.mxu0 0
        %2162 = vmatprep.subr.bf16.mxu0 0
        %2163 = vmatpush1.bf16.msra.mxu0 0
        %2164 = vmatprep.subr.bf16.mxu0 0
        %2165 = vmatpush1.bf16.msra.mxu0 0
        %2166 = vmatprep.subr.bf16.mxu0 0
        %2167 = vmatpush1.bf16.msra.mxu0 0
        %2168 = vmatprep.subr.bf16.mxu0 %v2058
        %2169 = vmatpush1.bf16.msra.mxu0 %v2057
        %2170 = vmatprep.subr.bf16.mxu0 0
        %2171 = vmatpush2.bf16.msra.mxu0 0
        %2172 = vmatprep.subr.bf16.mxu0 0
        %2173 = vmatpush2.bf16.msra.mxu0 0
        %2174 = vmatprep.subr.bf16.mxu0 0
        %2175 = vmatpush2.bf16.msra.mxu0 0
        %2176 = vmatprep.subr.bf16.mxu0 0
        %2177 = vmatpush2.bf16.msra.mxu0 0
        %2178 = vmatprep.subr.bf16.mxu0 0
        %2179 = vmatpush2.bf16.msra.mxu0 0
        %2180 = vmatprep.subr.bf16.mxu0 0
        %2181 = vmatpush2.bf16.msra.mxu0 0
        %2182 = vmatprep.subr.bf16.mxu0 0
        %2183 = vmatpush2.bf16.msra.mxu0 0
        %2184 = vmatprep.subr.bf16.mxu0 0
        %2185 = vmatpush2.bf16.msra.mxu0 0
        %2186 = vmatprep.mubr.bf16.mxu0 0
        %2187 = vmatmul.mubr.bf16.gmra.mxu0 %v2070
        %v2188 = vpop.f32.mrf.mxu0
        %v2189 = vadd.f32 0.0, %v2188
        %v2190 = vpop.f32.mrf.mxu0
        %v2191 = vadd.f32 0.0, %v2190
        %v2192 = vpop.f32.mrf.mxu0
        %v2193 = vpop.f32.mrf.mxu0
        %2194 = vdwg.mxu0
        %2195 = vmatprep.subr.bf16.mxu0 0
        %2196 = vmatpush1.bf16.msra.mxu0 0
        %2197 = vmatprep.subr.bf16.mxu0 0
        %2198 = vmatpush1.bf16.msra.mxu0 0
        %2199 = vmatprep.subr.bf16.mxu0 0
        %2200 = vmatpush1.bf16.msra.mxu0 0
        %2201 = vmatprep.subr.bf16.mxu0 0
        %2202 = vmatpush1.bf16.msra.mxu0 0
        %2203 = vmatprep.subr.bf16.mxu0 0
        %2204 = vmatpush1.bf16.msra.mxu0 0
        %2205 = vmatprep.subr.bf16.mxu0 0
        %2206 = vmatpush1.bf16.msra.mxu0 0
        %2207 = vmatprep.subr.bf16.mxu0 0
        %2208 = vmatpush1.bf16.msra.mxu0 0
        %2209 = vmatprep.subr.bf16.mxu0 %v2060
        %2210 = vmatpush1.bf16.msra.mxu0 %v2059
        %2211 = vmatprep.subr.bf16.mxu0 0
        %2212 = vmatpush2.bf16.msra.mxu0 0
        %2213 = vmatprep.subr.bf16.mxu0 0
        %2214 = vmatpush2.bf16.msra.mxu0 0
        %2215 = vmatprep.subr.bf16.mxu0 0
        %2216 = vmatpush2.bf16.msra.mxu0 0
        %2217 = vmatprep.subr.bf16.mxu0 0
        %2218 = vmatpush2.bf16.msra.mxu0 0
        %2219 = vmatprep.subr.bf16.mxu0 0
        %2220 = vmatpush2.bf16.msra.mxu0 0
        %2221 = vmatprep.subr.bf16.mxu0 0
        %2222 = vmatpush2.bf16.msra.mxu0 0
        %2223 = vmatprep.subr.bf16.mxu0 0
        %2224 = vmatpush2.bf16.msra.mxu0 0
        %2225 = vmatprep.subr.bf16.mxu0 0
        %2226 = vmatpush2.bf16.msra.mxu0 0
        %2227 = vmatprep.mubr.bf16.mxu0 0
        %2228 = vmatmul.mubr.bf16.gmra.mxu0 %v2070
        %v2229 = vpop.f32.mrf.mxu0
        %v2230 = vadd.f32 0.0, %v2229
        %v2231 = vpop.f32.mrf.mxu0
        %v2232 = vadd.f32 0.0, %v2231
        %v2233 = vpop.f32.mrf.mxu0
        %v2234 = vpop.f32.mrf.mxu0
        %2235 = vdwg.mxu0
        %v2236 = vadd.f32 %v2003, %v2107
        %v2237 = vadd.f32 %v2004, %v2109
        %v2238 = vadd.f32 %v2005, %v2148
        %v2239 = vadd.f32 %v2006, %v2150
        %v2240 = vadd.f32 %v2007, %v2189
        %v2241 = vadd.f32 %v2008, %v2191
        %v2242 = vadd.f32 %v2009, %v2230
        %v2243 = vadd.f32 %v2010, %v2232
        %s2244 = scalar_lea.vmem [#allocation2], 4
        %v2245 = vld [vmem:[%s2244] ss:$16 sm:$0x3]
        %v2246 = vld [vmem:[%s2244] ss:$16 sm:$0xc]
        %v2247 = vor.u32 %v2245, %v2246
        %v2248 = vld [vmem:[%s2244] ss:$16 sm:$0x30]
        %v2249 = vor.u32 %v2247, %v2248
        %v2250 = vld [vmem:[%s2244] ss:$16 sm:$0xc0]
        %v2251 = vor.u32 %v2249, %v2250
        %v2252 = vpack.c.bf16 %v2251, %v2251
        %s2253 = scalar_lea.vmem %s4, 256
        %v2254 = vld [vmem:[%s2253] sm:$0xff]
        %v2255 = vld [vmem:[%s2253 + $0x8] sm:$0xff]
        %v2256 = vld [vmem:[%s2253 + $0x10] sm:$0xff]
        %v2257 = vld [vmem:[%s2253 + $0x18] sm:$0xff]
        %v2258 = vld [vmem:[%s2253 + $0x20] sm:$0xff]
        %v2259 = vld [vmem:[%s2253 + $0x28] sm:$0xff]
        %v2260 = vld [vmem:[%s2253 + $0x30] sm:$0xff]
        %v2261 = vld [vmem:[%s2253 + $0x38] sm:$0xff]
        %v2270 = vunpack.c.l.b16 %v2254
        %v2271 = vunpack.c.h.b16 %v2254
        %v2272 = vunpack.c.l.b16 %v2255
        %v2273 = vunpack.c.h.b16 %v2255
        %v2274 = vunpack.c.l.b16 %v2256
        %v2275 = vunpack.c.h.b16 %v2256
        %v2276 = vunpack.c.l.b16 %v2257
        %v2277 = vunpack.c.h.b16 %v2257
        %v2278 = vunpack.c.l.b16 %v2258
        %v2279 = vunpack.c.h.b16 %v2258
        %v2280 = vunpack.c.l.b16 %v2259
        %v2281 = vunpack.c.h.b16 %v2259
        %v2282 = vunpack.c.l.b16 %v2260
        %v2283 = vunpack.c.h.b16 %v2260
        %v2284 = vunpack.c.l.b16 %v2261
        %v2285 = vunpack.c.h.b16 %v2261
        %v2286 = vpack.c.b16 %v2278, %v2270
        %v2287 = vpack.c.b16 %v2279, %v2271
        %v2288 = vpack.c.b16 %v2280, %v2272
        %v2289 = vpack.c.b16 %v2281, %v2273
        %v2290 = vpack.c.b16 %v2282, %v2274
        %v2291 = vpack.c.b16 %v2283, %v2275
        %v2292 = vpack.c.b16 %v2284, %v2276
        %v2293 = vpack.c.b16 %v2285, %v2277
        %v2303 = vsel %vm634, %v2252, 0
        %2305 = vmatprep.subr.bf16.mxu0 0
        %2306 = vmatpush1.bf16.msra.mxu0 0
        %2307 = vmatprep.subr.bf16.mxu0 0
        %2308 = vmatpush1.bf16.msra.mxu0 0
        %2309 = vmatprep.subr.bf16.mxu0 0
        %2310 = vmatpush1.bf16.msra.mxu0 0
        %2311 = vmatprep.subr.bf16.mxu0 0
        %2312 = vmatpush1.bf16.msra.mxu0 0
        %2313 = vmatprep.subr.bf16.mxu0 0
        %2314 = vmatpush1.bf16.msra.mxu0 0
        %2315 = vmatprep.subr.bf16.mxu0 0
        %2316 = vmatpush1.bf16.msra.mxu0 0
        %2317 = vmatprep.subr.bf16.mxu0 0
        %2318 = vmatpush1.bf16.msra.mxu0 0
        %2319 = vmatprep.subr.bf16.mxu0 %v2287
        %2320 = vmatpush1.bf16.msra.mxu0 %v2286
        %2321 = vmatprep.subr.bf16.mxu0 0
        %2322 = vmatpush2.bf16.msra.mxu0 0
        %2323 = vmatprep.subr.bf16.mxu0 0
        %2324 = vmatpush2.bf16.msra.mxu0 0
        %2325 = vmatprep.subr.bf16.mxu0 0
        %2326 = vmatpush2.bf16.msra.mxu0 0
        %2327 = vmatprep.subr.bf16.mxu0 0
        %2328 = vmatpush2.bf16.msra.mxu0 0
        %2329 = vmatprep.subr.bf16.mxu0 0
        %2330 = vmatpush2.bf16.msra.mxu0 0
        %2331 = vmatprep.subr.bf16.mxu0 0
        %2332 = vmatpush2.bf16.msra.mxu0 0
        %2333 = vmatprep.subr.bf16.mxu0 0
        %2334 = vmatpush2.bf16.msra.mxu0 0
        %2335 = vmatprep.subr.bf16.mxu0 0
        %2336 = vmatpush2.bf16.msra.mxu0 0
        %2337 = vmatprep.mubr.bf16.mxu0 0
        %2338 = vmatmul.mubr.bf16.gmra.mxu0 %v2303
        %v2339 = vpop.f32.mrf.mxu0
        %v2340 = vadd.f32 0.0, %v2339
        %v2341 = vpop.f32.mrf.mxu0
        %v2342 = vadd.f32 0.0, %v2341
        %v2343 = vpop.f32.mrf.mxu0
        %v2344 = vpop.f32.mrf.mxu0
        %2345 = vdwg.mxu0
        %2346 = vmatprep.subr.bf16.mxu0 0
        %2347 = vmatpush1.bf16.msra.mxu0 0
        %2348 = vmatprep.subr.bf16.mxu0 0
        %2349 = vmatpush1.bf16.msra.mxu0 0
        %2350 = vmatprep.subr.bf16.mxu0 0
        %2351 = vmatpush1.bf16.msra.mxu0 0
        %2352 = vmatprep.subr.bf16.mxu0 0
        %2353 = vmatpush1.bf16.msra.mxu0 0
        %2354 = vmatprep.subr.bf16.mxu0 0
        %2355 = vmatpush1.bf16.msra.mxu0 0
        %2356 = vmatprep.subr.bf16.mxu0 0
        %2357 = vmatpush1.bf16.msra.mxu0 0
        %2358 = vmatprep.subr.bf16.mxu0 0
        %2359 = vmatpush1.bf16.msra.mxu0 0
        %2360 = vmatprep.subr.bf16.mxu0 %v2289
        %2361 = vmatpush1.bf16.msra.mxu0 %v2288
        %2362 = vmatprep.subr.bf16.mxu0 0
        %2363 = vmatpush2.bf16.msra.mxu0 0
        %2364 = vmatprep.subr.bf16.mxu0 0
        %2365 = vmatpush2.bf16.msra.mxu0 0
        %2366 = vmatprep.subr.bf16.mxu0 0
        %2367 = vmatpush2.bf16.msra.mxu0 0
        %2368 = vmatprep.subr.bf16.mxu0 0
        %2369 = vmatpush2.bf16.msra.mxu0 0
        %2370 = vmatprep.subr.bf16.mxu0 0
        %2371 = vmatpush2.bf16.msra.mxu0 0
        %2372 = vmatprep.subr.bf16.mxu0 0
        %2373 = vmatpush2.bf16.msra.mxu0 0
        %2374 = vmatprep.subr.bf16.mxu0 0
        %2375 = vmatpush2.bf16.msra.mxu0 0
        %2376 = vmatprep.subr.bf16.mxu0 0
        %2377 = vmatpush2.bf16.msra.mxu0 0
        %2378 = vmatprep.mubr.bf16.mxu0 0
        %2379 = vmatmul.mubr.bf16.gmra.mxu0 %v2303
        %v2380 = vpop.f32.mrf.mxu0
        %v2381 = vadd.f32 0.0, %v2380
        %v2382 = vpop.f32.mrf.mxu0
        %v2383 = vadd.f32 0.0, %v2382
        %v2384 = vpop.f32.mrf.mxu0
        %v2385 = vpop.f32.mrf.mxu0
        %2386 = vdwg.mxu0
        %2387 = vmatprep.subr.bf16.mxu0 0
        %2388 = vmatpush1.bf16.msra.mxu0 0
        %2389 = vmatprep.subr.bf16.mxu0 0
        %2390 = vmatpush1.bf16.msra.mxu0 0
        %2391 = vmatprep.subr.bf16.mxu0 0
        %2392 = vmatpush1.bf16.msra.mxu0 0
        %2393 = vmatprep.subr.bf16.mxu0 0
        %2394 = vmatpush1.bf16.msra.mxu0 0
        %2395 = vmatprep.subr.bf16.mxu0 0
        %2396 = vmatpush1.bf16.msra.mxu0 0
        %2397 = vmatprep.subr.bf16.mxu0 0
        %2398 = vmatpush1.bf16.msra.mxu0 0
        %2399 = vmatprep.subr.bf16.mxu0 0
        %2400 = vmatpush1.bf16.msra.mxu0 0
        %2401 = vmatprep.subr.bf16.mxu0 %v2291
        %2402 = vmatpush1.bf16.msra.mxu0 %v2290
        %2403 = vmatprep.subr.bf16.mxu0 0
        %2404 = vmatpush2.bf16.msra.mxu0 0
        %2405 = vmatprep.subr.bf16.mxu0 0
        %2406 = vmatpush2.bf16.msra.mxu0 0
        %2407 = vmatprep.subr.bf16.mxu0 0
        %2408 = vmatpush2.bf16.msra.mxu0 0
        %2409 = vmatprep.subr.bf16.mxu0 0
        %2410 = vmatpush2.bf16.msra.mxu0 0
        %2411 = vmatprep.subr.bf16.mxu0 0
        %2412 = vmatpush2.bf16.msra.mxu0 0
        %2413 = vmatprep.subr.bf16.mxu0 0
        %2414 = vmatpush2.bf16.msra.mxu0 0
        %2415 = vmatprep.subr.bf16.mxu0 0
        %2416 = vmatpush2.bf16.msra.mxu0 0
        %2417 = vmatprep.subr.bf16.mxu0 0
        %2418 = vmatpush2.bf16.msra.mxu0 0
        %2419 = vmatprep.mubr.bf16.mxu0 0
        %2420 = vmatmul.mubr.bf16.gmra.mxu0 %v2303
        %v2421 = vpop.f32.mrf.mxu0
        %v2422 = vadd.f32 0.0, %v2421
        %v2423 = vpop.f32.mrf.mxu0
        %v2424 = vadd.f32 0.0, %v2423
        %v2425 = vpop.f32.mrf.mxu0
        %v2426 = vpop.f32.mrf.mxu0
        %2427 = vdwg.mxu0
        %2428 = vmatprep.subr.bf16.mxu0 0
        %2429 = vmatpush1.bf16.msra.mxu0 0
        %2430 = vmatprep.subr.bf16.mxu0 0
        %2431 = vmatpush1.bf16.msra.mxu0 0
        %2432 = vmatprep.subr.bf16.mxu0 0
        %2433 = vmatpush1.bf16.msra.mxu0 0
        %2434 = vmatprep.subr.bf16.mxu0 0
        %2435 = vmatpush1.bf16.msra.mxu0 0
        %2436 = vmatprep.subr.bf16.mxu0 0
        %2437 = vmatpush1.bf16.msra.mxu0 0
        %2438 = vmatprep.subr.bf16.mxu0 0
        %2439 = vmatpush1.bf16.msra.mxu0 0
        %2440 = vmatprep.subr.bf16.mxu0 0
        %2441 = vmatpush1.bf16.msra.mxu0 0
        %2442 = vmatprep.subr.bf16.mxu0 %v2293
        %2443 = vmatpush1.bf16.msra.mxu0 %v2292
        %2444 = vmatprep.subr.bf16.mxu0 0
        %2445 = vmatpush2.bf16.msra.mxu0 0
        %2446 = vmatprep.subr.bf16.mxu0 0
        %2447 = vmatpush2.bf16.msra.mxu0 0
        %2448 = vmatprep.subr.bf16.mxu0 0
        %2449 = vmatpush2.bf16.msra.mxu0 0
        %2450 = vmatprep.subr.bf16.mxu0 0
        %2451 = vmatpush2.bf16.msra.mxu0 0
        %2452 = vmatprep.subr.bf16.mxu0 0
        %2453 = vmatpush2.bf16.msra.mxu0 0
        %2454 = vmatprep.subr.bf16.mxu0 0
        %2455 = vmatpush2.bf16.msra.mxu0 0
        %2456 = vmatprep.subr.bf16.mxu0 0
        %2457 = vmatpush2.bf16.msra.mxu0 0
        %2458 = vmatprep.subr.bf16.mxu0 0
        %2459 = vmatpush2.bf16.msra.mxu0 0
        %2460 = vmatprep.mubr.bf16.mxu0 0
        %2461 = vmatmul.mubr.bf16.gmra.mxu0 %v2303
        %v2462 = vpop.f32.mrf.mxu0
        %v2463 = vadd.f32 0.0, %v2462
        %v2464 = vpop.f32.mrf.mxu0
        %v2465 = vadd.f32 0.0, %v2464
        %v2466 = vpop.f32.mrf.mxu0
        %v2467 = vpop.f32.mrf.mxu0
        %2468 = vdwg.mxu0
        %v2469 = vadd.f32 %v2236, %v2340
        %v2470 = vadd.f32 %v2237, %v2342
        %v2471 = vadd.f32 %v2238, %v2381
        %v2472 = vadd.f32 %v2239, %v2383
        %v2473 = vadd.f32 %v2240, %v2422
        %v2474 = vadd.f32 %v2241, %v2424
        %v2475 = vadd.f32 %v2242, %v2463
        %v2476 = vadd.f32 %v2243, %v2465
        %s2477 = scalar_lea.vmem [#allocation2], 5
        %v2478 = vld [vmem:[%s2477] ss:$16 sm:$0x3]
        %v2479 = vld [vmem:[%s2477] ss:$16 sm:$0xc]
        %v2480 = vor.u32 %v2478, %v2479
        %v2481 = vld [vmem:[%s2477] ss:$16 sm:$0x30]
        %v2482 = vor.u32 %v2480, %v2481
        %v2483 = vld [vmem:[%s2477] ss:$16 sm:$0xc0]
        %v2484 = vor.u32 %v2482, %v2483
        %v2485 = vpack.c.bf16 %v2484, %v2484
        %s2486 = scalar_lea.vmem %s4, 320
        %v2487 = vld [vmem:[%s2486] sm:$0xff]
        %v2488 = vld [vmem:[%s2486 + $0x8] sm:$0xff]
        %v2489 = vld [vmem:[%s2486 + $0x10] sm:$0xff]
        %v2490 = vld [vmem:[%s2486 + $0x18] sm:$0xff]
        %v2491 = vld [vmem:[%s2486 + $0x20] sm:$0xff]
        %v2492 = vld [vmem:[%s2486 + $0x28] sm:$0xff]
        %v2493 = vld [vmem:[%s2486 + $0x30] sm:$0xff]
        %v2494 = vld [vmem:[%s2486 + $0x38] sm:$0xff]
        %v2503 = vunpack.c.l.b16 %v2487
        %v2504 = vunpack.c.h.b16 %v2487
        %v2505 = vunpack.c.l.b16 %v2488
        %v2506 = vunpack.c.h.b16 %v2488
        %v2507 = vunpack.c.l.b16 %v2489
        %v2508 = vunpack.c.h.b16 %v2489
        %v2509 = vunpack.c.l.b16 %v2490
        %v2510 = vunpack.c.h.b16 %v2490
        %v2511 = vunpack.c.l.b16 %v2491
        %v2512 = vunpack.c.h.b16 %v2491
        %v2513 = vunpack.c.l.b16 %v2492
        %v2514 = vunpack.c.h.b16 %v2492
        %v2515 = vunpack.c.l.b16 %v2493
        %v2516 = vunpack.c.h.b16 %v2493
        %v2517 = vunpack.c.l.b16 %v2494
        %v2518 = vunpack.c.h.b16 %v2494
        %v2519 = vpack.c.b16 %v2511, %v2503
        %v2520 = vpack.c.b16 %v2512, %v2504
        %v2521 = vpack.c.b16 %v2513, %v2505
        %v2522 = vpack.c.b16 %v2514, %v2506
        %v2523 = vpack.c.b16 %v2515, %v2507
        %v2524 = vpack.c.b16 %v2516, %v2508
        %v2525 = vpack.c.b16 %v2517, %v2509
        %v2526 = vpack.c.b16 %v2518, %v2510
        %v2536 = vsel %vm634, %v2485, 0
        %2538 = vmatprep.subr.bf16.mxu0 0
        %2539 = vmatpush1.bf16.msra.mxu0 0
        %2540 = vmatprep.subr.bf16.mxu0 0
        %2541 = vmatpush1.bf16.msra.mxu0 0
        %2542 = vmatprep.subr.bf16.mxu0 0
        %2543 = vmatpush1.bf16.msra.mxu0 0
        %2544 = vmatprep.subr.bf16.mxu0 0
        %2545 = vmatpush1.bf16.msra.mxu0 0
        %2546 = vmatprep.subr.bf16.mxu0 0
        %2547 = vmatpush1.bf16.msra.mxu0 0
        %2548 = vmatprep.subr.bf16.mxu0 0
        %2549 = vmatpush1.bf16.msra.mxu0 0
        %2550 = vmatprep.subr.bf16.mxu0 0
        %2551 = vmatpush1.bf16.msra.mxu0 0
        %2552 = vmatprep.subr.bf16.mxu0 %v2520
        %2553 = vmatpush1.bf16.msra.mxu0 %v2519
        %2554 = vmatprep.subr.bf16.mxu0 0
        %2555 = vmatpush2.bf16.msra.mxu0 0
        %2556 = vmatprep.subr.bf16.mxu0 0
        %2557 = vmatpush2.bf16.msra.mxu0 0
        %2558 = vmatprep.subr.bf16.mxu0 0
        %2559 = vmatpush2.bf16.msra.mxu0 0
        %2560 = vmatprep.subr.bf16.mxu0 0
        %2561 = vmatpush2.bf16.msra.mxu0 0
        %2562 = vmatprep.subr.bf16.mxu0 0
        %2563 = vmatpush2.bf16.msra.mxu0 0
        %2564 = vmatprep.subr.bf16.mxu0 0
        %2565 = vmatpush2.bf16.msra.mxu0 0
        %2566 = vmatprep.subr.bf16.mxu0 0
        %2567 = vmatpush2.bf16.msra.mxu0 0
        %2568 = vmatprep.subr.bf16.mxu0 0
        %2569 = vmatpush2.bf16.msra.mxu0 0
        %2570 = vmatprep.mubr.bf16.mxu0 0
        %2571 = vmatmul.mubr.bf16.gmra.mxu0 %v2536
        %v2572 = vpop.f32.mrf.mxu0
        %v2573 = vadd.f32 0.0, %v2572
        %v2574 = vpop.f32.mrf.mxu0
        %v2575 = vadd.f32 0.0, %v2574
        %v2576 = vpop.f32.mrf.mxu0
        %v2577 = vpop.f32.mrf.mxu0
        %2578 = vdwg.mxu0
        %2579 = vmatprep.subr.bf16.mxu0 0
        %2580 = vmatpush1.bf16.msra.mxu0 0
        %2581 = vmatprep.subr.bf16.mxu0 0
        %2582 = vmatpush1.bf16.msra.mxu0 0
        %2583 = vmatprep.subr.bf16.mxu0 0
        %2584 = vmatpush1.bf16.msra.mxu0 0
        %2585 = vmatprep.subr.bf16.mxu0 0
        %2586 = vmatpush1.bf16.msra.mxu0 0
        %2587 = vmatprep.subr.bf16.mxu0 0
        %2588 = vmatpush1.bf16.msra.mxu0 0
        %2589 = vmatprep.subr.bf16.mxu0 0
        %2590 = vmatpush1.bf16.msra.mxu0 0
        %2591 = vmatprep.subr.bf16.mxu0 0
        %2592 = vmatpush1.bf16.msra.mxu0 0
        %2593 = vmatprep.subr.bf16.mxu0 %v2522
        %2594 = vmatpush1.bf16.msra.mxu0 %v2521
        %2595 = vmatprep.subr.bf16.mxu0 0
        %2596 = vmatpush2.bf16.msra.mxu0 0
        %2597 = vmatprep.subr.bf16.mxu0 0
        %2598 = vmatpush2.bf16.msra.mxu0 0
        %2599 = vmatprep.subr.bf16.mxu0 0
        %2600 = vmatpush2.bf16.msra.mxu0 0
        %2601 = vmatprep.subr.bf16.mxu0 0
        %2602 = vmatpush2.bf16.msra.mxu0 0
        %2603 = vmatprep.subr.bf16.mxu0 0
        %2604 = vmatpush2.bf16.msra.mxu0 0
        %2605 = vmatprep.subr.bf16.mxu0 0
        %2606 = vmatpush2.bf16.msra.mxu0 0
        %2607 = vmatprep.subr.bf16.mxu0 0
        %2608 = vmatpush2.bf16.msra.mxu0 0
        %2609 = vmatprep.subr.bf16.mxu0 0
        %2610 = vmatpush2.bf16.msra.mxu0 0
        %2611 = vmatprep.mubr.bf16.mxu0 0
        %2612 = vmatmul.mubr.bf16.gmra.mxu0 %v2536
        %v2613 = vpop.f32.mrf.mxu0
        %v2614 = vadd.f32 0.0, %v2613
        %v2615 = vpop.f32.mrf.mxu0
        %v2616 = vadd.f32 0.0, %v2615
        %v2617 = vpop.f32.mrf.mxu0
        %v2618 = vpop.f32.mrf.mxu0
        %2619 = vdwg.mxu0
        %2620 = vmatprep.subr.bf16.mxu0 0
        %2621 = vmatpush1.bf16.msra.mxu0 0
        %2622 = vmatprep.subr.bf16.mxu0 0
        %2623 = vmatpush1.bf16.msra.mxu0 0
        %2624 = vmatprep.subr.bf16.mxu0 0
        %2625 = vmatpush1.bf16.msra.mxu0 0
        %2626 = vmatprep.subr.bf16.mxu0 0
        %2627 = vmatpush1.bf16.msra.mxu0 0
        %2628 = vmatprep.subr.bf16.mxu0 0
        %2629 = vmatpush1.bf16.msra.mxu0 0
        %2630 = vmatprep.subr.bf16.mxu0 0
        %2631 = vmatpush1.bf16.msra.mxu0 0
        %2632 = vmatprep.subr.bf16.mxu0 0
        %2633 = vmatpush1.bf16.msra.mxu0 0
        %2634 = vmatprep.subr.bf16.mxu0 %v2524
        %2635 = vmatpush1.bf16.msra.mxu0 %v2523
        %2636 = vmatprep.subr.bf16.mxu0 0
        %2637 = vmatpush2.bf16.msra.mxu0 0
        %2638 = vmatprep.subr.bf16.mxu0 0
        %2639 = vmatpush2.bf16.msra.mxu0 0
        %2640 = vmatprep.subr.bf16.mxu0 0
        %2641 = vmatpush2.bf16.msra.mxu0 0
        %2642 = vmatprep.subr.bf16.mxu0 0
        %2643 = vmatpush2.bf16.msra.mxu0 0
        %2644 = vmatprep.subr.bf16.mxu0 0
        %2645 = vmatpush2.bf16.msra.mxu0 0
        %2646 = vmatprep.subr.bf16.mxu0 0
        %2647 = vmatpush2.bf16.msra.mxu0 0
        %2648 = vmatprep.subr.bf16.mxu0 0
        %2649 = vmatpush2.bf16.msra.mxu0 0
        %2650 = vmatprep.subr.bf16.mxu0 0
        %2651 = vmatpush2.bf16.msra.mxu0 0
        %2652 = vmatprep.mubr.bf16.mxu0 0
        %2653 = vmatmul.mubr.bf16.gmra.mxu0 %v2536
        %v2654 = vpop.f32.mrf.mxu0
        %v2655 = vadd.f32 0.0, %v2654
        %v2656 = vpop.f32.mrf.mxu0
        %v2657 = vadd.f32 0.0, %v2656
        %v2658 = vpop.f32.mrf.mxu0
        %v2659 = vpop.f32.mrf.mxu0
        %2660 = vdwg.mxu0
        %2661 = vmatprep.subr.bf16.mxu0 0
        %2662 = vmatpush1.bf16.msra.mxu0 0
        %2663 = vmatprep.subr.bf16.mxu0 0
        %2664 = vmatpush1.bf16.msra.mxu0 0
        %2665 = vmatprep.subr.bf16.mxu0 0
        %2666 = vmatpush1.bf16.msra.mxu0 0
        %2667 = vmatprep.subr.bf16.mxu0 0
        %2668 = vmatpush1.bf16.msra.mxu0 0
        %2669 = vmatprep.subr.bf16.mxu0 0
        %2670 = vmatpush1.bf16.msra.mxu0 0
        %2671 = vmatprep.subr.bf16.mxu0 0
        %2672 = vmatpush1.bf16.msra.mxu0 0
        %2673 = vmatprep.subr.bf16.mxu0 0
        %2674 = vmatpush1.bf16.msra.mxu0 0
        %2675 = vmatprep.subr.bf16.mxu0 %v2526
        %2676 = vmatpush1.bf16.msra.mxu0 %v2525
        %2677 = vmatprep.subr.bf16.mxu0 0
        %2678 = vmatpush2.bf16.msra.mxu0 0
        %2679 = vmatprep.subr.bf16.mxu0 0
        %2680 = vmatpush2.bf16.msra.mxu0 0
        %2681 = vmatprep.subr.bf16.mxu0 0
        %2682 = vmatpush2.bf16.msra.mxu0 0
        %2683 = vmatprep.subr.bf16.mxu0 0
        %2684 = vmatpush2.bf16.msra.mxu0 0
        %2685 = vmatprep.subr.bf16.mxu0 0
        %2686 = vmatpush2.bf16.msra.mxu0 0
        %2687 = vmatprep.subr.bf16.mxu0 0
        %2688 = vmatpush2.bf16.msra.mxu0 0
        %2689 = vmatprep.subr.bf16.mxu0 0
        %2690 = vmatpush2.bf16.msra.mxu0 0
        %2691 = vmatprep.subr.bf16.mxu0 0
        %2692 = vmatpush2.bf16.msra.mxu0 0
        %2693 = vmatprep.mubr.bf16.mxu0 0
        %2694 = vmatmul.mubr.bf16.gmra.mxu0 %v2536
        %v2695 = vpop.f32.mrf.mxu0
        %v2696 = vadd.f32 0.0, %v2695
        %v2697 = vpop.f32.mrf.mxu0
        %v2698 = vadd.f32 0.0, %v2697
        %v2699 = vpop.f32.mrf.mxu0
        %v2700 = vpop.f32.mrf.mxu0
        %2701 = vdwg.mxu0
        %v2702 = vadd.f32 %v2469, %v2573
        %v2703 = vadd.f32 %v2470, %v2575
        %v2704 = vadd.f32 %v2471, %v2614
        %v2705 = vadd.f32 %v2472, %v2616
        %v2706 = vadd.f32 %v2473, %v2655
        %v2707 = vadd.f32 %v2474, %v2657
        %v2708 = vadd.f32 %v2475, %v2696
        %v2709 = vadd.f32 %v2476, %v2698
        %s2710 = scalar_lea.vmem [#allocation2], 6
        %v2711 = vld [vmem:[%s2710] ss:$16 sm:$0x3]
        %v2712 = vld [vmem:[%s2710] ss:$16 sm:$0xc]
        %v2713 = vor.u32 %v2711, %v2712
        %v2714 = vld [vmem:[%s2710] ss:$16 sm:$0x30]
        %v2715 = vor.u32 %v2713, %v2714
        %v2716 = vld [vmem:[%s2710] ss:$16 sm:$0xc0]
        %v2717 = vor.u32 %v2715, %v2716
        %v2718 = vpack.c.bf16 %v2717, %v2717
        %s2719 = scalar_lea.vmem %s4, 384
        %v2720 = vld [vmem:[%s2719] sm:$0xff]
        %v2721 = vld [vmem:[%s2719 + $0x8] sm:$0xff]
        %v2722 = vld [vmem:[%s2719 + $0x10] sm:$0xff]
        %v2723 = vld [vmem:[%s2719 + $0x18] sm:$0xff]
        %v2724 = vld [vmem:[%s2719 + $0x20] sm:$0xff]
        %v2725 = vld [vmem:[%s2719 + $0x28] sm:$0xff]
        %v2726 = vld [vmem:[%s2719 + $0x30] sm:$0xff]
        %v2727 = vld [vmem:[%s2719 + $0x38] sm:$0xff]
        %v2736 = vunpack.c.l.b16 %v2720
        %v2737 = vunpack.c.h.b16 %v2720
        %v2738 = vunpack.c.l.b16 %v2721
        %v2739 = vunpack.c.h.b16 %v2721
        %v2740 = vunpack.c.l.b16 %v2722
        %v2741 = vunpack.c.h.b16 %v2722
        %v2742 = vunpack.c.l.b16 %v2723
        %v2743 = vunpack.c.h.b16 %v2723
        %v2744 = vunpack.c.l.b16 %v2724
        %v2745 = vunpack.c.h.b16 %v2724
        %v2746 = vunpack.c.l.b16 %v2725
        %v2747 = vunpack.c.h.b16 %v2725
        %v2748 = vunpack.c.l.b16 %v2726
        %v2749 = vunpack.c.h.b16 %v2726
        %v2750 = vunpack.c.l.b16 %v2727
        %v2751 = vunpack.c.h.b16 %v2727
        %v2752 = vpack.c.b16 %v2744, %v2736
        %v2753 = vpack.c.b16 %v2745, %v2737
        %v2754 = vpack.c.b16 %v2746, %v2738
        %v2755 = vpack.c.b16 %v2747, %v2739
        %v2756 = vpack.c.b16 %v2748, %v2740
        %v2757 = vpack.c.b16 %v2749, %v2741
        %v2758 = vpack.c.b16 %v2750, %v2742
        %v2759 = vpack.c.b16 %v2751, %v2743
        %v2769 = vsel %vm634, %v2718, 0
        %2771 = vmatprep.subr.bf16.mxu0 0
        %2772 = vmatpush1.bf16.msra.mxu0 0
        %2773 = vmatprep.subr.bf16.mxu0 0
        %2774 = vmatpush1.bf16.msra.mxu0 0
        %2775 = vmatprep.subr.bf16.mxu0 0
        %2776 = vmatpush1.bf16.msra.mxu0 0
        %2777 = vmatprep.subr.bf16.mxu0 0
        %2778 = vmatpush1.bf16.msra.mxu0 0
        %2779 = vmatprep.subr.bf16.mxu0 0
        %2780 = vmatpush1.bf16.msra.mxu0 0
        %2781 = vmatprep.subr.bf16.mxu0 0
        %2782 = vmatpush1.bf16.msra.mxu0 0
        %2783 = vmatprep.subr.bf16.mxu0 0
        %2784 = vmatpush1.bf16.msra.mxu0 0
        %2785 = vmatprep.subr.bf16.mxu0 %v2753
        %2786 = vmatpush1.bf16.msra.mxu0 %v2752
        %2787 = vmatprep.subr.bf16.mxu0 0
        %2788 = vmatpush2.bf16.msra.mxu0 0
        %2789 = vmatprep.subr.bf16.mxu0 0
        %2790 = vmatpush2.bf16.msra.mxu0 0
        %2791 = vmatprep.subr.bf16.mxu0 0
        %2792 = vmatpush2.bf16.msra.mxu0 0
        %2793 = vmatprep.subr.bf16.mxu0 0
        %2794 = vmatpush2.bf16.msra.mxu0 0
        %2795 = vmatprep.subr.bf16.mxu0 0
        %2796 = vmatpush2.bf16.msra.mxu0 0
        %2797 = vmatprep.subr.bf16.mxu0 0
        %2798 = vmatpush2.bf16.msra.mxu0 0
        %2799 = vmatprep.subr.bf16.mxu0 0
        %2800 = vmatpush2.bf16.msra.mxu0 0
        %2801 = vmatprep.subr.bf16.mxu0 0
        %2802 = vmatpush2.bf16.msra.mxu0 0
        %2803 = vmatprep.mubr.bf16.mxu0 0
        %2804 = vmatmul.mubr.bf16.gmra.mxu0 %v2769
        %v2805 = vpop.f32.mrf.mxu0
        %v2806 = vadd.f32 0.0, %v2805
        %v2807 = vpop.f32.mrf.mxu0
        %v2808 = vadd.f32 0.0, %v2807
        %v2809 = vpop.f32.mrf.mxu0
        %v2810 = vpop.f32.mrf.mxu0
        %2811 = vdwg.mxu0
        %2812 = vmatprep.subr.bf16.mxu0 0
        %2813 = vmatpush1.bf16.msra.mxu0 0
        %2814 = vmatprep.subr.bf16.mxu0 0
        %2815 = vmatpush1.bf16.msra.mxu0 0
        %2816 = vmatprep.subr.bf16.mxu0 0
        %2817 = vmatpush1.bf16.msra.mxu0 0
        %2818 = vmatprep.subr.bf16.mxu0 0
        %2819 = vmatpush1.bf16.msra.mxu0 0
        %2820 = vmatprep.subr.bf16.mxu0 0
        %2821 = vmatpush1.bf16.msra.mxu0 0
        %2822 = vmatprep.subr.bf16.mxu0 0
        %2823 = vmatpush1.bf16.msra.mxu0 0
        %2824 = vmatprep.subr.bf16.mxu0 0
        %2825 = vmatpush1.bf16.msra.mxu0 0
        %2826 = vmatprep.subr.bf16.mxu0 %v2755
        %2827 = vmatpush1.bf16.msra.mxu0 %v2754
        %2828 = vmatprep.subr.bf16.mxu0 0
        %2829 = vmatpush2.bf16.msra.mxu0 0
        %2830 = vmatprep.subr.bf16.mxu0 0
        %2831 = vmatpush2.bf16.msra.mxu0 0
        %2832 = vmatprep.subr.bf16.mxu0 0
        %2833 = vmatpush2.bf16.msra.mxu0 0
        %2834 = vmatprep.subr.bf16.mxu0 0
        %2835 = vmatpush2.bf16.msra.mxu0 0
        %2836 = vmatprep.subr.bf16.mxu0 0
        %2837 = vmatpush2.bf16.msra.mxu0 0
        %2838 = vmatprep.subr.bf16.mxu0 0
        %2839 = vmatpush2.bf16.msra.mxu0 0
        %2840 = vmatprep.subr.bf16.mxu0 0
        %2841 = vmatpush2.bf16.msra.mxu0 0
        %2842 = vmatprep.subr.bf16.mxu0 0
        %2843 = vmatpush2.bf16.msra.mxu0 0
        %2844 = vmatprep.mubr.bf16.mxu0 0
        %2845 = vmatmul.mubr.bf16.gmra.mxu0 %v2769
        %v2846 = vpop.f32.mrf.mxu0
        %v2847 = vadd.f32 0.0, %v2846
        %v2848 = vpop.f32.mrf.mxu0
        %v2849 = vadd.f32 0.0, %v2848
        %v2850 = vpop.f32.mrf.mxu0
        %v2851 = vpop.f32.mrf.mxu0
        %2852 = vdwg.mxu0
        %2853 = vmatprep.subr.bf16.mxu0 0
        %2854 = vmatpush1.bf16.msra.mxu0 0
        %2855 = vmatprep.subr.bf16.mxu0 0
        %2856 = vmatpush1.bf16.msra.mxu0 0
        %2857 = vmatprep.subr.bf16.mxu0 0
        %2858 = vmatpush1.bf16.msra.mxu0 0
        %2859 = vmatprep.subr.bf16.mxu0 0
        %2860 = vmatpush1.bf16.msra.mxu0 0
        %2861 = vmatprep.subr.bf16.mxu0 0
        %2862 = vmatpush1.bf16.msra.mxu0 0
        %2863 = vmatprep.subr.bf16.mxu0 0
        %2864 = vmatpush1.bf16.msra.mxu0 0
        %2865 = vmatprep.subr.bf16.mxu0 0
        %2866 = vmatpush1.bf16.msra.mxu0 0
        %2867 = vmatprep.subr.bf16.mxu0 %v2757
        %2868 = vmatpush1.bf16.msra.mxu0 %v2756
        %2869 = vmatprep.subr.bf16.mxu0 0
        %2870 = vmatpush2.bf16.msra.mxu0 0
        %2871 = vmatprep.subr.bf16.mxu0 0
        %2872 = vmatpush2.bf16.msra.mxu0 0
        %2873 = vmatprep.subr.bf16.mxu0 0
        %2874 = vmatpush2.bf16.msra.mxu0 0
        %2875 = vmatprep.subr.bf16.mxu0 0
        %2876 = vmatpush2.bf16.msra.mxu0 0
        %2877 = vmatprep.subr.bf16.mxu0 0
        %2878 = vmatpush2.bf16.msra.mxu0 0
        %2879 = vmatprep.subr.bf16.mxu0 0
        %2880 = vmatpush2.bf16.msra.mxu0 0
        %2881 = vmatprep.subr.bf16.mxu0 0
        %2882 = vmatpush2.bf16.msra.mxu0 0
        %2883 = vmatprep.subr.bf16.mxu0 0
        %2884 = vmatpush2.bf16.msra.mxu0 0
        %2885 = vmatprep.mubr.bf16.mxu0 0
        %2886 = vmatmul.mubr.bf16.gmra.mxu0 %v2769
        %v2887 = vpop.f32.mrf.mxu0
        %v2888 = vadd.f32 0.0, %v2887
        %v2889 = vpop.f32.mrf.mxu0
        %v2890 = vadd.f32 0.0, %v2889
        %v2891 = vpop.f32.mrf.mxu0
        %v2892 = vpop.f32.mrf.mxu0
        %2893 = vdwg.mxu0
        %2894 = vmatprep.subr.bf16.mxu0 0
        %2895 = vmatpush1.bf16.msra.mxu0 0
        %2896 = vmatprep.subr.bf16.mxu0 0
        %2897 = vmatpush1.bf16.msra.mxu0 0
        %2898 = vmatprep.subr.bf16.mxu0 0
        %2899 = vmatpush1.bf16.msra.mxu0 0
        %2900 = vmatprep.subr.bf16.mxu0 0
        %2901 = vmatpush1.bf16.msra.mxu0 0
        %2902 = vmatprep.subr.bf16.mxu0 0
        %2903 = vmatpush1.bf16.msra.mxu0 0
        %2904 = vmatprep.subr.bf16.mxu0 0
        %2905 = vmatpush1.bf16.msra.mxu0 0
        %2906 = vmatprep.subr.bf16.mxu0 0
        %2907 = vmatpush1.bf16.msra.mxu0 0
        %2908 = vmatprep.subr.bf16.mxu0 %v2759
        %2909 = vmatpush1.bf16.msra.mxu0 %v2758
        %2910 = vmatprep.subr.bf16.mxu0 0
        %2911 = vmatpush2.bf16.msra.mxu0 0
        %2912 = vmatprep.subr.bf16.mxu0 0
        %2913 = vmatpush2.bf16.msra.mxu0 0
        %2914 = vmatprep.subr.bf16.mxu0 0
        %2915 = vmatpush2.bf16.msra.mxu0 0
        %2916 = vmatprep.subr.bf16.mxu0 0
        %2917 = vmatpush2.bf16.msra.mxu0 0
        %2918 = vmatprep.subr.bf16.mxu0 0
        %2919 = vmatpush2.bf16.msra.mxu0 0
        %2920 = vmatprep.subr.bf16.mxu0 0
        %2921 = vmatpush2.bf16.msra.mxu0 0
        %2922 = vmatprep.subr.bf16.mxu0 0
        %2923 = vmatpush2.bf16.msra.mxu0 0
        %2924 = vmatprep.subr.bf16.mxu0 0
        %2925 = vmatpush2.bf16.msra.mxu0 0
        %2926 = vmatprep.mubr.bf16.mxu0 0
        %2927 = vmatmul.mubr.bf16.gmra.mxu0 %v2769
        %v2928 = vpop.f32.mrf.mxu0
        %v2929 = vadd.f32 0.0, %v2928
        %v2930 = vpop.f32.mrf.mxu0
        %v2931 = vadd.f32 0.0, %v2930
        %v2932 = vpop.f32.mrf.mxu0
        %v2933 = vpop.f32.mrf.mxu0
        %2934 = vdwg.mxu0
        %v2935 = vadd.f32 %v2702, %v2806
        %v2936 = vadd.f32 %v2703, %v2808
        %v2937 = vadd.f32 %v2704, %v2847
        %v2938 = vadd.f32 %v2705, %v2849
        %v2939 = vadd.f32 %v2706, %v2888
        %v2940 = vadd.f32 %v2707, %v2890
        %v2941 = vadd.f32 %v2708, %v2929
        %v2942 = vadd.f32 %v2709, %v2931
        %s2943 = scalar_lea.vmem [#allocation2], 7
        %v2944 = vld [vmem:[%s2943] ss:$16 sm:$0x3]
        %v2945 = vld [vmem:[%s2943] ss:$16 sm:$0xc]
        %v2946 = vor.u32 %v2944, %v2945
        %v2947 = vld [vmem:[%s2943] ss:$16 sm:$0x30]
        %v2948 = vor.u32 %v2946, %v2947
        %v2949 = vld [vmem:[%s2943] ss:$16 sm:$0xc0]
        %v2950 = vor.u32 %v2948, %v2949
        %v2951 = vpack.c.bf16 %v2950, %v2950
        %s2952 = scalar_lea.vmem %s4, 448
        %v2953 = vld [vmem:[%s2952] sm:$0xff]
        %v2954 = vld [vmem:[%s2952 + $0x8] sm:$0xff]
        %v2955 = vld [vmem:[%s2952 + $0x10] sm:$0xff]
        %v2956 = vld [vmem:[%s2952 + $0x18] sm:$0xff]
        %v2957 = vld [vmem:[%s2952 + $0x20] sm:$0xff]
        %v2958 = vld [vmem:[%s2952 + $0x28] sm:$0xff]
        %v2959 = vld [vmem:[%s2952 + $0x30] sm:$0xff]
        %v2960 = vld [vmem:[%s2952 + $0x38] sm:$0xff]
        %v2969 = vunpack.c.l.b16 %v2953
        %v2970 = vunpack.c.h.b16 %v2953
        %v2971 = vunpack.c.l.b16 %v2954
        %v2972 = vunpack.c.h.b16 %v2954
        %v2973 = vunpack.c.l.b16 %v2955
        %v2974 = vunpack.c.h.b16 %v2955
        %v2975 = vunpack.c.l.b16 %v2956
        %v2976 = vunpack.c.h.b16 %v2956
        %v2977 = vunpack.c.l.b16 %v2957
        %v2978 = vunpack.c.h.b16 %v2957
        %v2979 = vunpack.c.l.b16 %v2958
        %v2980 = vunpack.c.h.b16 %v2958
        %v2981 = vunpack.c.l.b16 %v2959
        %v2982 = vunpack.c.h.b16 %v2959
        %v2983 = vunpack.c.l.b16 %v2960
        %v2984 = vunpack.c.h.b16 %v2960
        %v2985 = vpack.c.b16 %v2977, %v2969
        %v2986 = vpack.c.b16 %v2978, %v2970
        %v2987 = vpack.c.b16 %v2979, %v2971
        %v2988 = vpack.c.b16 %v2980, %v2972
        %v2989 = vpack.c.b16 %v2981, %v2973
        %v2990 = vpack.c.b16 %v2982, %v2974
        %v2991 = vpack.c.b16 %v2983, %v2975
        %v2992 = vpack.c.b16 %v2984, %v2976
        %v3002 = vsel %vm634, %v2951, 0
        %3004 = vmatprep.subr.bf16.mxu0 0
        %3005 = vmatpush1.bf16.msra.mxu0 0
        %3006 = vmatprep.subr.bf16.mxu0 0
        %3007 = vmatpush1.bf16.msra.mxu0 0
        %3008 = vmatprep.subr.bf16.mxu0 0
        %3009 = vmatpush1.bf16.msra.mxu0 0
        %3010 = vmatprep.subr.bf16.mxu0 0
        %3011 = vmatpush1.bf16.msra.mxu0 0
        %3012 = vmatprep.subr.bf16.mxu0 0
        %3013 = vmatpush1.bf16.msra.mxu0 0
        %3014 = vmatprep.subr.bf16.mxu0 0
        %3015 = vmatpush1.bf16.msra.mxu0 0
        %3016 = vmatprep.subr.bf16.mxu0 0
        %3017 = vmatpush1.bf16.msra.mxu0 0
        %3018 = vmatprep.subr.bf16.mxu0 %v2986
        %3019 = vmatpush1.bf16.msra.mxu0 %v2985
        %3020 = vmatprep.subr.bf16.mxu0 0
        %3021 = vmatpush2.bf16.msra.mxu0 0
        %3022 = vmatprep.subr.bf16.mxu0 0
        %3023 = vmatpush2.bf16.msra.mxu0 0
        %3024 = vmatprep.subr.bf16.mxu0 0
        %3025 = vmatpush2.bf16.msra.mxu0 0
        %3026 = vmatprep.subr.bf16.mxu0 0
        %3027 = vmatpush2.bf16.msra.mxu0 0
        %3028 = vmatprep.subr.bf16.mxu0 0
        %3029 = vmatpush2.bf16.msra.mxu0 0
        %3030 = vmatprep.subr.bf16.mxu0 0
        %3031 = vmatpush2.bf16.msra.mxu0 0
        %3032 = vmatprep.subr.bf16.mxu0 0
        %3033 = vmatpush2.bf16.msra.mxu0 0
        %3034 = vmatprep.subr.bf16.mxu0 0
        %3035 = vmatpush2.bf16.msra.mxu0 0
        %3036 = vmatprep.mubr.bf16.mxu0 0
        %3037 = vmatmul.mubr.bf16.gmra.mxu0 %v3002
        %v3038 = vpop.f32.mrf.mxu0
        %v3039 = vadd.f32 0.0, %v3038
        %v3040 = vpop.f32.mrf.mxu0
        %v3041 = vadd.f32 0.0, %v3040
        %v3042 = vpop.f32.mrf.mxu0
        %v3043 = vpop.f32.mrf.mxu0
        %3044 = vdwg.mxu0
        %3045 = vmatprep.subr.bf16.mxu0 0
        %3046 = vmatpush1.bf16.msra.mxu0 0
        %3047 = vmatprep.subr.bf16.mxu0 0
        %3048 = vmatpush1.bf16.msra.mxu0 0
        %3049 = vmatprep.subr.bf16.mxu0 0
        %3050 = vmatpush1.bf16.msra.mxu0 0
        %3051 = vmatprep.subr.bf16.mxu0 0
        %3052 = vmatpush1.bf16.msra.mxu0 0
        %3053 = vmatprep.subr.bf16.mxu0 0
        %3054 = vmatpush1.bf16.msra.mxu0 0
        %3055 = vmatprep.subr.bf16.mxu0 0
        %3056 = vmatpush1.bf16.msra.mxu0 0
        %3057 = vmatprep.subr.bf16.mxu0 0
        %3058 = vmatpush1.bf16.msra.mxu0 0
        %3059 = vmatprep.subr.bf16.mxu0 %v2988
        %3060 = vmatpush1.bf16.msra.mxu0 %v2987
        %3061 = vmatprep.subr.bf16.mxu0 0
        %3062 = vmatpush2.bf16.msra.mxu0 0
        %3063 = vmatprep.subr.bf16.mxu0 0
        %3064 = vmatpush2.bf16.msra.mxu0 0
        %3065 = vmatprep.subr.bf16.mxu0 0
        %3066 = vmatpush2.bf16.msra.mxu0 0
        %3067 = vmatprep.subr.bf16.mxu0 0
        %3068 = vmatpush2.bf16.msra.mxu0 0
        %3069 = vmatprep.subr.bf16.mxu0 0
        %3070 = vmatpush2.bf16.msra.mxu0 0
        %3071 = vmatprep.subr.bf16.mxu0 0
        %3072 = vmatpush2.bf16.msra.mxu0 0
        %3073 = vmatprep.subr.bf16.mxu0 0
        %3074 = vmatpush2.bf16.msra.mxu0 0
        %3075 = vmatprep.subr.bf16.mxu0 0
        %3076 = vmatpush2.bf16.msra.mxu0 0
        %3077 = vmatprep.mubr.bf16.mxu0 0
        %3078 = vmatmul.mubr.bf16.gmra.mxu0 %v3002
        %v3079 = vpop.f32.mrf.mxu0
        %v3080 = vadd.f32 0.0, %v3079
        %v3081 = vpop.f32.mrf.mxu0
        %v3082 = vadd.f32 0.0, %v3081
        %v3083 = vpop.f32.mrf.mxu0
        %v3084 = vpop.f32.mrf.mxu0
        %3085 = vdwg.mxu0
        %3086 = vmatprep.subr.bf16.mxu0 0
        %3087 = vmatpush1.bf16.msra.mxu0 0
        %3088 = vmatprep.subr.bf16.mxu0 0
        %3089 = vmatpush1.bf16.msra.mxu0 0
        %3090 = vmatprep.subr.bf16.mxu0 0
        %3091 = vmatpush1.bf16.msra.mxu0 0
        %3092 = vmatprep.subr.bf16.mxu0 0
        %3093 = vmatpush1.bf16.msra.mxu0 0
        %3094 = vmatprep.subr.bf16.mxu0 0
        %3095 = vmatpush1.bf16.msra.mxu0 0
        %3096 = vmatprep.subr.bf16.mxu0 0
        %3097 = vmatpush1.bf16.msra.mxu0 0
        %3098 = vmatprep.subr.bf16.mxu0 0
        %3099 = vmatpush1.bf16.msra.mxu0 0
        %3100 = vmatprep.subr.bf16.mxu0 %v2990
        %3101 = vmatpush1.bf16.msra.mxu0 %v2989
        %3102 = vmatprep.subr.bf16.mxu0 0
        %3103 = vmatpush2.bf16.msra.mxu0 0
        %3104 = vmatprep.subr.bf16.mxu0 0
        %3105 = vmatpush2.bf16.msra.mxu0 0
        %3106 = vmatprep.subr.bf16.mxu0 0
        %3107 = vmatpush2.bf16.msra.mxu0 0
        %3108 = vmatprep.subr.bf16.mxu0 0
        %3109 = vmatpush2.bf16.msra.mxu0 0
        %3110 = vmatprep.subr.bf16.mxu0 0
        %3111 = vmatpush2.bf16.msra.mxu0 0
        %3112 = vmatprep.subr.bf16.mxu0 0
        %3113 = vmatpush2.bf16.msra.mxu0 0
        %3114 = vmatprep.subr.bf16.mxu0 0
        %3115 = vmatpush2.bf16.msra.mxu0 0
        %3116 = vmatprep.subr.bf16.mxu0 0
        %3117 = vmatpush2.bf16.msra.mxu0 0
        %3118 = vmatprep.mubr.bf16.mxu0 0
        %3119 = vmatmul.mubr.bf16.gmra.mxu0 %v3002
        %v3120 = vpop.f32.mrf.mxu0
        %v3121 = vadd.f32 0.0, %v3120
        %v3122 = vpop.f32.mrf.mxu0
        %v3123 = vadd.f32 0.0, %v3122
        %v3124 = vpop.f32.mrf.mxu0
        %v3125 = vpop.f32.mrf.mxu0
        %3126 = vdwg.mxu0
        %3127 = vmatprep.subr.bf16.mxu0 0
        %3128 = vmatpush1.bf16.msra.mxu0 0
        %3129 = vmatprep.subr.bf16.mxu0 0
        %3130 = vmatpush1.bf16.msra.mxu0 0
        %3131 = vmatprep.subr.bf16.mxu0 0
        %3132 = vmatpush1.bf16.msra.mxu0 0
        %3133 = vmatprep.subr.bf16.mxu0 0
        %3134 = vmatpush1.bf16.msra.mxu0 0
        %3135 = vmatprep.subr.bf16.mxu0 0
        %3136 = vmatpush1.bf16.msra.mxu0 0
        %3137 = vmatprep.subr.bf16.mxu0 0
        %3138 = vmatpush1.bf16.msra.mxu0 0
        %3139 = vmatprep.subr.bf16.mxu0 0
        %3140 = vmatpush1.bf16.msra.mxu0 0
        %3141 = vmatprep.subr.bf16.mxu0 %v2992
        %3142 = vmatpush1.bf16.msra.mxu0 %v2991
        %3143 = vmatprep.subr.bf16.mxu0 0
        %3144 = vmatpush2.bf16.msra.mxu0 0
        %3145 = vmatprep.subr.bf16.mxu0 0
        %3146 = vmatpush2.bf16.msra.mxu0 0
        %3147 = vmatprep.subr.bf16.mxu0 0
        %3148 = vmatpush2.bf16.msra.mxu0 0
        %3149 = vmatprep.subr.bf16.mxu0 0
        %3150 = vmatpush2.bf16.msra.mxu0 0
        %3151 = vmatprep.subr.bf16.mxu0 0
        %3152 = vmatpush2.bf16.msra.mxu0 0
        %3153 = vmatprep.subr.bf16.mxu0 0
        %3154 = vmatpush2.bf16.msra.mxu0 0
        %3155 = vmatprep.subr.bf16.mxu0 0
        %3156 = vmatpush2.bf16.msra.mxu0 0
        %3157 = vmatprep.subr.bf16.mxu0 0
        %3158 = vmatpush2.bf16.msra.mxu0 0
        %3159 = vmatprep.mubr.bf16.mxu0 0
        %3160 = vmatmul.mubr.bf16.gmra.mxu0 %v3002
        %v3161 = vpop.f32.mrf.mxu0
        %v3162 = vadd.f32 0.0, %v3161
        %v3163 = vpop.f32.mrf.mxu0
        %v3164 = vadd.f32 0.0, %v3163
        %v3165 = vpop.f32.mrf.mxu0
        %v3166 = vpop.f32.mrf.mxu0
        %3167 = vdwg.mxu0
        %v3168 = vadd.f32 %v2935, %v3039
        %v3169 = vadd.f32 %v2936, %v3041
        %v3170 = vadd.f32 %v2937, %v3080
        %v3171 = vadd.f32 %v2938, %v3082
        %v3172 = vadd.f32 %v2939, %v3121
        %v3173 = vadd.f32 %v2940, %v3123
        %v3174 = vadd.f32 %v2941, %v3162
        %v3175 = vadd.f32 %v2942, %v3164
        %s3176 = scalar_lea.vmem [#allocation2], 8
        %v3177 = vld [vmem:[%s3176] ss:$16 sm:$0x3]
        %v3178 = vld [vmem:[%s3176] ss:$16 sm:$0xc]
        %v3179 = vor.u32 %v3177, %v3178
        %v3180 = vld [vmem:[%s3176] ss:$16 sm:$0x30]
        %v3181 = vor.u32 %v3179, %v3180
        %v3182 = vld [vmem:[%s3176] ss:$16 sm:$0xc0]
        %v3183 = vor.u32 %v3181, %v3182
        %v3184 = vpack.c.bf16 %v3183, %v3183
        %s3185 = scalar_lea.vmem %s4, 512
        %v3186 = vld [vmem:[%s3185] sm:$0xff]
        %v3187 = vld [vmem:[%s3185 + $0x8] sm:$0xff]
        %v3188 = vld [vmem:[%s3185 + $0x10] sm:$0xff]
        %v3189 = vld [vmem:[%s3185 + $0x18] sm:$0xff]
        %v3190 = vld [vmem:[%s3185 + $0x20] sm:$0xff]
        %v3191 = vld [vmem:[%s3185 + $0x28] sm:$0xff]
        %v3192 = vld [vmem:[%s3185 + $0x30] sm:$0xff]
        %v3193 = vld [vmem:[%s3185 + $0x38] sm:$0xff]
        %v3202 = vunpack.c.l.b16 %v3186
        %v3203 = vunpack.c.h.b16 %v3186
        %v3204 = vunpack.c.l.b16 %v3187
        %v3205 = vunpack.c.h.b16 %v3187
        %v3206 = vunpack.c.l.b16 %v3188
        %v3207 = vunpack.c.h.b16 %v3188
        %v3208 = vunpack.c.l.b16 %v3189
        %v3209 = vunpack.c.h.b16 %v3189
        %v3210 = vunpack.c.l.b16 %v3190
        %v3211 = vunpack.c.h.b16 %v3190
        %v3212 = vunpack.c.l.b16 %v3191
        %v3213 = vunpack.c.h.b16 %v3191
        %v3214 = vunpack.c.l.b16 %v3192
        %v3215 = vunpack.c.h.b16 %v3192
        %v3216 = vunpack.c.l.b16 %v3193
        %v3217 = vunpack.c.h.b16 %v3193
        %v3218 = vpack.c.b16 %v3210, %v3202
        %v3219 = vpack.c.b16 %v3211, %v3203
        %v3220 = vpack.c.b16 %v3212, %v3204
        %v3221 = vpack.c.b16 %v3213, %v3205
        %v3222 = vpack.c.b16 %v3214, %v3206
        %v3223 = vpack.c.b16 %v3215, %v3207
        %v3224 = vpack.c.b16 %v3216, %v3208
        %v3225 = vpack.c.b16 %v3217, %v3209
        %v3235 = vsel %vm634, %v3184, 0
        %3237 = vmatprep.subr.bf16.mxu0 0
        %3238 = vmatpush1.bf16.msra.mxu0 0
        %3239 = vmatprep.subr.bf16.mxu0 0
        %3240 = vmatpush1.bf16.msra.mxu0 0
        %3241 = vmatprep.subr.bf16.mxu0 0
        %3242 = vmatpush1.bf16.msra.mxu0 0
        %3243 = vmatprep.subr.bf16.mxu0 0
        %3244 = vmatpush1.bf16.msra.mxu0 0
        %3245 = vmatprep.subr.bf16.mxu0 0
        %3246 = vmatpush1.bf16.msra.mxu0 0
        %3247 = vmatprep.subr.bf16.mxu0 0
        %3248 = vmatpush1.bf16.msra.mxu0 0
        %3249 = vmatprep.subr.bf16.mxu0 0
        %3250 = vmatpush1.bf16.msra.mxu0 0
        %3251 = vmatprep.subr.bf16.mxu0 %v3219
        %3252 = vmatpush1.bf16.msra.mxu0 %v3218
        %3253 = vmatprep.subr.bf16.mxu0 0
        %3254 = vmatpush2.bf16.msra.mxu0 0
        %3255 = vmatprep.subr.bf16.mxu0 0
        %3256 = vmatpush2.bf16.msra.mxu0 0
        %3257 = vmatprep.subr.bf16.mxu0 0
        %3258 = vmatpush2.bf16.msra.mxu0 0
        %3259 = vmatprep.subr.bf16.mxu0 0
        %3260 = vmatpush2.bf16.msra.mxu0 0
        %3261 = vmatprep.subr.bf16.mxu0 0
        %3262 = vmatpush2.bf16.msra.mxu0 0
        %3263 = vmatprep.subr.bf16.mxu0 0
        %3264 = vmatpush2.bf16.msra.mxu0 0
        %3265 = vmatprep.subr.bf16.mxu0 0
        %3266 = vmatpush2.bf16.msra.mxu0 0
        %3267 = vmatprep.subr.bf16.mxu0 0
        %3268 = vmatpush2.bf16.msra.mxu0 0
        %3269 = vmatprep.mubr.bf16.mxu0 0
        %3270 = vmatmul.mubr.bf16.gmra.mxu0 %v3235
        %v3271 = vpop.f32.mrf.mxu0
        %v3272 = vadd.f32 0.0, %v3271
        %v3273 = vpop.f32.mrf.mxu0
        %v3274 = vadd.f32 0.0, %v3273
        %v3275 = vpop.f32.mrf.mxu0
        %v3276 = vpop.f32.mrf.mxu0
        %3277 = vdwg.mxu0
        %3278 = vmatprep.subr.bf16.mxu0 0
        %3279 = vmatpush1.bf16.msra.mxu0 0
        %3280 = vmatprep.subr.bf16.mxu0 0
        %3281 = vmatpush1.bf16.msra.mxu0 0
        %3282 = vmatprep.subr.bf16.mxu0 0
        %3283 = vmatpush1.bf16.msra.mxu0 0
        %3284 = vmatprep.subr.bf16.mxu0 0
        %3285 = vmatpush1.bf16.msra.mxu0 0
        %3286 = vmatprep.subr.bf16.mxu0 0
        %3287 = vmatpush1.bf16.msra.mxu0 0
        %3288 = vmatprep.subr.bf16.mxu0 0
        %3289 = vmatpush1.bf16.msra.mxu0 0
        %3290 = vmatprep.subr.bf16.mxu0 0
        %3291 = vmatpush1.bf16.msra.mxu0 0
        %3292 = vmatprep.subr.bf16.mxu0 %v3221
        %3293 = vmatpush1.bf16.msra.mxu0 %v3220
        %3294 = vmatprep.subr.bf16.mxu0 0
        %3295 = vmatpush2.bf16.msra.mxu0 0
        %3296 = vmatprep.subr.bf16.mxu0 0
        %3297 = vmatpush2.bf16.msra.mxu0 0
        %3298 = vmatprep.subr.bf16.mxu0 0
        %3299 = vmatpush2.bf16.msra.mxu0 0
        %3300 = vmatprep.subr.bf16.mxu0 0
        %3301 = vmatpush2.bf16.msra.mxu0 0
        %3302 = vmatprep.subr.bf16.mxu0 0
        %3303 = vmatpush2.bf16.msra.mxu0 0
        %3304 = vmatprep.subr.bf16.mxu0 0
        %3305 = vmatpush2.bf16.msra.mxu0 0
        %3306 = vmatprep.subr.bf16.mxu0 0
        %3307 = vmatpush2.bf16.msra.mxu0 0
        %3308 = vmatprep.subr.bf16.mxu0 0
        %3309 = vmatpush2.bf16.msra.mxu0 0
        %3310 = vmatprep.mubr.bf16.mxu0 0
        %3311 = vmatmul.mubr.bf16.gmra.mxu0 %v3235
        %v3312 = vpop.f32.mrf.mxu0
        %v3313 = vadd.f32 0.0, %v3312
        %v3314 = vpop.f32.mrf.mxu0
        %v3315 = vadd.f32 0.0, %v3314
        %v3316 = vpop.f32.mrf.mxu0
        %v3317 = vpop.f32.mrf.mxu0
        %3318 = vdwg.mxu0
        %3319 = vmatprep.subr.bf16.mxu0 0
        %3320 = vmatpush1.bf16.msra.mxu0 0
        %3321 = vmatprep.subr.bf16.mxu0 0
        %3322 = vmatpush1.bf16.msra.mxu0 0
        %3323 = vmatprep.subr.bf16.mxu0 0
        %3324 = vmatpush1.bf16.msra.mxu0 0
        %3325 = vmatprep.subr.bf16.mxu0 0
        %3326 = vmatpush1.bf16.msra.mxu0 0
        %3327 = vmatprep.subr.bf16.mxu0 0
        %3328 = vmatpush1.bf16.msra.mxu0 0
        %3329 = vmatprep.subr.bf16.mxu0 0
        %3330 = vmatpush1.bf16.msra.mxu0 0
        %3331 = vmatprep.subr.bf16.mxu0 0
        %3332 = vmatpush1.bf16.msra.mxu0 0
        %3333 = vmatprep.subr.bf16.mxu0 %v3223
        %3334 = vmatpush1.bf16.msra.mxu0 %v3222
        %3335 = vmatprep.subr.bf16.mxu0 0
        %3336 = vmatpush2.bf16.msra.mxu0 0
        %3337 = vmatprep.subr.bf16.mxu0 0
        %3338 = vmatpush2.bf16.msra.mxu0 0
        %3339 = vmatprep.subr.bf16.mxu0 0
        %3340 = vmatpush2.bf16.msra.mxu0 0
        %3341 = vmatprep.subr.bf16.mxu0 0
        %3342 = vmatpush2.bf16.msra.mxu0 0
        %3343 = vmatprep.subr.bf16.mxu0 0
        %3344 = vmatpush2.bf16.msra.mxu0 0
        %3345 = vmatprep.subr.bf16.mxu0 0
        %3346 = vmatpush2.bf16.msra.mxu0 0
        %3347 = vmatprep.subr.bf16.mxu0 0
        %3348 = vmatpush2.bf16.msra.mxu0 0
        %3349 = vmatprep.subr.bf16.mxu0 0
        %3350 = vmatpush2.bf16.msra.mxu0 0
        %3351 = vmatprep.mubr.bf16.mxu0 0
        %3352 = vmatmul.mubr.bf16.gmra.mxu0 %v3235
        %v3353 = vpop.f32.mrf.mxu0
        %v3354 = vadd.f32 0.0, %v3353
        %v3355 = vpop.f32.mrf.mxu0
        %v3356 = vadd.f32 0.0, %v3355
        %v3357 = vpop.f32.mrf.mxu0
        %v3358 = vpop.f32.mrf.mxu0
        %3359 = vdwg.mxu0
        %3360 = vmatprep.subr.bf16.mxu0 0
        %3361 = vmatpush1.bf16.msra.mxu0 0
        %3362 = vmatprep.subr.bf16.mxu0 0
        %3363 = vmatpush1.bf16.msra.mxu0 0
        %3364 = vmatprep.subr.bf16.mxu0 0
        %3365 = vmatpush1.bf16.msra.mxu0 0
        %3366 = vmatprep.subr.bf16.mxu0 0
        %3367 = vmatpush1.bf16.msra.mxu0 0
        %3368 = vmatprep.subr.bf16.mxu0 0
        %3369 = vmatpush1.bf16.msra.mxu0 0
        %3370 = vmatprep.subr.bf16.mxu0 0
        %3371 = vmatpush1.bf16.msra.mxu0 0
        %3372 = vmatprep.subr.bf16.mxu0 0
        %3373 = vmatpush1.bf16.msra.mxu0 0
        %3374 = vmatprep.subr.bf16.mxu0 %v3225
        %3375 = vmatpush1.bf16.msra.mxu0 %v3224
        %3376 = vmatprep.subr.bf16.mxu0 0
        %3377 = vmatpush2.bf16.msra.mxu0 0
        %3378 = vmatprep.subr.bf16.mxu0 0
        %3379 = vmatpush2.bf16.msra.mxu0 0
        %3380 = vmatprep.subr.bf16.mxu0 0
        %3381 = vmatpush2.bf16.msra.mxu0 0
        %3382 = vmatprep.subr.bf16.mxu0 0
        %3383 = vmatpush2.bf16.msra.mxu0 0
        %3384 = vmatprep.subr.bf16.mxu0 0
        %3385 = vmatpush2.bf16.msra.mxu0 0
        %3386 = vmatprep.subr.bf16.mxu0 0
        %3387 = vmatpush2.bf16.msra.mxu0 0
        %3388 = vmatprep.subr.bf16.mxu0 0
        %3389 = vmatpush2.bf16.msra.mxu0 0
        %3390 = vmatprep.subr.bf16.mxu0 0
        %3391 = vmatpush2.bf16.msra.mxu0 0
        %3392 = vmatprep.mubr.bf16.mxu0 0
        %3393 = vmatmul.mubr.bf16.gmra.mxu0 %v3235
        %v3394 = vpop.f32.mrf.mxu0
        %v3395 = vadd.f32 0.0, %v3394
        %v3396 = vpop.f32.mrf.mxu0
        %v3397 = vadd.f32 0.0, %v3396
        %v3398 = vpop.f32.mrf.mxu0
        %v3399 = vpop.f32.mrf.mxu0
        %3400 = vdwg.mxu0
        %v3401 = vadd.f32 %v3168, %v3272
        %v3402 = vadd.f32 %v3169, %v3274
        %v3403 = vadd.f32 %v3170, %v3313
        %v3404 = vadd.f32 %v3171, %v3315
        %v3405 = vadd.f32 %v3172, %v3354
        %v3406 = vadd.f32 %v3173, %v3356
        %v3407 = vadd.f32 %v3174, %v3395
        %v3408 = vadd.f32 %v3175, %v3397
        %s3409 = scalar_lea.vmem [#allocation2], 9
        %v3410 = vld [vmem:[%s3409] ss:$16 sm:$0x3]
        %v3411 = vld [vmem:[%s3409] ss:$16 sm:$0xc]
        %v3412 = vor.u32 %v3410, %v3411
        %v3413 = vld [vmem:[%s3409] ss:$16 sm:$0x30]
        %v3414 = vor.u32 %v3412, %v3413
        %v3415 = vld [vmem:[%s3409] ss:$16 sm:$0xc0]
        %v3416 = vor.u32 %v3414, %v3415
        %v3417 = vpack.c.bf16 %v3416, %v3416
        %s3418 = scalar_lea.vmem %s4, 576
        %v3419 = vld [vmem:[%s3418] sm:$0xff]
        %v3420 = vld [vmem:[%s3418 + $0x8] sm:$0xff]
        %v3421 = vld [vmem:[%s3418 + $0x10] sm:$0xff]
        %v3422 = vld [vmem:[%s3418 + $0x18] sm:$0xff]
        %v3423 = vld [vmem:[%s3418 + $0x20] sm:$0xff]
        %v3424 = vld [vmem:[%s3418 + $0x28] sm:$0xff]
        %v3425 = vld [vmem:[%s3418 + $0x30] sm:$0xff]
        %v3426 = vld [vmem:[%s3418 + $0x38] sm:$0xff]
        %v3435 = vunpack.c.l.b16 %v3419
        %v3436 = vunpack.c.h.b16 %v3419
        %v3437 = vunpack.c.l.b16 %v3420
        %v3438 = vunpack.c.h.b16 %v3420
        %v3439 = vunpack.c.l.b16 %v3421
        %v3440 = vunpack.c.h.b16 %v3421
        %v3441 = vunpack.c.l.b16 %v3422
        %v3442 = vunpack.c.h.b16 %v3422
        %v3443 = vunpack.c.l.b16 %v3423
        %v3444 = vunpack.c.h.b16 %v3423
        %v3445 = vunpack.c.l.b16 %v3424
        %v3446 = vunpack.c.h.b16 %v3424
        %v3447 = vunpack.c.l.b16 %v3425
        %v3448 = vunpack.c.h.b16 %v3425
        %v3449 = vunpack.c.l.b16 %v3426
        %v3450 = vunpack.c.h.b16 %v3426
        %v3451 = vpack.c.b16 %v3443, %v3435
        %v3452 = vpack.c.b16 %v3444, %v3436
        %v3453 = vpack.c.b16 %v3445, %v3437
        %v3454 = vpack.c.b16 %v3446, %v3438
        %v3455 = vpack.c.b16 %v3447, %v3439
        %v3456 = vpack.c.b16 %v3448, %v3440
        %v3457 = vpack.c.b16 %v3449, %v3441
        %v3458 = vpack.c.b16 %v3450, %v3442
        %v3468 = vsel %vm634, %v3417, 0
        %3470 = vmatprep.subr.bf16.mxu0 0
        %3471 = vmatpush1.bf16.msra.mxu0 0
        %3472 = vmatprep.subr.bf16.mxu0 0
        %3473 = vmatpush1.bf16.msra.mxu0 0
        %3474 = vmatprep.subr.bf16.mxu0 0
        %3475 = vmatpush1.bf16.msra.mxu0 0
        %3476 = vmatprep.subr.bf16.mxu0 0
        %3477 = vmatpush1.bf16.msra.mxu0 0
        %3478 = vmatprep.subr.bf16.mxu0 0
        %3479 = vmatpush1.bf16.msra.mxu0 0
        %3480 = vmatprep.subr.bf16.mxu0 0
        %3481 = vmatpush1.bf16.msra.mxu0 0
        %3482 = vmatprep.subr.bf16.mxu0 0
        %3483 = vmatpush1.bf16.msra.mxu0 0
        %3484 = vmatprep.subr.bf16.mxu0 %v3452
        %3485 = vmatpush1.bf16.msra.mxu0 %v3451
        %3486 = vmatprep.subr.bf16.mxu0 0
        %3487 = vmatpush2.bf16.msra.mxu0 0
        %3488 = vmatprep.subr.bf16.mxu0 0
        %3489 = vmatpush2.bf16.msra.mxu0 0
        %3490 = vmatprep.subr.bf16.mxu0 0
        %3491 = vmatpush2.bf16.msra.mxu0 0
        %3492 = vmatprep.subr.bf16.mxu0 0
        %3493 = vmatpush2.bf16.msra.mxu0 0
        %3494 = vmatprep.subr.bf16.mxu0 0
        %3495 = vmatpush2.bf16.msra.mxu0 0
        %3496 = vmatprep.subr.bf16.mxu0 0
        %3497 = vmatpush2.bf16.msra.mxu0 0
        %3498 = vmatprep.subr.bf16.mxu0 0
        %3499 = vmatpush2.bf16.msra.mxu0 0
        %3500 = vmatprep.subr.bf16.mxu0 0
        %3501 = vmatpush2.bf16.msra.mxu0 0
        %3502 = vmatprep.mubr.bf16.mxu0 0
        %3503 = vmatmul.mubr.bf16.gmra.mxu0 %v3468
        %v3504 = vpop.f32.mrf.mxu0
        %v3505 = vadd.f32 0.0, %v3504
        %v3506 = vpop.f32.mrf.mxu0
        %v3507 = vadd.f32 0.0, %v3506
        %v3508 = vpop.f32.mrf.mxu0
        %v3509 = vpop.f32.mrf.mxu0
        %3510 = vdwg.mxu0
        %3511 = vmatprep.subr.bf16.mxu0 0
        %3512 = vmatpush1.bf16.msra.mxu0 0
        %3513 = vmatprep.subr.bf16.mxu0 0
        %3514 = vmatpush1.bf16.msra.mxu0 0
        %3515 = vmatprep.subr.bf16.mxu0 0
        %3516 = vmatpush1.bf16.msra.mxu0 0
        %3517 = vmatprep.subr.bf16.mxu0 0
        %3518 = vmatpush1.bf16.msra.mxu0 0
        %3519 = vmatprep.subr.bf16.mxu0 0
        %3520 = vmatpush1.bf16.msra.mxu0 0
        %3521 = vmatprep.subr.bf16.mxu0 0
        %3522 = vmatpush1.bf16.msra.mxu0 0
        %3523 = vmatprep.subr.bf16.mxu0 0
        %3524 = vmatpush1.bf16.msra.mxu0 0
        %3525 = vmatprep.subr.bf16.mxu0 %v3454
        %3526 = vmatpush1.bf16.msra.mxu0 %v3453
        %3527 = vmatprep.subr.bf16.mxu0 0
        %3528 = vmatpush2.bf16.msra.mxu0 0
        %3529 = vmatprep.subr.bf16.mxu0 0
        %3530 = vmatpush2.bf16.msra.mxu0 0
        %3531 = vmatprep.subr.bf16.mxu0 0
        %3532 = vmatpush2.bf16.msra.mxu0 0
        %3533 = vmatprep.subr.bf16.mxu0 0
        %3534 = vmatpush2.bf16.msra.mxu0 0
        %3535 = vmatprep.subr.bf16.mxu0 0
        %3536 = vmatpush2.bf16.msra.mxu0 0
        %3537 = vmatprep.subr.bf16.mxu0 0
        %3538 = vmatpush2.bf16.msra.mxu0 0
        %3539 = vmatprep.subr.bf16.mxu0 0
        %3540 = vmatpush2.bf16.msra.mxu0 0
        %3541 = vmatprep.subr.bf16.mxu0 0
        %3542 = vmatpush2.bf16.msra.mxu0 0
        %3543 = vmatprep.mubr.bf16.mxu0 0
        %3544 = vmatmul.mubr.bf16.gmra.mxu0 %v3468
        %v3545 = vpop.f32.mrf.mxu0
        %v3546 = vadd.f32 0.0, %v3545
        %v3547 = vpop.f32.mrf.mxu0
        %v3548 = vadd.f32 0.0, %v3547
        %v3549 = vpop.f32.mrf.mxu0
        %v3550 = vpop.f32.mrf.mxu0
        %3551 = vdwg.mxu0
        %3552 = vmatprep.subr.bf16.mxu0 0
        %3553 = vmatpush1.bf16.msra.mxu0 0
        %3554 = vmatprep.subr.bf16.mxu0 0
        %3555 = vmatpush1.bf16.msra.mxu0 0
        %3556 = vmatprep.subr.bf16.mxu0 0
        %3557 = vmatpush1.bf16.msra.mxu0 0
        %3558 = vmatprep.subr.bf16.mxu0 0
        %3559 = vmatpush1.bf16.msra.mxu0 0
        %3560 = vmatprep.subr.bf16.mxu0 0
        %3561 = vmatpush1.bf16.msra.mxu0 0
        %3562 = vmatprep.subr.bf16.mxu0 0
        %3563 = vmatpush1.bf16.msra.mxu0 0
        %3564 = vmatprep.subr.bf16.mxu0 0
        %3565 = vmatpush1.bf16.msra.mxu0 0
        %3566 = vmatprep.subr.bf16.mxu0 %v3456
        %3567 = vmatpush1.bf16.msra.mxu0 %v3455
        %3568 = vmatprep.subr.bf16.mxu0 0
        %3569 = vmatpush2.bf16.msra.mxu0 0
        %3570 = vmatprep.subr.bf16.mxu0 0
        %3571 = vmatpush2.bf16.msra.mxu0 0
        %3572 = vmatprep.subr.bf16.mxu0 0
        %3573 = vmatpush2.bf16.msra.mxu0 0
        %3574 = vmatprep.subr.bf16.mxu0 0
        %3575 = vmatpush2.bf16.msra.mxu0 0
        %3576 = vmatprep.subr.bf16.mxu0 0
        %3577 = vmatpush2.bf16.msra.mxu0 0
        %3578 = vmatprep.subr.bf16.mxu0 0
        %3579 = vmatpush2.bf16.msra.mxu0 0
        %3580 = vmatprep.subr.bf16.mxu0 0
        %3581 = vmatpush2.bf16.msra.mxu0 0
        %3582 = vmatprep.subr.bf16.mxu0 0
        %3583 = vmatpush2.bf16.msra.mxu0 0
        %3584 = vmatprep.mubr.bf16.mxu0 0
        %3585 = vmatmul.mubr.bf16.gmra.mxu0 %v3468
        %v3586 = vpop.f32.mrf.mxu0
        %v3587 = vadd.f32 0.0, %v3586
        %v3588 = vpop.f32.mrf.mxu0
        %v3589 = vadd.f32 0.0, %v3588
        %v3590 = vpop.f32.mrf.mxu0
        %v3591 = vpop.f32.mrf.mxu0
        %3592 = vdwg.mxu0
        %3593 = vmatprep.subr.bf16.mxu0 0
        %3594 = vmatpush1.bf16.msra.mxu0 0
        %3595 = vmatprep.subr.bf16.mxu0 0
        %3596 = vmatpush1.bf16.msra.mxu0 0
        %3597 = vmatprep.subr.bf16.mxu0 0
        %3598 = vmatpush1.bf16.msra.mxu0 0
        %3599 = vmatprep.subr.bf16.mxu0 0
        %3600 = vmatpush1.bf16.msra.mxu0 0
        %3601 = vmatprep.subr.bf16.mxu0 0
        %3602 = vmatpush1.bf16.msra.mxu0 0
        %3603 = vmatprep.subr.bf16.mxu0 0
        %3604 = vmatpush1.bf16.msra.mxu0 0
        %3605 = vmatprep.subr.bf16.mxu0 0
        %3606 = vmatpush1.bf16.msra.mxu0 0
        %3607 = vmatprep.subr.bf16.mxu0 %v3458
        %3608 = vmatpush1.bf16.msra.mxu0 %v3457
        %3609 = vmatprep.subr.bf16.mxu0 0
        %3610 = vmatpush2.bf16.msra.mxu0 0
        %3611 = vmatprep.subr.bf16.mxu0 0
        %3612 = vmatpush2.bf16.msra.mxu0 0
        %3613 = vmatprep.subr.bf16.mxu0 0
        %3614 = vmatpush2.bf16.msra.mxu0 0
        %3615 = vmatprep.subr.bf16.mxu0 0
        %3616 = vmatpush2.bf16.msra.mxu0 0
        %3617 = vmatprep.subr.bf16.mxu0 0
        %3618 = vmatpush2.bf16.msra.mxu0 0
        %3619 = vmatprep.subr.bf16.mxu0 0
        %3620 = vmatpush2.bf16.msra.mxu0 0
        %3621 = vmatprep.subr.bf16.mxu0 0
        %3622 = vmatpush2.bf16.msra.mxu0 0
        %3623 = vmatprep.subr.bf16.mxu0 0
        %3624 = vmatpush2.bf16.msra.mxu0 0
        %3625 = vmatprep.mubr.bf16.mxu0 0
        %3626 = vmatmul.mubr.bf16.gmra.mxu0 %v3468
        %v3627 = vpop.f32.mrf.mxu0
        %v3628 = vadd.f32 0.0, %v3627
        %v3629 = vpop.f32.mrf.mxu0
        %v3630 = vadd.f32 0.0, %v3629
        %v3631 = vpop.f32.mrf.mxu0
        %v3632 = vpop.f32.mrf.mxu0
        %3633 = vdwg.mxu0
        %v3634 = vadd.f32 %v3401, %v3505
        %v3635 = vadd.f32 %v3402, %v3507
        %v3636 = vadd.f32 %v3403, %v3546
        %v3637 = vadd.f32 %v3404, %v3548
        %v3638 = vadd.f32 %v3405, %v3587
        %v3639 = vadd.f32 %v3406, %v3589
        %v3640 = vadd.f32 %v3407, %v3628
        %v3641 = vadd.f32 %v3408, %v3630
        %s3642 = scalar_lea.vmem [#allocation2], 10
        %v3643 = vld [vmem:[%s3642] ss:$16 sm:$0x3]
        %v3644 = vld [vmem:[%s3642] ss:$16 sm:$0xc]
        %v3645 = vor.u32 %v3643, %v3644
        %v3646 = vld [vmem:[%s3642] ss:$16 sm:$0x30]
        %v3647 = vor.u32 %v3645, %v3646
        %v3648 = vld [vmem:[%s3642] ss:$16 sm:$0xc0]
        %v3649 = vor.u32 %v3647, %v3648
        %v3650 = vpack.c.bf16 %v3649, %v3649
        %s3651 = scalar_lea.vmem %s4, 640
        %v3652 = vld [vmem:[%s3651] sm:$0xff]
        %v3653 = vld [vmem:[%s3651 + $0x8] sm:$0xff]
        %v3654 = vld [vmem:[%s3651 + $0x10] sm:$0xff]
        %v3655 = vld [vmem:[%s3651 + $0x18] sm:$0xff]
        %v3656 = vld [vmem:[%s3651 + $0x20] sm:$0xff]
        %v3657 = vld [vmem:[%s3651 + $0x28] sm:$0xff]
        %v3658 = vld [vmem:[%s3651 + $0x30] sm:$0xff]
        %v3659 = vld [vmem:[%s3651 + $0x38] sm:$0xff]
        %v3668 = vunpack.c.l.b16 %v3652
        %v3669 = vunpack.c.h.b16 %v3652
        %v3670 = vunpack.c.l.b16 %v3653
        %v3671 = vunpack.c.h.b16 %v3653
        %v3672 = vunpack.c.l.b16 %v3654
        %v3673 = vunpack.c.h.b16 %v3654
        %v3674 = vunpack.c.l.b16 %v3655
        %v3675 = vunpack.c.h.b16 %v3655
        %v3676 = vunpack.c.l.b16 %v3656
        %v3677 = vunpack.c.h.b16 %v3656
        %v3678 = vunpack.c.l.b16 %v3657
        %v3679 = vunpack.c.h.b16 %v3657
        %v3680 = vunpack.c.l.b16 %v3658
        %v3681 = vunpack.c.h.b16 %v3658
        %v3682 = vunpack.c.l.b16 %v3659
        %v3683 = vunpack.c.h.b16 %v3659
        %v3684 = vpack.c.b16 %v3676, %v3668
        %v3685 = vpack.c.b16 %v3677, %v3669
        %v3686 = vpack.c.b16 %v3678, %v3670
        %v3687 = vpack.c.b16 %v3679, %v3671
        %v3688 = vpack.c.b16 %v3680, %v3672
        %v3689 = vpack.c.b16 %v3681, %v3673
        %v3690 = vpack.c.b16 %v3682, %v3674
        %v3691 = vpack.c.b16 %v3683, %v3675
        %v3701 = vsel %vm634, %v3650, 0
        %3703 = vmatprep.subr.bf16.mxu0 0
        %3704 = vmatpush1.bf16.msra.mxu0 0
        %3705 = vmatprep.subr.bf16.mxu0 0
        %3706 = vmatpush1.bf16.msra.mxu0 0
        %3707 = vmatprep.subr.bf16.mxu0 0
        %3708 = vmatpush1.bf16.msra.mxu0 0
        %3709 = vmatprep.subr.bf16.mxu0 0
        %3710 = vmatpush1.bf16.msra.mxu0 0
        %3711 = vmatprep.subr.bf16.mxu0 0
        %3712 = vmatpush1.bf16.msra.mxu0 0
        %3713 = vmatprep.subr.bf16.mxu0 0
        %3714 = vmatpush1.bf16.msra.mxu0 0
        %3715 = vmatprep.subr.bf16.mxu0 0
        %3716 = vmatpush1.bf16.msra.mxu0 0
        %3717 = vmatprep.subr.bf16.mxu0 %v3685
        %3718 = vmatpush1.bf16.msra.mxu0 %v3684
        %3719 = vmatprep.subr.bf16.mxu0 0
        %3720 = vmatpush2.bf16.msra.mxu0 0
        %3721 = vmatprep.subr.bf16.mxu0 0
        %3722 = vmatpush2.bf16.msra.mxu0 0
        %3723 = vmatprep.subr.bf16.mxu0 0
        %3724 = vmatpush2.bf16.msra.mxu0 0
        %3725 = vmatprep.subr.bf16.mxu0 0
        %3726 = vmatpush2.bf16.msra.mxu0 0
        %3727 = vmatprep.subr.bf16.mxu0 0
        %3728 = vmatpush2.bf16.msra.mxu0 0
        %3729 = vmatprep.subr.bf16.mxu0 0
        %3730 = vmatpush2.bf16.msra.mxu0 0
        %3731 = vmatprep.subr.bf16.mxu0 0
        %3732 = vmatpush2.bf16.msra.mxu0 0
        %3733 = vmatprep.subr.bf16.mxu0 0
        %3734 = vmatpush2.bf16.msra.mxu0 0
        %3735 = vmatprep.mubr.bf16.mxu0 0
        %3736 = vmatmul.mubr.bf16.gmra.mxu0 %v3701
        %v3737 = vpop.f32.mrf.mxu0
        %v3738 = vadd.f32 0.0, %v3737
        %v3739 = vpop.f32.mrf.mxu0
        %v3740 = vadd.f32 0.0, %v3739
        %v3741 = vpop.f32.mrf.mxu0
        %v3742 = vpop.f32.mrf.mxu0
        %3743 = vdwg.mxu0
        %3744 = vmatprep.subr.bf16.mxu0 0
        %3745 = vmatpush1.bf16.msra.mxu0 0
        %3746 = vmatprep.subr.bf16.mxu0 0
        %3747 = vmatpush1.bf16.msra.mxu0 0
        %3748 = vmatprep.subr.bf16.mxu0 0
        %3749 = vmatpush1.bf16.msra.mxu0 0
        %3750 = vmatprep.subr.bf16.mxu0 0
        %3751 = vmatpush1.bf16.msra.mxu0 0
        %3752 = vmatprep.subr.bf16.mxu0 0
        %3753 = vmatpush1.bf16.msra.mxu0 0
        %3754 = vmatprep.subr.bf16.mxu0 0
        %3755 = vmatpush1.bf16.msra.mxu0 0
        %3756 = vmatprep.subr.bf16.mxu0 0
        %3757 = vmatpush1.bf16.msra.mxu0 0
        %3758 = vmatprep.subr.bf16.mxu0 %v3687
        %3759 = vmatpush1.bf16.msra.mxu0 %v3686
        %3760 = vmatprep.subr.bf16.mxu0 0
        %3761 = vmatpush2.bf16.msra.mxu0 0
        %3762 = vmatprep.subr.bf16.mxu0 0
        %3763 = vmatpush2.bf16.msra.mxu0 0
        %3764 = vmatprep.subr.bf16.mxu0 0
        %3765 = vmatpush2.bf16.msra.mxu0 0
        %3766 = vmatprep.subr.bf16.mxu0 0
        %3767 = vmatpush2.bf16.msra.mxu0 0
        %3768 = vmatprep.subr.bf16.mxu0 0
        %3769 = vmatpush2.bf16.msra.mxu0 0
        %3770 = vmatprep.subr.bf16.mxu0 0
        %3771 = vmatpush2.bf16.msra.mxu0 0
        %3772 = vmatprep.subr.bf16.mxu0 0
        %3773 = vmatpush2.bf16.msra.mxu0 0
        %3774 = vmatprep.subr.bf16.mxu0 0
        %3775 = vmatpush2.bf16.msra.mxu0 0
        %3776 = vmatprep.mubr.bf16.mxu0 0
        %3777 = vmatmul.mubr.bf16.gmra.mxu0 %v3701
        %v3778 = vpop.f32.mrf.mxu0
        %v3779 = vadd.f32 0.0, %v3778
        %v3780 = vpop.f32.mrf.mxu0
        %v3781 = vadd.f32 0.0, %v3780
        %v3782 = vpop.f32.mrf.mxu0
        %v3783 = vpop.f32.mrf.mxu0
        %3784 = vdwg.mxu0
        %3785 = vmatprep.subr.bf16.mxu0 0
        %3786 = vmatpush1.bf16.msra.mxu0 0
        %3787 = vmatprep.subr.bf16.mxu0 0
        %3788 = vmatpush1.bf16.msra.mxu0 0
        %3789 = vmatprep.subr.bf16.mxu0 0
        %3790 = vmatpush1.bf16.msra.mxu0 0
        %3791 = vmatprep.subr.bf16.mxu0 0
        %3792 = vmatpush1.bf16.msra.mxu0 0
        %3793 = vmatprep.subr.bf16.mxu0 0
        %3794 = vmatpush1.bf16.msra.mxu0 0
        %3795 = vmatprep.subr.bf16.mxu0 0
        %3796 = vmatpush1.bf16.msra.mxu0 0
        %3797 = vmatprep.subr.bf16.mxu0 0
        %3798 = vmatpush1.bf16.msra.mxu0 0
        %3799 = vmatprep.subr.bf16.mxu0 %v3689
        %3800 = vmatpush1.bf16.msra.mxu0 %v3688
        %3801 = vmatprep.subr.bf16.mxu0 0
        %3802 = vmatpush2.bf16.msra.mxu0 0
        %3803 = vmatprep.subr.bf16.mxu0 0
        %3804 = vmatpush2.bf16.msra.mxu0 0
        %3805 = vmatprep.subr.bf16.mxu0 0
        %3806 = vmatpush2.bf16.msra.mxu0 0
        %3807 = vmatprep.subr.bf16.mxu0 0
        %3808 = vmatpush2.bf16.msra.mxu0 0
        %3809 = vmatprep.subr.bf16.mxu0 0
        %3810 = vmatpush2.bf16.msra.mxu0 0
        %3811 = vmatprep.subr.bf16.mxu0 0
        %3812 = vmatpush2.bf16.msra.mxu0 0
        %3813 = vmatprep.subr.bf16.mxu0 0
        %3814 = vmatpush2.bf16.msra.mxu0 0
        %3815 = vmatprep.subr.bf16.mxu0 0
        %3816 = vmatpush2.bf16.msra.mxu0 0
        %3817 = vmatprep.mubr.bf16.mxu0 0
        %3818 = vmatmul.mubr.bf16.gmra.mxu0 %v3701
        %v3819 = vpop.f32.mrf.mxu0
        %v3820 = vadd.f32 0.0, %v3819
        %v3821 = vpop.f32.mrf.mxu0
        %v3822 = vadd.f32 0.0, %v3821
        %v3823 = vpop.f32.mrf.mxu0
        %v3824 = vpop.f32.mrf.mxu0
        %3825 = vdwg.mxu0
        %3826 = vmatprep.subr.bf16.mxu0 0
        %3827 = vmatpush1.bf16.msra.mxu0 0
        %3828 = vmatprep.subr.bf16.mxu0 0
        %3829 = vmatpush1.bf16.msra.mxu0 0
        %3830 = vmatprep.subr.bf16.mxu0 0
        %3831 = vmatpush1.bf16.msra.mxu0 0
        %3832 = vmatprep.subr.bf16.mxu0 0
        %3833 = vmatpush1.bf16.msra.mxu0 0
        %3834 = vmatprep.subr.bf16.mxu0 0
        %3835 = vmatpush1.bf16.msra.mxu0 0
        %3836 = vmatprep.subr.bf16.mxu0 0
        %3837 = vmatpush1.bf16.msra.mxu0 0
        %3838 = vmatprep.subr.bf16.mxu0 0
        %3839 = vmatpush1.bf16.msra.mxu0 0
        %3840 = vmatprep.subr.bf16.mxu0 %v3691
        %3841 = vmatpush1.bf16.msra.mxu0 %v3690
        %3842 = vmatprep.subr.bf16.mxu0 0
        %3843 = vmatpush2.bf16.msra.mxu0 0
        %3844 = vmatprep.subr.bf16.mxu0 0
        %3845 = vmatpush2.bf16.msra.mxu0 0
        %3846 = vmatprep.subr.bf16.mxu0 0
        %3847 = vmatpush2.bf16.msra.mxu0 0
        %3848 = vmatprep.subr.bf16.mxu0 0
        %3849 = vmatpush2.bf16.msra.mxu0 0
        %3850 = vmatprep.subr.bf16.mxu0 0
        %3851 = vmatpush2.bf16.msra.mxu0 0
        %3852 = vmatprep.subr.bf16.mxu0 0
        %3853 = vmatpush2.bf16.msra.mxu0 0
        %3854 = vmatprep.subr.bf16.mxu0 0
        %3855 = vmatpush2.bf16.msra.mxu0 0
        %3856 = vmatprep.subr.bf16.mxu0 0
        %3857 = vmatpush2.bf16.msra.mxu0 0
        %3858 = vmatprep.mubr.bf16.mxu0 0
        %3859 = vmatmul.mubr.bf16.gmra.mxu0 %v3701
        %v3860 = vpop.f32.mrf.mxu0
        %v3861 = vadd.f32 0.0, %v3860
        %v3862 = vpop.f32.mrf.mxu0
        %v3863 = vadd.f32 0.0, %v3862
        %v3864 = vpop.f32.mrf.mxu0
        %v3865 = vpop.f32.mrf.mxu0
        %3866 = vdwg.mxu0
        %v3867 = vadd.f32 %v3634, %v3738
        %v3868 = vadd.f32 %v3635, %v3740
        %v3869 = vadd.f32 %v3636, %v3779
        %v3870 = vadd.f32 %v3637, %v3781
        %v3871 = vadd.f32 %v3638, %v3820
        %v3872 = vadd.f32 %v3639, %v3822
        %v3873 = vadd.f32 %v3640, %v3861
        %v3874 = vadd.f32 %v3641, %v3863
        %s3875 = scalar_lea.vmem [#allocation2], 11
        %v3876 = vld [vmem:[%s3875] ss:$16 sm:$0x3]
        %v3877 = vld [vmem:[%s3875] ss:$16 sm:$0xc]
        %v3878 = vor.u32 %v3876, %v3877
        %v3879 = vld [vmem:[%s3875] ss:$16 sm:$0x30]
        %v3880 = vor.u32 %v3878, %v3879
        %v3881 = vld [vmem:[%s3875] ss:$16 sm:$0xc0]
        %v3882 = vor.u32 %v3880, %v3881
        %v3883 = vpack.c.bf16 %v3882, %v3882
        %s3884 = scalar_lea.vmem %s4, 704
        %v3885 = vld [vmem:[%s3884] sm:$0xff]
        %v3886 = vld [vmem:[%s3884 + $0x8] sm:$0xff]
        %v3887 = vld [vmem:[%s3884 + $0x10] sm:$0xff]
        %v3888 = vld [vmem:[%s3884 + $0x18] sm:$0xff]
        %v3889 = vld [vmem:[%s3884 + $0x20] sm:$0xff]
        %v3890 = vld [vmem:[%s3884 + $0x28] sm:$0xff]
        %v3891 = vld [vmem:[%s3884 + $0x30] sm:$0xff]
        %v3892 = vld [vmem:[%s3884 + $0x38] sm:$0xff]
        %v3901 = vunpack.c.l.b16 %v3885
        %v3902 = vunpack.c.h.b16 %v3885
        %v3903 = vunpack.c.l.b16 %v3886
        %v3904 = vunpack.c.h.b16 %v3886
        %v3905 = vunpack.c.l.b16 %v3887
        %v3906 = vunpack.c.h.b16 %v3887
        %v3907 = vunpack.c.l.b16 %v3888
        %v3908 = vunpack.c.h.b16 %v3888
        %v3909 = vunpack.c.l.b16 %v3889
        %v3910 = vunpack.c.h.b16 %v3889
        %v3911 = vunpack.c.l.b16 %v3890
        %v3912 = vunpack.c.h.b16 %v3890
        %v3913 = vunpack.c.l.b16 %v3891
        %v3914 = vunpack.c.h.b16 %v3891
        %v3915 = vunpack.c.l.b16 %v3892
        %v3916 = vunpack.c.h.b16 %v3892
        %v3917 = vpack.c.b16 %v3909, %v3901
        %v3918 = vpack.c.b16 %v3910, %v3902
        %v3919 = vpack.c.b16 %v3911, %v3903
        %v3920 = vpack.c.b16 %v3912, %v3904
        %v3921 = vpack.c.b16 %v3913, %v3905
        %v3922 = vpack.c.b16 %v3914, %v3906
        %v3923 = vpack.c.b16 %v3915, %v3907
        %v3924 = vpack.c.b16 %v3916, %v3908
        %v3934 = vsel %vm634, %v3883, 0
        %3936 = vmatprep.subr.bf16.mxu0 0
        %3937 = vmatpush1.bf16.msra.mxu0 0
        %3938 = vmatprep.subr.bf16.mxu0 0
        %3939 = vmatpush1.bf16.msra.mxu0 0
        %3940 = vmatprep.subr.bf16.mxu0 0
        %3941 = vmatpush1.bf16.msra.mxu0 0
        %3942 = vmatprep.subr.bf16.mxu0 0
        %3943 = vmatpush1.bf16.msra.mxu0 0
        %3944 = vmatprep.subr.bf16.mxu0 0
        %3945 = vmatpush1.bf16.msra.mxu0 0
        %3946 = vmatprep.subr.bf16.mxu0 0
        %3947 = vmatpush1.bf16.msra.mxu0 0
        %3948 = vmatprep.subr.bf16.mxu0 0
        %3949 = vmatpush1.bf16.msra.mxu0 0
        %3950 = vmatprep.subr.bf16.mxu0 %v3918
        %3951 = vmatpush1.bf16.msra.mxu0 %v3917
        %3952 = vmatprep.subr.bf16.mxu0 0
        %3953 = vmatpush2.bf16.msra.mxu0 0
        %3954 = vmatprep.subr.bf16.mxu0 0
        %3955 = vmatpush2.bf16.msra.mxu0 0
        %3956 = vmatprep.subr.bf16.mxu0 0
        %3957 = vmatpush2.bf16.msra.mxu0 0
        %3958 = vmatprep.subr.bf16.mxu0 0
        %3959 = vmatpush2.bf16.msra.mxu0 0
        %3960 = vmatprep.subr.bf16.mxu0 0
        %3961 = vmatpush2.bf16.msra.mxu0 0
        %3962 = vmatprep.subr.bf16.mxu0 0
        %3963 = vmatpush2.bf16.msra.mxu0 0
        %3964 = vmatprep.subr.bf16.mxu0 0
        %3965 = vmatpush2.bf16.msra.mxu0 0
        %3966 = vmatprep.subr.bf16.mxu0 0
        %3967 = vmatpush2.bf16.msra.mxu0 0
        %3968 = vmatprep.mubr.bf16.mxu0 0
        %3969 = vmatmul.mubr.bf16.gmra.mxu0 %v3934
        %v3970 = vpop.f32.mrf.mxu0
        %v3971 = vadd.f32 0.0, %v3970
        %v3972 = vpop.f32.mrf.mxu0
        %v3973 = vadd.f32 0.0, %v3972
        %v3974 = vpop.f32.mrf.mxu0
        %v3975 = vpop.f32.mrf.mxu0
        %3976 = vdwg.mxu0
        %3977 = vmatprep.subr.bf16.mxu0 0
        %3978 = vmatpush1.bf16.msra.mxu0 0
        %3979 = vmatprep.subr.bf16.mxu0 0
        %3980 = vmatpush1.bf16.msra.mxu0 0
        %3981 = vmatprep.subr.bf16.mxu0 0
        %3982 = vmatpush1.bf16.msra.mxu0 0
        %3983 = vmatprep.subr.bf16.mxu0 0
        %3984 = vmatpush1.bf16.msra.mxu0 0
        %3985 = vmatprep.subr.bf16.mxu0 0
        %3986 = vmatpush1.bf16.msra.mxu0 0
        %3987 = vmatprep.subr.bf16.mxu0 0
        %3988 = vmatpush1.bf16.msra.mxu0 0
        %3989 = vmatprep.subr.bf16.mxu0 0
        %3990 = vmatpush1.bf16.msra.mxu0 0
        %3991 = vmatprep.subr.bf16.mxu0 %v3920
        %3992 = vmatpush1.bf16.msra.mxu0 %v3919
        %3993 = vmatprep.subr.bf16.mxu0 0
        %3994 = vmatpush2.bf16.msra.mxu0 0
        %3995 = vmatprep.subr.bf16.mxu0 0
        %3996 = vmatpush2.bf16.msra.mxu0 0
        %3997 = vmatprep.subr.bf16.mxu0 0
        %3998 = vmatpush2.bf16.msra.mxu0 0
        %3999 = vmatprep.subr.bf16.mxu0 0
        %4000 = vmatpush2.bf16.msra.mxu0 0
        %4001 = vmatprep.subr.bf16.mxu0 0
        %4002 = vmatpush2.bf16.msra.mxu0 0
        %4003 = vmatprep.subr.bf16.mxu0 0
        %4004 = vmatpush2.bf16.msra.mxu0 0
        %4005 = vmatprep.subr.bf16.mxu0 0
        %4006 = vmatpush2.bf16.msra.mxu0 0
        %4007 = vmatprep.subr.bf16.mxu0 0
        %4008 = vmatpush2.bf16.msra.mxu0 0
        %4009 = vmatprep.mubr.bf16.mxu0 0
        %4010 = vmatmul.mubr.bf16.gmra.mxu0 %v3934
        %v4011 = vpop.f32.mrf.mxu0
        %v4012 = vadd.f32 0.0, %v4011
        %v4013 = vpop.f32.mrf.mxu0
        %v4014 = vadd.f32 0.0, %v4013
        %v4015 = vpop.f32.mrf.mxu0
        %v4016 = vpop.f32.mrf.mxu0
        %4017 = vdwg.mxu0
        %4018 = vmatprep.subr.bf16.mxu0 0
        %4019 = vmatpush1.bf16.msra.mxu0 0
        %4020 = vmatprep.subr.bf16.mxu0 0
        %4021 = vmatpush1.bf16.msra.mxu0 0
        %4022 = vmatprep.subr.bf16.mxu0 0
        %4023 = vmatpush1.bf16.msra.mxu0 0
        %4024 = vmatprep.subr.bf16.mxu0 0
        %4025 = vmatpush1.bf16.msra.mxu0 0
        %4026 = vmatprep.subr.bf16.mxu0 0
        %4027 = vmatpush1.bf16.msra.mxu0 0
        %4028 = vmatprep.subr.bf16.mxu0 0
        %4029 = vmatpush1.bf16.msra.mxu0 0
        %4030 = vmatprep.subr.bf16.mxu0 0
        %4031 = vmatpush1.bf16.msra.mxu0 0
        %4032 = vmatprep.subr.bf16.mxu0 %v3922
        %4033 = vmatpush1.bf16.msra.mxu0 %v3921
        %4034 = vmatprep.subr.bf16.mxu0 0
        %4035 = vmatpush2.bf16.msra.mxu0 0
        %4036 = vmatprep.subr.bf16.mxu0 0
        %4037 = vmatpush2.bf16.msra.mxu0 0
        %4038 = vmatprep.subr.bf16.mxu0 0
        %4039 = vmatpush2.bf16.msra.mxu0 0
        %4040 = vmatprep.subr.bf16.mxu0 0
        %4041 = vmatpush2.bf16.msra.mxu0 0
        %4042 = vmatprep.subr.bf16.mxu0 0
        %4043 = vmatpush2.bf16.msra.mxu0 0
        %4044 = vmatprep.subr.bf16.mxu0 0
        %4045 = vmatpush2.bf16.msra.mxu0 0
        %4046 = vmatprep.subr.bf16.mxu0 0
        %4047 = vmatpush2.bf16.msra.mxu0 0
        %4048 = vmatprep.subr.bf16.mxu0 0
        %4049 = vmatpush2.bf16.msra.mxu0 0
        %4050 = vmatprep.mubr.bf16.mxu0 0
        %4051 = vmatmul.mubr.bf16.gmra.mxu0 %v3934
        %v4052 = vpop.f32.mrf.mxu0
        %v4053 = vadd.f32 0.0, %v4052
        %v4054 = vpop.f32.mrf.mxu0
        %v4055 = vadd.f32 0.0, %v4054
        %v4056 = vpop.f32.mrf.mxu0
        %v4057 = vpop.f32.mrf.mxu0
        %4058 = vdwg.mxu0
        %4059 = vmatprep.subr.bf16.mxu0 0
        %4060 = vmatpush1.bf16.msra.mxu0 0
        %4061 = vmatprep.subr.bf16.mxu0 0
        %4062 = vmatpush1.bf16.msra.mxu0 0
        %4063 = vmatprep.subr.bf16.mxu0 0
        %4064 = vmatpush1.bf16.msra.mxu0 0
        %4065 = vmatprep.subr.bf16.mxu0 0
        %4066 = vmatpush1.bf16.msra.mxu0 0
        %4067 = vmatprep.subr.bf16.mxu0 0
        %4068 = vmatpush1.bf16.msra.mxu0 0
        %4069 = vmatprep.subr.bf16.mxu0 0
        %4070 = vmatpush1.bf16.msra.mxu0 0
        %4071 = vmatprep.subr.bf16.mxu0 0
        %4072 = vmatpush1.bf16.msra.mxu0 0
        %4073 = vmatprep.subr.bf16.mxu0 %v3924
        %4074 = vmatpush1.bf16.msra.mxu0 %v3923
        %4075 = vmatprep.subr.bf16.mxu0 0
        %4076 = vmatpush2.bf16.msra.mxu0 0
        %4077 = vmatprep.subr.bf16.mxu0 0
        %4078 = vmatpush2.bf16.msra.mxu0 0
        %4079 = vmatprep.subr.bf16.mxu0 0
        %4080 = vmatpush2.bf16.msra.mxu0 0
        %4081 = vmatprep.subr.bf16.mxu0 0
        %4082 = vmatpush2.bf16.msra.mxu0 0
        %4083 = vmatprep.subr.bf16.mxu0 0
        %4084 = vmatpush2.bf16.msra.mxu0 0
        %4085 = vmatprep.subr.bf16.mxu0 0
        %4086 = vmatpush2.bf16.msra.mxu0 0
        %4087 = vmatprep.subr.bf16.mxu0 0
        %4088 = vmatpush2.bf16.msra.mxu0 0
        %4089 = vmatprep.subr.bf16.mxu0 0
        %4090 = vmatpush2.bf16.msra.mxu0 0
        %4091 = vmatprep.mubr.bf16.mxu0 0
        %4092 = vmatmul.mubr.bf16.gmra.mxu0 %v3934
        %v4093 = vpop.f32.mrf.mxu0
        %v4094 = vadd.f32 0.0, %v4093
        %v4095 = vpop.f32.mrf.mxu0
        %v4096 = vadd.f32 0.0, %v4095
        %v4097 = vpop.f32.mrf.mxu0
        %v4098 = vpop.f32.mrf.mxu0
        %4099 = vdwg.mxu0
        %v4100 = vadd.f32 %v3867, %v3971
        %v4101 = vadd.f32 %v3868, %v3973
        %v4102 = vadd.f32 %v3869, %v4012
        %v4103 = vadd.f32 %v3870, %v4014
        %v4104 = vadd.f32 %v3871, %v4053
        %v4105 = vadd.f32 %v3872, %v4055
        %v4106 = vadd.f32 %v3873, %v4094
        %v4107 = vadd.f32 %v3874, %v4096
        %s4108 = scalar_lea.vmem [#allocation2], 12
        %v4109 = vld [vmem:[%s4108] ss:$16 sm:$0x3]
        %v4110 = vld [vmem:[%s4108] ss:$16 sm:$0xc]
        %v4111 = vor.u32 %v4109, %v4110
        %v4112 = vld [vmem:[%s4108] ss:$16 sm:$0x30]
        %v4113 = vor.u32 %v4111, %v4112
        %v4114 = vld [vmem:[%s4108] ss:$16 sm:$0xc0]
        %v4115 = vor.u32 %v4113, %v4114
        %v4116 = vpack.c.bf16 %v4115, %v4115
        %s4117 = scalar_lea.vmem %s4, 768
        %v4118 = vld [vmem:[%s4117] sm:$0xff]
        %v4119 = vld [vmem:[%s4117 + $0x8] sm:$0xff]
        %v4120 = vld [vmem:[%s4117 + $0x10] sm:$0xff]
        %v4121 = vld [vmem:[%s4117 + $0x18] sm:$0xff]
        %v4122 = vld [vmem:[%s4117 + $0x20] sm:$0xff]
        %v4123 = vld [vmem:[%s4117 + $0x28] sm:$0xff]
        %v4124 = vld [vmem:[%s4117 + $0x30] sm:$0xff]
        %v4125 = vld [vmem:[%s4117 + $0x38] sm:$0xff]
        %v4134 = vunpack.c.l.b16 %v4118
        %v4135 = vunpack.c.h.b16 %v4118
        %v4136 = vunpack.c.l.b16 %v4119
        %v4137 = vunpack.c.h.b16 %v4119
        %v4138 = vunpack.c.l.b16 %v4120
        %v4139 = vunpack.c.h.b16 %v4120
        %v4140 = vunpack.c.l.b16 %v4121
        %v4141 = vunpack.c.h.b16 %v4121
        %v4142 = vunpack.c.l.b16 %v4122
        %v4143 = vunpack.c.h.b16 %v4122
        %v4144 = vunpack.c.l.b16 %v4123
        %v4145 = vunpack.c.h.b16 %v4123
        %v4146 = vunpack.c.l.b16 %v4124
        %v4147 = vunpack.c.h.b16 %v4124
        %v4148 = vunpack.c.l.b16 %v4125
        %v4149 = vunpack.c.h.b16 %v4125
        %v4150 = vpack.c.b16 %v4142, %v4134
        %v4151 = vpack.c.b16 %v4143, %v4135
        %v4152 = vpack.c.b16 %v4144, %v4136
        %v4153 = vpack.c.b16 %v4145, %v4137
        %v4154 = vpack.c.b16 %v4146, %v4138
        %v4155 = vpack.c.b16 %v4147, %v4139
        %v4156 = vpack.c.b16 %v4148, %v4140
        %v4157 = vpack.c.b16 %v4149, %v4141
        %v4167 = vsel %vm634, %v4116, 0
        %4169 = vmatprep.subr.bf16.mxu0 0
        %4170 = vmatpush1.bf16.msra.mxu0 0
        %4171 = vmatprep.subr.bf16.mxu0 0
        %4172 = vmatpush1.bf16.msra.mxu0 0
        %4173 = vmatprep.subr.bf16.mxu0 0
        %4174 = vmatpush1.bf16.msra.mxu0 0
        %4175 = vmatprep.subr.bf16.mxu0 0
        %4176 = vmatpush1.bf16.msra.mxu0 0
        %4177 = vmatprep.subr.bf16.mxu0 0
        %4178 = vmatpush1.bf16.msra.mxu0 0
        %4179 = vmatprep.subr.bf16.mxu0 0
        %4180 = vmatpush1.bf16.msra.mxu0 0
        %4181 = vmatprep.subr.bf16.mxu0 0
        %4182 = vmatpush1.bf16.msra.mxu0 0
        %4183 = vmatprep.subr.bf16.mxu0 %v4151
        %4184 = vmatpush1.bf16.msra.mxu0 %v4150
        %4185 = vmatprep.subr.bf16.mxu0 0
        %4186 = vmatpush2.bf16.msra.mxu0 0
        %4187 = vmatprep.subr.bf16.mxu0 0
        %4188 = vmatpush2.bf16.msra.mxu0 0
        %4189 = vmatprep.subr.bf16.mxu0 0
        %4190 = vmatpush2.bf16.msra.mxu0 0
        %4191 = vmatprep.subr.bf16.mxu0 0
        %4192 = vmatpush2.bf16.msra.mxu0 0
        %4193 = vmatprep.subr.bf16.mxu0 0
        %4194 = vmatpush2.bf16.msra.mxu0 0
        %4195 = vmatprep.subr.bf16.mxu0 0
        %4196 = vmatpush2.bf16.msra.mxu0 0
        %4197 = vmatprep.subr.bf16.mxu0 0
        %4198 = vmatpush2.bf16.msra.mxu0 0
        %4199 = vmatprep.subr.bf16.mxu0 0
        %4200 = vmatpush2.bf16.msra.mxu0 0
        %4201 = vmatprep.mubr.bf16.mxu0 0
        %4202 = vmatmul.mubr.bf16.gmra.mxu0 %v4167
        %v4203 = vpop.f32.mrf.mxu0
        %v4204 = vadd.f32 0.0, %v4203
        %v4205 = vpop.f32.mrf.mxu0
        %v4206 = vadd.f32 0.0, %v4205
        %v4207 = vpop.f32.mrf.mxu0
        %v4208 = vpop.f32.mrf.mxu0
        %4209 = vdwg.mxu0
        %4210 = vmatprep.subr.bf16.mxu0 0
        %4211 = vmatpush1.bf16.msra.mxu0 0
        %4212 = vmatprep.subr.bf16.mxu0 0
        %4213 = vmatpush1.bf16.msra.mxu0 0
        %4214 = vmatprep.subr.bf16.mxu0 0
        %4215 = vmatpush1.bf16.msra.mxu0 0
        %4216 = vmatprep.subr.bf16.mxu0 0
        %4217 = vmatpush1.bf16.msra.mxu0 0
        %4218 = vmatprep.subr.bf16.mxu0 0
        %4219 = vmatpush1.bf16.msra.mxu0 0
        %4220 = vmatprep.subr.bf16.mxu0 0
        %4221 = vmatpush1.bf16.msra.mxu0 0
        %4222 = vmatprep.subr.bf16.mxu0 0
        %4223 = vmatpush1.bf16.msra.mxu0 0
        %4224 = vmatprep.subr.bf16.mxu0 %v4153
        %4225 = vmatpush1.bf16.msra.mxu0 %v4152
        %4226 = vmatprep.subr.bf16.mxu0 0
        %4227 = vmatpush2.bf16.msra.mxu0 0
        %4228 = vmatprep.subr.bf16.mxu0 0
        %4229 = vmatpush2.bf16.msra.mxu0 0
        %4230 = vmatprep.subr.bf16.mxu0 0
        %4231 = vmatpush2.bf16.msra.mxu0 0
        %4232 = vmatprep.subr.bf16.mxu0 0
        %4233 = vmatpush2.bf16.msra.mxu0 0
        %4234 = vmatprep.subr.bf16.mxu0 0
        %4235 = vmatpush2.bf16.msra.mxu0 0
        %4236 = vmatprep.subr.bf16.mxu0 0
        %4237 = vmatpush2.bf16.msra.mxu0 0
        %4238 = vmatprep.subr.bf16.mxu0 0
        %4239 = vmatpush2.bf16.msra.mxu0 0
        %4240 = vmatprep.subr.bf16.mxu0 0
        %4241 = vmatpush2.bf16.msra.mxu0 0
        %4242 = vmatprep.mubr.bf16.mxu0 0
        %4243 = vmatmul.mubr.bf16.gmra.mxu0 %v4167
        %v4244 = vpop.f32.mrf.mxu0
        %v4245 = vadd.f32 0.0, %v4244
        %v4246 = vpop.f32.mrf.mxu0
        %v4247 = vadd.f32 0.0, %v4246
        %v4248 = vpop.f32.mrf.mxu0
        %v4249 = vpop.f32.mrf.mxu0
        %4250 = vdwg.mxu0
        %4251 = vmatprep.subr.bf16.mxu0 0
        %4252 = vmatpush1.bf16.msra.mxu0 0
        %4253 = vmatprep.subr.bf16.mxu0 0
        %4254 = vmatpush1.bf16.msra.mxu0 0
        %4255 = vmatprep.subr.bf16.mxu0 0
        %4256 = vmatpush1.bf16.msra.mxu0 0
        %4257 = vmatprep.subr.bf16.mxu0 0
        %4258 = vmatpush1.bf16.msra.mxu0 0
        %4259 = vmatprep.subr.bf16.mxu0 0
        %4260 = vmatpush1.bf16.msra.mxu0 0
        %4261 = vmatprep.subr.bf16.mxu0 0
        %4262 = vmatpush1.bf16.msra.mxu0 0
        %4263 = vmatprep.subr.bf16.mxu0 0
        %4264 = vmatpush1.bf16.msra.mxu0 0
        %4265 = vmatprep.subr.bf16.mxu0 %v4155
        %4266 = vmatpush1.bf16.msra.mxu0 %v4154
        %4267 = vmatprep.subr.bf16.mxu0 0
        %4268 = vmatpush2.bf16.msra.mxu0 0
        %4269 = vmatprep.subr.bf16.mxu0 0
        %4270 = vmatpush2.bf16.msra.mxu0 0
        %4271 = vmatprep.subr.bf16.mxu0 0
        %4272 = vmatpush2.bf16.msra.mxu0 0
        %4273 = vmatprep.subr.bf16.mxu0 0
        %4274 = vmatpush2.bf16.msra.mxu0 0
        %4275 = vmatprep.subr.bf16.mxu0 0
        %4276 = vmatpush2.bf16.msra.mxu0 0
        %4277 = vmatprep.subr.bf16.mxu0 0
        %4278 = vmatpush2.bf16.msra.mxu0 0
        %4279 = vmatprep.subr.bf16.mxu0 0
        %4280 = vmatpush2.bf16.msra.mxu0 0
        %4281 = vmatprep.subr.bf16.mxu0 0
        %4282 = vmatpush2.bf16.msra.mxu0 0
        %4283 = vmatprep.mubr.bf16.mxu0 0
        %4284 = vmatmul.mubr.bf16.gmra.mxu0 %v4167
        %v4285 = vpop.f32.mrf.mxu0
        %v4286 = vadd.f32 0.0, %v4285
        %v4287 = vpop.f32.mrf.mxu0
        %v4288 = vadd.f32 0.0, %v4287
        %v4289 = vpop.f32.mrf.mxu0
        %v4290 = vpop.f32.mrf.mxu0
        %4291 = vdwg.mxu0
        %4292 = vmatprep.subr.bf16.mxu0 0
        %4293 = vmatpush1.bf16.msra.mxu0 0
        %4294 = vmatprep.subr.bf16.mxu0 0
        %4295 = vmatpush1.bf16.msra.mxu0 0
        %4296 = vmatprep.subr.bf16.mxu0 0
        %4297 = vmatpush1.bf16.msra.mxu0 0
        %4298 = vmatprep.subr.bf16.mxu0 0
        %4299 = vmatpush1.bf16.msra.mxu0 0
        %4300 = vmatprep.subr.bf16.mxu0 0
        %4301 = vmatpush1.bf16.msra.mxu0 0
        %4302 = vmatprep.subr.bf16.mxu0 0
        %4303 = vmatpush1.bf16.msra.mxu0 0
        %4304 = vmatprep.subr.bf16.mxu0 0
        %4305 = vmatpush1.bf16.msra.mxu0 0
        %4306 = vmatprep.subr.bf16.mxu0 %v4157
        %4307 = vmatpush1.bf16.msra.mxu0 %v4156
        %4308 = vmatprep.subr.bf16.mxu0 0
        %4309 = vmatpush2.bf16.msra.mxu0 0
        %4310 = vmatprep.subr.bf16.mxu0 0
        %4311 = vmatpush2.bf16.msra.mxu0 0
        %4312 = vmatprep.subr.bf16.mxu0 0
        %4313 = vmatpush2.bf16.msra.mxu0 0
        %4314 = vmatprep.subr.bf16.mxu0 0
        %4315 = vmatpush2.bf16.msra.mxu0 0
        %4316 = vmatprep.subr.bf16.mxu0 0
        %4317 = vmatpush2.bf16.msra.mxu0 0
        %4318 = vmatprep.subr.bf16.mxu0 0
        %4319 = vmatpush2.bf16.msra.mxu0 0
        %4320 = vmatprep.subr.bf16.mxu0 0
        %4321 = vmatpush2.bf16.msra.mxu0 0
        %4322 = vmatprep.subr.bf16.mxu0 0
        %4323 = vmatpush2.bf16.msra.mxu0 0
        %4324 = vmatprep.mubr.bf16.mxu0 0
        %4325 = vmatmul.mubr.bf16.gmra.mxu0 %v4167
        %v4326 = vpop.f32.mrf.mxu0
        %v4327 = vadd.f32 0.0, %v4326
        %v4328 = vpop.f32.mrf.mxu0
        %v4329 = vadd.f32 0.0, %v4328
        %v4330 = vpop.f32.mrf.mxu0
        %v4331 = vpop.f32.mrf.mxu0
        %4332 = vdwg.mxu0
        %v4333 = vadd.f32 %v4100, %v4204
        %v4334 = vadd.f32 %v4101, %v4206
        %v4335 = vadd.f32 %v4102, %v4245
        %v4336 = vadd.f32 %v4103, %v4247
        %v4337 = vadd.f32 %v4104, %v4286
        %v4338 = vadd.f32 %v4105, %v4288
        %v4339 = vadd.f32 %v4106, %v4327
        %v4340 = vadd.f32 %v4107, %v4329
        %s4341 = scalar_lea.vmem [#allocation2], 13
        %v4342 = vld [vmem:[%s4341] ss:$16 sm:$0x3]
        %v4343 = vld [vmem:[%s4341] ss:$16 sm:$0xc]
        %v4344 = vor.u32 %v4342, %v4343
        %v4345 = vld [vmem:[%s4341] ss:$16 sm:$0x30]
        %v4346 = vor.u32 %v4344, %v4345
        %v4347 = vld [vmem:[%s4341] ss:$16 sm:$0xc0]
        %v4348 = vor.u32 %v4346, %v4347
        %v4349 = vpack.c.bf16 %v4348, %v4348
        %s4350 = scalar_lea.vmem %s4, 832
        %v4351 = vld [vmem:[%s4350] sm:$0xff]
        %v4352 = vld [vmem:[%s4350 + $0x8] sm:$0xff]
        %v4353 = vld [vmem:[%s4350 + $0x10] sm:$0xff]
        %v4354 = vld [vmem:[%s4350 + $0x18] sm:$0xff]
        %v4355 = vld [vmem:[%s4350 + $0x20] sm:$0xff]
        %v4356 = vld [vmem:[%s4350 + $0x28] sm:$0xff]
        %v4357 = vld [vmem:[%s4350 + $0x30] sm:$0xff]
        %v4358 = vld [vmem:[%s4350 + $0x38] sm:$0xff]
        %v4367 = vunpack.c.l.b16 %v4351
        %v4368 = vunpack.c.h.b16 %v4351
        %v4369 = vunpack.c.l.b16 %v4352
        %v4370 = vunpack.c.h.b16 %v4352
        %v4371 = vunpack.c.l.b16 %v4353
        %v4372 = vunpack.c.h.b16 %v4353
        %v4373 = vunpack.c.l.b16 %v4354
        %v4374 = vunpack.c.h.b16 %v4354
        %v4375 = vunpack.c.l.b16 %v4355
        %v4376 = vunpack.c.h.b16 %v4355
        %v4377 = vunpack.c.l.b16 %v4356
        %v4378 = vunpack.c.h.b16 %v4356
        %v4379 = vunpack.c.l.b16 %v4357
        %v4380 = vunpack.c.h.b16 %v4357
        %v4381 = vunpack.c.l.b16 %v4358
        %v4382 = vunpack.c.h.b16 %v4358
        %v4383 = vpack.c.b16 %v4375, %v4367
        %v4384 = vpack.c.b16 %v4376, %v4368
        %v4385 = vpack.c.b16 %v4377, %v4369
        %v4386 = vpack.c.b16 %v4378, %v4370
        %v4387 = vpack.c.b16 %v4379, %v4371
        %v4388 = vpack.c.b16 %v4380, %v4372
        %v4389 = vpack.c.b16 %v4381, %v4373
        %v4390 = vpack.c.b16 %v4382, %v4374
        %v4400 = vsel %vm634, %v4349, 0
        %4402 = vmatprep.subr.bf16.mxu0 0
        %4403 = vmatpush1.bf16.msra.mxu0 0
        %4404 = vmatprep.subr.bf16.mxu0 0
        %4405 = vmatpush1.bf16.msra.mxu0 0
        %4406 = vmatprep.subr.bf16.mxu0 0
        %4407 = vmatpush1.bf16.msra.mxu0 0
        %4408 = vmatprep.subr.bf16.mxu0 0
        %4409 = vmatpush1.bf16.msra.mxu0 0
        %4410 = vmatprep.subr.bf16.mxu0 0
        %4411 = vmatpush1.bf16.msra.mxu0 0
        %4412 = vmatprep.subr.bf16.mxu0 0
        %4413 = vmatpush1.bf16.msra.mxu0 0
        %4414 = vmatprep.subr.bf16.mxu0 0
        %4415 = vmatpush1.bf16.msra.mxu0 0
        %4416 = vmatprep.subr.bf16.mxu0 %v4384
        %4417 = vmatpush1.bf16.msra.mxu0 %v4383
        %4418 = vmatprep.subr.bf16.mxu0 0
        %4419 = vmatpush2.bf16.msra.mxu0 0
        %4420 = vmatprep.subr.bf16.mxu0 0
        %4421 = vmatpush2.bf16.msra.mxu0 0
        %4422 = vmatprep.subr.bf16.mxu0 0
        %4423 = vmatpush2.bf16.msra.mxu0 0
        %4424 = vmatprep.subr.bf16.mxu0 0
        %4425 = vmatpush2.bf16.msra.mxu0 0
        %4426 = vmatprep.subr.bf16.mxu0 0
        %4427 = vmatpush2.bf16.msra.mxu0 0
        %4428 = vmatprep.subr.bf16.mxu0 0
        %4429 = vmatpush2.bf16.msra.mxu0 0
        %4430 = vmatprep.subr.bf16.mxu0 0
        %4431 = vmatpush2.bf16.msra.mxu0 0
        %4432 = vmatprep.subr.bf16.mxu0 0
        %4433 = vmatpush2.bf16.msra.mxu0 0
        %4434 = vmatprep.mubr.bf16.mxu0 0
        %4435 = vmatmul.mubr.bf16.gmra.mxu0 %v4400
        %v4436 = vpop.f32.mrf.mxu0
        %v4437 = vadd.f32 0.0, %v4436
        %v4438 = vpop.f32.mrf.mxu0
        %v4439 = vadd.f32 0.0, %v4438
        %v4440 = vpop.f32.mrf.mxu0
        %v4441 = vpop.f32.mrf.mxu0
        %4442 = vdwg.mxu0
        %4443 = vmatprep.subr.bf16.mxu0 0
        %4444 = vmatpush1.bf16.msra.mxu0 0
        %4445 = vmatprep.subr.bf16.mxu0 0
        %4446 = vmatpush1.bf16.msra.mxu0 0
        %4447 = vmatprep.subr.bf16.mxu0 0
        %4448 = vmatpush1.bf16.msra.mxu0 0
        %4449 = vmatprep.subr.bf16.mxu0 0
        %4450 = vmatpush1.bf16.msra.mxu0 0
        %4451 = vmatprep.subr.bf16.mxu0 0
        %4452 = vmatpush1.bf16.msra.mxu0 0
        %4453 = vmatprep.subr.bf16.mxu0 0
        %4454 = vmatpush1.bf16.msra.mxu0 0
        %4455 = vmatprep.subr.bf16.mxu0 0
        %4456 = vmatpush1.bf16.msra.mxu0 0
        %4457 = vmatprep.subr.bf16.mxu0 %v4386
        %4458 = vmatpush1.bf16.msra.mxu0 %v4385
        %4459 = vmatprep.subr.bf16.mxu0 0
        %4460 = vmatpush2.bf16.msra.mxu0 0
        %4461 = vmatprep.subr.bf16.mxu0 0
        %4462 = vmatpush2.bf16.msra.mxu0 0
        %4463 = vmatprep.subr.bf16.mxu0 0
        %4464 = vmatpush2.bf16.msra.mxu0 0
        %4465 = vmatprep.subr.bf16.mxu0 0
        %4466 = vmatpush2.bf16.msra.mxu0 0
        %4467 = vmatprep.subr.bf16.mxu0 0
        %4468 = vmatpush2.bf16.msra.mxu0 0
        %4469 = vmatprep.subr.bf16.mxu0 0
        %4470 = vmatpush2.bf16.msra.mxu0 0
        %4471 = vmatprep.subr.bf16.mxu0 0
        %4472 = vmatpush2.bf16.msra.mxu0 0
        %4473 = vmatprep.subr.bf16.mxu0 0
        %4474 = vmatpush2.bf16.msra.mxu0 0
        %4475 = vmatprep.mubr.bf16.mxu0 0
        %4476 = vmatmul.mubr.bf16.gmra.mxu0 %v4400
        %v4477 = vpop.f32.mrf.mxu0
        %v4478 = vadd.f32 0.0, %v4477
        %v4479 = vpop.f32.mrf.mxu0
        %v4480 = vadd.f32 0.0, %v4479
        %v4481 = vpop.f32.mrf.mxu0
        %v4482 = vpop.f32.mrf.mxu0
        %4483 = vdwg.mxu0
        %4484 = vmatprep.subr.bf16.mxu0 0
        %4485 = vmatpush1.bf16.msra.mxu0 0
        %4486 = vmatprep.subr.bf16.mxu0 0
        %4487 = vmatpush1.bf16.msra.mxu0 0
        %4488 = vmatprep.subr.bf16.mxu0 0
        %4489 = vmatpush1.bf16.msra.mxu0 0
        %4490 = vmatprep.subr.bf16.mxu0 0
        %4491 = vmatpush1.bf16.msra.mxu0 0
        %4492 = vmatprep.subr.bf16.mxu0 0
        %4493 = vmatpush1.bf16.msra.mxu0 0
        %4494 = vmatprep.subr.bf16.mxu0 0
        %4495 = vmatpush1.bf16.msra.mxu0 0
        %4496 = vmatprep.subr.bf16.mxu0 0
        %4497 = vmatpush1.bf16.msra.mxu0 0
        %4498 = vmatprep.subr.bf16.mxu0 %v4388
        %4499 = vmatpush1.bf16.msra.mxu0 %v4387
        %4500 = vmatprep.subr.bf16.mxu0 0
        %4501 = vmatpush2.bf16.msra.mxu0 0
        %4502 = vmatprep.subr.bf16.mxu0 0
        %4503 = vmatpush2.bf16.msra.mxu0 0
        %4504 = vmatprep.subr.bf16.mxu0 0
        %4505 = vmatpush2.bf16.msra.mxu0 0
        %4506 = vmatprep.subr.bf16.mxu0 0
        %4507 = vmatpush2.bf16.msra.mxu0 0
        %4508 = vmatprep.subr.bf16.mxu0 0
        %4509 = vmatpush2.bf16.msra.mxu0 0
        %4510 = vmatprep.subr.bf16.mxu0 0
        %4511 = vmatpush2.bf16.msra.mxu0 0
        %4512 = vmatprep.subr.bf16.mxu0 0
        %4513 = vmatpush2.bf16.msra.mxu0 0
        %4514 = vmatprep.subr.bf16.mxu0 0
        %4515 = vmatpush2.bf16.msra.mxu0 0
        %4516 = vmatprep.mubr.bf16.mxu0 0
        %4517 = vmatmul.mubr.bf16.gmra.mxu0 %v4400
        %v4518 = vpop.f32.mrf.mxu0
        %v4519 = vadd.f32 0.0, %v4518
        %v4520 = vpop.f32.mrf.mxu0
        %v4521 = vadd.f32 0.0, %v4520
        %v4522 = vpop.f32.mrf.mxu0
        %v4523 = vpop.f32.mrf.mxu0
        %4524 = vdwg.mxu0
        %4525 = vmatprep.subr.bf16.mxu0 0
        %4526 = vmatpush1.bf16.msra.mxu0 0
        %4527 = vmatprep.subr.bf16.mxu0 0
        %4528 = vmatpush1.bf16.msra.mxu0 0
        %4529 = vmatprep.subr.bf16.mxu0 0
        %4530 = vmatpush1.bf16.msra.mxu0 0
        %4531 = vmatprep.subr.bf16.mxu0 0
        %4532 = vmatpush1.bf16.msra.mxu0 0
        %4533 = vmatprep.subr.bf16.mxu0 0
        %4534 = vmatpush1.bf16.msra.mxu0 0
        %4535 = vmatprep.subr.bf16.mxu0 0
        %4536 = vmatpush1.bf16.msra.mxu0 0
        %4537 = vmatprep.subr.bf16.mxu0 0
        %4538 = vmatpush1.bf16.msra.mxu0 0
        %4539 = vmatprep.subr.bf16.mxu0 %v4390
        %4540 = vmatpush1.bf16.msra.mxu0 %v4389
        %4541 = vmatprep.subr.bf16.mxu0 0
        %4542 = vmatpush2.bf16.msra.mxu0 0
        %4543 = vmatprep.subr.bf16.mxu0 0
        %4544 = vmatpush2.bf16.msra.mxu0 0
        %4545 = vmatprep.subr.bf16.mxu0 0
        %4546 = vmatpush2.bf16.msra.mxu0 0
        %4547 = vmatprep.subr.bf16.mxu0 0
        %4548 = vmatpush2.bf16.msra.mxu0 0
        %4549 = vmatprep.subr.bf16.mxu0 0
        %4550 = vmatpush2.bf16.msra.mxu0 0
        %4551 = vmatprep.subr.bf16.mxu0 0
        %4552 = vmatpush2.bf16.msra.mxu0 0
        %4553 = vmatprep.subr.bf16.mxu0 0
        %4554 = vmatpush2.bf16.msra.mxu0 0
        %4555 = vmatprep.subr.bf16.mxu0 0
        %4556 = vmatpush2.bf16.msra.mxu0 0
        %4557 = vmatprep.mubr.bf16.mxu0 0
        %4558 = vmatmul.mubr.bf16.gmra.mxu0 %v4400
        %v4559 = vpop.f32.mrf.mxu0
        %v4560 = vadd.f32 0.0, %v4559
        %v4561 = vpop.f32.mrf.mxu0
        %v4562 = vadd.f32 0.0, %v4561
        %v4563 = vpop.f32.mrf.mxu0
        %v4564 = vpop.f32.mrf.mxu0
        %4565 = vdwg.mxu0
        %v4566 = vadd.f32 %v4333, %v4437
        %v4567 = vadd.f32 %v4334, %v4439
        %v4568 = vadd.f32 %v4335, %v4478
        %v4569 = vadd.f32 %v4336, %v4480
        %v4570 = vadd.f32 %v4337, %v4519
        %v4571 = vadd.f32 %v4338, %v4521
        %v4572 = vadd.f32 %v4339, %v4560
        %v4573 = vadd.f32 %v4340, %v4562
        %s4574 = scalar_lea.vmem [#allocation2], 14
        %v4575 = vld [vmem:[%s4574] ss:$16 sm:$0x3]
        %v4576 = vld [vmem:[%s4574] ss:$16 sm:$0xc]
        %v4577 = vor.u32 %v4575, %v4576
        %v4578 = vld [vmem:[%s4574] ss:$16 sm:$0x30]
        %v4579 = vor.u32 %v4577, %v4578
        %v4580 = vld [vmem:[%s4574] ss:$16 sm:$0xc0]
        %v4581 = vor.u32 %v4579, %v4580
        %v4582 = vpack.c.bf16 %v4581, %v4581
        %s4583 = scalar_lea.vmem %s4, 896
        %v4584 = vld [vmem:[%s4583] sm:$0xff]
        %v4585 = vld [vmem:[%s4583 + $0x8] sm:$0xff]
        %v4586 = vld [vmem:[%s4583 + $0x10] sm:$0xff]
        %v4587 = vld [vmem:[%s4583 + $0x18] sm:$0xff]
        %v4588 = vld [vmem:[%s4583 + $0x20] sm:$0xff]
        %v4589 = vld [vmem:[%s4583 + $0x28] sm:$0xff]
        %v4590 = vld [vmem:[%s4583 + $0x30] sm:$0xff]
        %v4591 = vld [vmem:[%s4583 + $0x38] sm:$0xff]
        %v4600 = vunpack.c.l.b16 %v4584
        %v4601 = vunpack.c.h.b16 %v4584
        %v4602 = vunpack.c.l.b16 %v4585
        %v4603 = vunpack.c.h.b16 %v4585
        %v4604 = vunpack.c.l.b16 %v4586
        %v4605 = vunpack.c.h.b16 %v4586
        %v4606 = vunpack.c.l.b16 %v4587
        %v4607 = vunpack.c.h.b16 %v4587
        %v4608 = vunpack.c.l.b16 %v4588
        %v4609 = vunpack.c.h.b16 %v4588
        %v4610 = vunpack.c.l.b16 %v4589
        %v4611 = vunpack.c.h.b16 %v4589
        %v4612 = vunpack.c.l.b16 %v4590
        %v4613 = vunpack.c.h.b16 %v4590
        %v4614 = vunpack.c.l.b16 %v4591
        %v4615 = vunpack.c.h.b16 %v4591
        %v4616 = vpack.c.b16 %v4608, %v4600
        %v4617 = vpack.c.b16 %v4609, %v4601
        %v4618 = vpack.c.b16 %v4610, %v4602
        %v4619 = vpack.c.b16 %v4611, %v4603
        %v4620 = vpack.c.b16 %v4612, %v4604
        %v4621 = vpack.c.b16 %v4613, %v4605
        %v4622 = vpack.c.b16 %v4614, %v4606
        %v4623 = vpack.c.b16 %v4615, %v4607
        %v4633 = vsel %vm634, %v4582, 0
        %4635 = vmatprep.subr.bf16.mxu0 0
        %4636 = vmatpush1.bf16.msra.mxu0 0
        %4637 = vmatprep.subr.bf16.mxu0 0
        %4638 = vmatpush1.bf16.msra.mxu0 0
        %4639 = vmatprep.subr.bf16.mxu0 0
        %4640 = vmatpush1.bf16.msra.mxu0 0
        %4641 = vmatprep.subr.bf16.mxu0 0
        %4642 = vmatpush1.bf16.msra.mxu0 0
        %4643 = vmatprep.subr.bf16.mxu0 0
        %4644 = vmatpush1.bf16.msra.mxu0 0
        %4645 = vmatprep.subr.bf16.mxu0 0
        %4646 = vmatpush1.bf16.msra.mxu0 0
        %4647 = vmatprep.subr.bf16.mxu0 0
        %4648 = vmatpush1.bf16.msra.mxu0 0
        %4649 = vmatprep.subr.bf16.mxu0 %v4617
        %4650 = vmatpush1.bf16.msra.mxu0 %v4616
        %4651 = vmatprep.subr.bf16.mxu0 0
        %4652 = vmatpush2.bf16.msra.mxu0 0
        %4653 = vmatprep.subr.bf16.mxu0 0
        %4654 = vmatpush2.bf16.msra.mxu0 0
        %4655 = vmatprep.subr.bf16.mxu0 0
        %4656 = vmatpush2.bf16.msra.mxu0 0
        %4657 = vmatprep.subr.bf16.mxu0 0
        %4658 = vmatpush2.bf16.msra.mxu0 0
        %4659 = vmatprep.subr.bf16.mxu0 0
        %4660 = vmatpush2.bf16.msra.mxu0 0
        %4661 = vmatprep.subr.bf16.mxu0 0
        %4662 = vmatpush2.bf16.msra.mxu0 0
        %4663 = vmatprep.subr.bf16.mxu0 0
        %4664 = vmatpush2.bf16.msra.mxu0 0
        %4665 = vmatprep.subr.bf16.mxu0 0
        %4666 = vmatpush2.bf16.msra.mxu0 0
        %4667 = vmatprep.mubr.bf16.mxu0 0
        %4668 = vmatmul.mubr.bf16.gmra.mxu0 %v4633
        %v4669 = vpop.f32.mrf.mxu0
        %v4670 = vadd.f32 0.0, %v4669
        %v4671 = vpop.f32.mrf.mxu0
        %v4672 = vadd.f32 0.0, %v4671
        %v4673 = vpop.f32.mrf.mxu0
        %v4674 = vpop.f32.mrf.mxu0
        %4675 = vdwg.mxu0
        %4676 = vmatprep.subr.bf16.mxu0 0
        %4677 = vmatpush1.bf16.msra.mxu0 0
        %4678 = vmatprep.subr.bf16.mxu0 0
        %4679 = vmatpush1.bf16.msra.mxu0 0
        %4680 = vmatprep.subr.bf16.mxu0 0
        %4681 = vmatpush1.bf16.msra.mxu0 0
        %4682 = vmatprep.subr.bf16.mxu0 0
        %4683 = vmatpush1.bf16.msra.mxu0 0
        %4684 = vmatprep.subr.bf16.mxu0 0
        %4685 = vmatpush1.bf16.msra.mxu0 0
        %4686 = vmatprep.subr.bf16.mxu0 0
        %4687 = vmatpush1.bf16.msra.mxu0 0
        %4688 = vmatprep.subr.bf16.mxu0 0
        %4689 = vmatpush1.bf16.msra.mxu0 0
        %4690 = vmatprep.subr.bf16.mxu0 %v4619
        %4691 = vmatpush1.bf16.msra.mxu0 %v4618
        %4692 = vmatprep.subr.bf16.mxu0 0
        %4693 = vmatpush2.bf16.msra.mxu0 0
        %4694 = vmatprep.subr.bf16.mxu0 0
        %4695 = vmatpush2.bf16.msra.mxu0 0
        %4696 = vmatprep.subr.bf16.mxu0 0
        %4697 = vmatpush2.bf16.msra.mxu0 0
        %4698 = vmatprep.subr.bf16.mxu0 0
        %4699 = vmatpush2.bf16.msra.mxu0 0
        %4700 = vmatprep.subr.bf16.mxu0 0
        %4701 = vmatpush2.bf16.msra.mxu0 0
        %4702 = vmatprep.subr.bf16.mxu0 0
        %4703 = vmatpush2.bf16.msra.mxu0 0
        %4704 = vmatprep.subr.bf16.mxu0 0
        %4705 = vmatpush2.bf16.msra.mxu0 0
        %4706 = vmatprep.subr.bf16.mxu0 0
        %4707 = vmatpush2.bf16.msra.mxu0 0
        %4708 = vmatprep.mubr.bf16.mxu0 0
        %4709 = vmatmul.mubr.bf16.gmra.mxu0 %v4633
        %v4710 = vpop.f32.mrf.mxu0
        %v4711 = vadd.f32 0.0, %v4710
        %v4712 = vpop.f32.mrf.mxu0
        %v4713 = vadd.f32 0.0, %v4712
        %v4714 = vpop.f32.mrf.mxu0
        %v4715 = vpop.f32.mrf.mxu0
        %4716 = vdwg.mxu0
        %4717 = vmatprep.subr.bf16.mxu0 0
        %4718 = vmatpush1.bf16.msra.mxu0 0
        %4719 = vmatprep.subr.bf16.mxu0 0
        %4720 = vmatpush1.bf16.msra.mxu0 0
        %4721 = vmatprep.subr.bf16.mxu0 0
        %4722 = vmatpush1.bf16.msra.mxu0 0
        %4723 = vmatprep.subr.bf16.mxu0 0
        %4724 = vmatpush1.bf16.msra.mxu0 0
        %4725 = vmatprep.subr.bf16.mxu0 0
        %4726 = vmatpush1.bf16.msra.mxu0 0
        %4727 = vmatprep.subr.bf16.mxu0 0
        %4728 = vmatpush1.bf16.msra.mxu0 0
        %4729 = vmatprep.subr.bf16.mxu0 0
        %4730 = vmatpush1.bf16.msra.mxu0 0
        %4731 = vmatprep.subr.bf16.mxu0 %v4621
        %4732 = vmatpush1.bf16.msra.mxu0 %v4620
        %4733 = vmatprep.subr.bf16.mxu0 0
        %4734 = vmatpush2.bf16.msra.mxu0 0
        %4735 = vmatprep.subr.bf16.mxu0 0
        %4736 = vmatpush2.bf16.msra.mxu0 0
        %4737 = vmatprep.subr.bf16.mxu0 0
        %4738 = vmatpush2.bf16.msra.mxu0 0
        %4739 = vmatprep.subr.bf16.mxu0 0
        %4740 = vmatpush2.bf16.msra.mxu0 0
        %4741 = vmatprep.subr.bf16.mxu0 0
        %4742 = vmatpush2.bf16.msra.mxu0 0
        %4743 = vmatprep.subr.bf16.mxu0 0
        %4744 = vmatpush2.bf16.msra.mxu0 0
        %4745 = vmatprep.subr.bf16.mxu0 0
        %4746 = vmatpush2.bf16.msra.mxu0 0
        %4747 = vmatprep.subr.bf16.mxu0 0
        %4748 = vmatpush2.bf16.msra.mxu0 0
        %4749 = vmatprep.mubr.bf16.mxu0 0
        %4750 = vmatmul.mubr.bf16.gmra.mxu0 %v4633
        %v4751 = vpop.f32.mrf.mxu0
        %v4752 = vadd.f32 0.0, %v4751
        %v4753 = vpop.f32.mrf.mxu0
        %v4754 = vadd.f32 0.0, %v4753
        %v4755 = vpop.f32.mrf.mxu0
        %v4756 = vpop.f32.mrf.mxu0
        %4757 = vdwg.mxu0
        %4758 = vmatprep.subr.bf16.mxu0 0
        %4759 = vmatpush1.bf16.msra.mxu0 0
        %4760 = vmatprep.subr.bf16.mxu0 0
        %4761 = vmatpush1.bf16.msra.mxu0 0
        %4762 = vmatprep.subr.bf16.mxu0 0
        %4763 = vmatpush1.bf16.msra.mxu0 0
        %4764 = vmatprep.subr.bf16.mxu0 0
        %4765 = vmatpush1.bf16.msra.mxu0 0
        %4766 = vmatprep.subr.bf16.mxu0 0
        %4767 = vmatpush1.bf16.msra.mxu0 0
        %4768 = vmatprep.subr.bf16.mxu0 0
        %4769 = vmatpush1.bf16.msra.mxu0 0
        %4770 = vmatprep.subr.bf16.mxu0 0
        %4771 = vmatpush1.bf16.msra.mxu0 0
        %4772 = vmatprep.subr.bf16.mxu0 %v4623
        %4773 = vmatpush1.bf16.msra.mxu0 %v4622
        %4774 = vmatprep.subr.bf16.mxu0 0
        %4775 = vmatpush2.bf16.msra.mxu0 0
        %4776 = vmatprep.subr.bf16.mxu0 0
        %4777 = vmatpush2.bf16.msra.mxu0 0
        %4778 = vmatprep.subr.bf16.mxu0 0
        %4779 = vmatpush2.bf16.msra.mxu0 0
        %4780 = vmatprep.subr.bf16.mxu0 0
        %4781 = vmatpush2.bf16.msra.mxu0 0
        %4782 = vmatprep.subr.bf16.mxu0 0
        %4783 = vmatpush2.bf16.msra.mxu0 0
        %4784 = vmatprep.subr.bf16.mxu0 0
        %4785 = vmatpush2.bf16.msra.mxu0 0
        %4786 = vmatprep.subr.bf16.mxu0 0
        %4787 = vmatpush2.bf16.msra.mxu0 0
        %4788 = vmatprep.subr.bf16.mxu0 0
        %4789 = vmatpush2.bf16.msra.mxu0 0
        %4790 = vmatprep.mubr.bf16.mxu0 0
        %4791 = vmatmul.mubr.bf16.gmra.mxu0 %v4633
        %v4792 = vpop.f32.mrf.mxu0
        %v4793 = vadd.f32 0.0, %v4792
        %v4794 = vpop.f32.mrf.mxu0
        %v4795 = vadd.f32 0.0, %v4794
        %v4796 = vpop.f32.mrf.mxu0
        %v4797 = vpop.f32.mrf.mxu0
        %4798 = vdwg.mxu0
        %v4799 = vadd.f32 %v4566, %v4670
        %v4800 = vadd.f32 %v4567, %v4672
        %v4801 = vadd.f32 %v4568, %v4711
        %v4802 = vadd.f32 %v4569, %v4713
        %v4803 = vadd.f32 %v4570, %v4752
        %v4804 = vadd.f32 %v4571, %v4754
        %v4805 = vadd.f32 %v4572, %v4793
        %v4806 = vadd.f32 %v4573, %v4795
        %s4807 = scalar_lea.vmem [#allocation2], 15
        %v4808 = vld [vmem:[%s4807] ss:$16 sm:$0x3]
        %v4809 = vld [vmem:[%s4807] ss:$16 sm:$0xc]
        %v4810 = vor.u32 %v4808, %v4809
        %v4811 = vld [vmem:[%s4807] ss:$16 sm:$0x30]
        %v4812 = vor.u32 %v4810, %v4811
        %v4813 = vld [vmem:[%s4807] ss:$16 sm:$0xc0]
        %v4814 = vor.u32 %v4812, %v4813
        %v4815 = vpack.c.bf16 %v4814, %v4814
        %s4816 = scalar_lea.vmem %s4, 960
        %v4817 = vld [vmem:[%s4816] sm:$0xff]
        %v4818 = vld [vmem:[%s4816 + $0x8] sm:$0xff]
        %v4819 = vld [vmem:[%s4816 + $0x10] sm:$0xff]
        %v4820 = vld [vmem:[%s4816 + $0x18] sm:$0xff]
        %v4821 = vld [vmem:[%s4816 + $0x20] sm:$0xff]
        %v4822 = vld [vmem:[%s4816 + $0x28] sm:$0xff]
        %v4823 = vld [vmem:[%s4816 + $0x30] sm:$0xff]
        %v4824 = vld [vmem:[%s4816 + $0x38] sm:$0xff]
        %v4833 = vunpack.c.l.b16 %v4817
        %v4834 = vunpack.c.h.b16 %v4817
        %v4835 = vunpack.c.l.b16 %v4818
        %v4836 = vunpack.c.h.b16 %v4818
        %v4837 = vunpack.c.l.b16 %v4819
        %v4838 = vunpack.c.h.b16 %v4819
        %v4839 = vunpack.c.l.b16 %v4820
        %v4840 = vunpack.c.h.b16 %v4820
        %v4841 = vunpack.c.l.b16 %v4821
        %v4842 = vunpack.c.h.b16 %v4821
        %v4843 = vunpack.c.l.b16 %v4822
        %v4844 = vunpack.c.h.b16 %v4822
        %v4845 = vunpack.c.l.b16 %v4823
        %v4846 = vunpack.c.h.b16 %v4823
        %v4847 = vunpack.c.l.b16 %v4824
        %v4848 = vunpack.c.h.b16 %v4824
        %v4849 = vpack.c.b16 %v4841, %v4833
        %v4850 = vpack.c.b16 %v4842, %v4834
        %v4851 = vpack.c.b16 %v4843, %v4835
        %v4852 = vpack.c.b16 %v4844, %v4836
        %v4853 = vpack.c.b16 %v4845, %v4837
        %v4854 = vpack.c.b16 %v4846, %v4838
        %v4855 = vpack.c.b16 %v4847, %v4839
        %v4856 = vpack.c.b16 %v4848, %v4840
        %v4866 = vsel %vm634, %v4815, 0
        %4868 = vmatprep.subr.bf16.mxu0 0
        %4869 = vmatpush1.bf16.msra.mxu0 0
        %4870 = vmatprep.subr.bf16.mxu0 0
        %4871 = vmatpush1.bf16.msra.mxu0 0
        %4872 = vmatprep.subr.bf16.mxu0 0
        %4873 = vmatpush1.bf16.msra.mxu0 0
        %4874 = vmatprep.subr.bf16.mxu0 0
        %4875 = vmatpush1.bf16.msra.mxu0 0
        %4876 = vmatprep.subr.bf16.mxu0 0
        %4877 = vmatpush1.bf16.msra.mxu0 0
        %4878 = vmatprep.subr.bf16.mxu0 0
        %4879 = vmatpush1.bf16.msra.mxu0 0
        %4880 = vmatprep.subr.bf16.mxu0 0
        %4881 = vmatpush1.bf16.msra.mxu0 0
        %4882 = vmatprep.subr.bf16.mxu0 %v4850
        %4883 = vmatpush1.bf16.msra.mxu0 %v4849
        %4884 = vmatprep.subr.bf16.mxu0 0
        %4885 = vmatpush2.bf16.msra.mxu0 0
        %4886 = vmatprep.subr.bf16.mxu0 0
        %4887 = vmatpush2.bf16.msra.mxu0 0
        %4888 = vmatprep.subr.bf16.mxu0 0
        %4889 = vmatpush2.bf16.msra.mxu0 0
        %4890 = vmatprep.subr.bf16.mxu0 0
        %4891 = vmatpush2.bf16.msra.mxu0 0
        %4892 = vmatprep.subr.bf16.mxu0 0
        %4893 = vmatpush2.bf16.msra.mxu0 0
        %4894 = vmatprep.subr.bf16.mxu0 0
        %4895 = vmatpush2.bf16.msra.mxu0 0
        %4896 = vmatprep.subr.bf16.mxu0 0
        %4897 = vmatpush2.bf16.msra.mxu0 0
        %4898 = vmatprep.subr.bf16.mxu0 0
        %4899 = vmatpush2.bf16.msra.mxu0 0
        %4900 = vmatprep.mubr.bf16.mxu0 0
        %4901 = vmatmul.mubr.bf16.gmra.mxu0 %v4866
        %v4902 = vpop.f32.mrf.mxu0
        %v4903 = vadd.f32 0.0, %v4902
        %v4904 = vpop.f32.mrf.mxu0
        %v4905 = vadd.f32 0.0, %v4904
        %v4906 = vpop.f32.mrf.mxu0
        %v4907 = vpop.f32.mrf.mxu0
        %4908 = vdwg.mxu0
        %4909 = vmatprep.subr.bf16.mxu0 0
        %4910 = vmatpush1.bf16.msra.mxu0 0
        %4911 = vmatprep.subr.bf16.mxu0 0
        %4912 = vmatpush1.bf16.msra.mxu0 0
        %4913 = vmatprep.subr.bf16.mxu0 0
        %4914 = vmatpush1.bf16.msra.mxu0 0
        %4915 = vmatprep.subr.bf16.mxu0 0
        %4916 = vmatpush1.bf16.msra.mxu0 0
        %4917 = vmatprep.subr.bf16.mxu0 0
        %4918 = vmatpush1.bf16.msra.mxu0 0
        %4919 = vmatprep.subr.bf16.mxu0 0
        %4920 = vmatpush1.bf16.msra.mxu0 0
        %4921 = vmatprep.subr.bf16.mxu0 0
        %4922 = vmatpush1.bf16.msra.mxu0 0
        %4923 = vmatprep.subr.bf16.mxu0 %v4852
        %4924 = vmatpush1.bf16.msra.mxu0 %v4851
        %4925 = vmatprep.subr.bf16.mxu0 0
        %4926 = vmatpush2.bf16.msra.mxu0 0
        %4927 = vmatprep.subr.bf16.mxu0 0
        %4928 = vmatpush2.bf16.msra.mxu0 0
        %4929 = vmatprep.subr.bf16.mxu0 0
        %4930 = vmatpush2.bf16.msra.mxu0 0
        %4931 = vmatprep.subr.bf16.mxu0 0
        %4932 = vmatpush2.bf16.msra.mxu0 0
        %4933 = vmatprep.subr.bf16.mxu0 0
        %4934 = vmatpush2.bf16.msra.mxu0 0
        %4935 = vmatprep.subr.bf16.mxu0 0
        %4936 = vmatpush2.bf16.msra.mxu0 0
        %4937 = vmatprep.subr.bf16.mxu0 0
        %4938 = vmatpush2.bf16.msra.mxu0 0
        %4939 = vmatprep.subr.bf16.mxu0 0
        %4940 = vmatpush2.bf16.msra.mxu0 0
        %4941 = vmatprep.mubr.bf16.mxu0 0
        %4942 = vmatmul.mubr.bf16.gmra.mxu0 %v4866
        %v4943 = vpop.f32.mrf.mxu0
        %v4944 = vadd.f32 0.0, %v4943
        %v4945 = vpop.f32.mrf.mxu0
        %v4946 = vadd.f32 0.0, %v4945
        %v4947 = vpop.f32.mrf.mxu0
        %v4948 = vpop.f32.mrf.mxu0
        %4949 = vdwg.mxu0
        %4950 = vmatprep.subr.bf16.mxu0 0
        %4951 = vmatpush1.bf16.msra.mxu0 0
        %4952 = vmatprep.subr.bf16.mxu0 0
        %4953 = vmatpush1.bf16.msra.mxu0 0
        %4954 = vmatprep.subr.bf16.mxu0 0
        %4955 = vmatpush1.bf16.msra.mxu0 0
        %4956 = vmatprep.subr.bf16.mxu0 0
        %4957 = vmatpush1.bf16.msra.mxu0 0
        %4958 = vmatprep.subr.bf16.mxu0 0
        %4959 = vmatpush1.bf16.msra.mxu0 0
        %4960 = vmatprep.subr.bf16.mxu0 0
        %4961 = vmatpush1.bf16.msra.mxu0 0
        %4962 = vmatprep.subr.bf16.mxu0 0
        %4963 = vmatpush1.bf16.msra.mxu0 0
        %4964 = vmatprep.subr.bf16.mxu0 %v4854
        %4965 = vmatpush1.bf16.msra.mxu0 %v4853
        %4966 = vmatprep.subr.bf16.mxu0 0
        %4967 = vmatpush2.bf16.msra.mxu0 0
        %4968 = vmatprep.subr.bf16.mxu0 0
        %4969 = vmatpush2.bf16.msra.mxu0 0
        %4970 = vmatprep.subr.bf16.mxu0 0
        %4971 = vmatpush2.bf16.msra.mxu0 0
        %4972 = vmatprep.subr.bf16.mxu0 0
        %4973 = vmatpush2.bf16.msra.mxu0 0
        %4974 = vmatprep.subr.bf16.mxu0 0
        %4975 = vmatpush2.bf16.msra.mxu0 0
        %4976 = vmatprep.subr.bf16.mxu0 0
        %4977 = vmatpush2.bf16.msra.mxu0 0
        %4978 = vmatprep.subr.bf16.mxu0 0
        %4979 = vmatpush2.bf16.msra.mxu0 0
        %4980 = vmatprep.subr.bf16.mxu0 0
        %4981 = vmatpush2.bf16.msra.mxu0 0
        %4982 = vmatprep.mubr.bf16.mxu0 0
        %4983 = vmatmul.mubr.bf16.gmra.mxu0 %v4866
        %v4984 = vpop.f32.mrf.mxu0
        %v4985 = vadd.f32 0.0, %v4984
        %v4986 = vpop.f32.mrf.mxu0
        %v4987 = vadd.f32 0.0, %v4986
        %v4988 = vpop.f32.mrf.mxu0
        %v4989 = vpop.f32.mrf.mxu0
        %4990 = vdwg.mxu0
        %4991 = vmatprep.subr.bf16.mxu0 0
        %4992 = vmatpush1.bf16.msra.mxu0 0
        %4993 = vmatprep.subr.bf16.mxu0 0
        %4994 = vmatpush1.bf16.msra.mxu0 0
        %4995 = vmatprep.subr.bf16.mxu0 0
        %4996 = vmatpush1.bf16.msra.mxu0 0
        %4997 = vmatprep.subr.bf16.mxu0 0
        %4998 = vmatpush1.bf16.msra.mxu0 0
        %4999 = vmatprep.subr.bf16.mxu0 0
        %5000 = vmatpush1.bf16.msra.mxu0 0
        %5001 = vmatprep.subr.bf16.mxu0 0
        %5002 = vmatpush1.bf16.msra.mxu0 0
        %5003 = vmatprep.subr.bf16.mxu0 0
        %5004 = vmatpush1.bf16.msra.mxu0 0
        %5005 = vmatprep.subr.bf16.mxu0 %v4856
        %5006 = vmatpush1.bf16.msra.mxu0 %v4855
        %5007 = vmatprep.subr.bf16.mxu0 0
        %5008 = vmatpush2.bf16.msra.mxu0 0
        %5009 = vmatprep.subr.bf16.mxu0 0
        %5010 = vmatpush2.bf16.msra.mxu0 0
        %5011 = vmatprep.subr.bf16.mxu0 0
        %5012 = vmatpush2.bf16.msra.mxu0 0
        %5013 = vmatprep.subr.bf16.mxu0 0
        %5014 = vmatpush2.bf16.msra.mxu0 0
        %5015 = vmatprep.subr.bf16.mxu0 0
        %5016 = vmatpush2.bf16.msra.mxu0 0
        %5017 = vmatprep.subr.bf16.mxu0 0
        %5018 = vmatpush2.bf16.msra.mxu0 0
        %5019 = vmatprep.subr.bf16.mxu0 0
        %5020 = vmatpush2.bf16.msra.mxu0 0
        %5021 = vmatprep.subr.bf16.mxu0 0
        %5022 = vmatpush2.bf16.msra.mxu0 0
        %5023 = vmatprep.mubr.bf16.mxu0 0
        %5024 = vmatmul.mubr.bf16.gmra.mxu0 %v4866
        %v5025 = vpop.f32.mrf.mxu0
        %v5026 = vadd.f32 0.0, %v5025
        %v5027 = vpop.f32.mrf.mxu0
        %v5028 = vadd.f32 0.0, %v5027
        %v5029 = vpop.f32.mrf.mxu0
        %v5030 = vpop.f32.mrf.mxu0
        %5031 = vdwg.mxu0
        %v5032 = vadd.f32 %v4799, %v4903
        %v5033 = vadd.f32 %v4800, %v4905
        %v5034 = vadd.f32 %v4801, %v4944
        %v5035 = vadd.f32 %v4802, %v4946
        %v5036 = vadd.f32 %v4803, %v4985
        %v5037 = vadd.f32 %v4804, %v4987
        %v5038 = vadd.f32 %v4805, %v5026
        %v5039 = vadd.f32 %v4806, %v5028
        %v5040 = vld [vmem:[%s5] sm:$0xff]
        %v5042 = vlaneseq
        %v5043 = vshrl.u32 %v5042, 7
        %v5044 = vsub.s32 0, %v5043
        %v5045 = vrot.slane %v5040, %v5044
        %v5046 = vlaneseq
        %v5047 = vshrl.u32 %v5046, 7
        %v5048 = vsub.s32 1, %v5047
        %v5049 = vrot.slane %v5040, %v5048
        %v5050 = vlaneseq
        %v5051 = vshrl.u32 %v5050, 7
        %v5052 = vsub.s32 2, %v5051
        %v5053 = vrot.slane %v5040, %v5052
        %v5054 = vlaneseq
        %v5055 = vshrl.u32 %v5054, 7
        %v5056 = vsub.s32 3, %v5055
        %v5057 = vrot.slane %v5040, %v5056
        %v5058 = vlaneseq
        %v5059 = vshrl.u32 %v5058, 7
        %v5060 = vsub.s32 4, %v5059
        %v5061 = vrot.slane %v5040, %v5060
        %v5062 = vlaneseq
        %v5063 = vshrl.u32 %v5062, 7
        %v5064 = vsub.s32 5, %v5063
        %v5065 = vrot.slane %v5040, %v5064
        %v5066 = vlaneseq
        %v5067 = vshrl.u32 %v5066, 7
        %v5068 = vsub.s32 6, %v5067
        %v5069 = vrot.slane %v5040, %v5068
        %v5070 = vlaneseq
        %v5071 = vshrl.u32 %v5070, 7
        %v5072 = vsub.s32 7, %v5071
        %v5073 = vrot.slane %v5040, %v5072
        %v5082 = vadd.f32 %v5032, %v5045
        %v5083 = vadd.f32 %v5033, %v5049
        %v5084 = vadd.f32 %v5034, %v5053
        %v5085 = vadd.f32 %v5035, %v5057
        %v5086 = vadd.f32 %v5036, %v5061
        %v5087 = vadd.f32 %v5037, %v5065
        %v5088 = vadd.f32 %v5038, %v5069
        %v5089 = vadd.f32 %v5039, %v5073
        %v5090 = vmax.f32 %v5082, 0.0
        %v5091 = vmax.f32 %v5083, 0.0
        %v5092 = vmax.f32 %v5084, 0.0
        %v5093 = vmax.f32 %v5085, 0.0
        %v5094 = vmax.f32 %v5086, 0.0
        %v5095 = vmax.f32 %v5087, 0.0
        %v5096 = vmax.f32 %v5088, 0.0
        %v5097 = vmax.f32 %v5089, 0.0
        %v5098 = vpack.c.bf16 %v5090, %v5090
        %v5099 = vpack.c.bf16 %v5091, %v5091
        %v5100 = vpack.c.bf16 %v5092, %v5092
        %v5101 = vpack.c.bf16 %v5093, %v5093
        %v5102 = vpack.c.bf16 %v5094, %v5094
        %v5103 = vpack.c.bf16 %v5095, %v5095
        %v5104 = vpack.c.bf16 %v5096, %v5096
        %v5105 = vpack.c.bf16 %v5097, %v5097
        %v5106 = vld [vmem:[%s6] sm:$0xf]
        %v5107 = vld [vmem:[%s6 + $0x4] sm:$0xf]
        %v5108 = vld [vmem:[%s6 + $0x8] sm:$0xf]
        %v5109 = vld [vmem:[%s6 + $0xc] sm:$0xf]
        %v5110 = vld [vmem:[%s6 + $0x10] sm:$0xf]
        %v5111 = vld [vmem:[%s6 + $0x14] sm:$0xf]
        %v5112 = vld [vmem:[%s6 + $0x18] sm:$0xf]
        %v5113 = vld [vmem:[%s6 + $0x1c] sm:$0xf]
        %v5114 = vld [vmem:[%s6 + $0x20] sm:$0xf]
        %v5115 = vld [vmem:[%s6 + $0x24] sm:$0xf]
        %v5116 = vld [vmem:[%s6 + $0x28] sm:$0xf]
        %v5117 = vld [vmem:[%s6 + $0x2c] sm:$0xf]
        %v5118 = vld [vmem:[%s6 + $0x30] sm:$0xf]
        %v5119 = vld [vmem:[%s6 + $0x34] sm:$0xf]
        %v5120 = vld [vmem:[%s6 + $0x38] sm:$0xf]
        %v5121 = vld [vmem:[%s6 + $0x3c] sm:$0xf]
        %v5122 = vld [vmem:[%s6 + $0x40] sm:$0xf]
        %v5123 = vld [vmem:[%s6 + $0x44] sm:$0xf]
        %v5124 = vld [vmem:[%s6 + $0x48] sm:$0xf]
        %v5125 = vld [vmem:[%s6 + $0x4c] sm:$0xf]
        %v5126 = vld [vmem:[%s6 + $0x50] sm:$0xf]
        %v5127 = vld [vmem:[%s6 + $0x54] sm:$0xf]
        %v5128 = vld [vmem:[%s6 + $0x58] sm:$0xf]
        %v5129 = vld [vmem:[%s6 + $0x5c] sm:$0xf]
        %v5130 = vld [vmem:[%s6 + $0x60] sm:$0xf]
        %v5131 = vld [vmem:[%s6 + $0x64] sm:$0xf]
        %v5132 = vld [vmem:[%s6 + $0x68] sm:$0xf]
        %v5133 = vld [vmem:[%s6 + $0x6c] sm:$0xf]
        %v5134 = vld [vmem:[%s6 + $0x70] sm:$0xf]
        %v5135 = vld [vmem:[%s6 + $0x74] sm:$0xf]
        %v5136 = vld [vmem:[%s6 + $0x78] sm:$0xf]
        %v5137 = vld [vmem:[%s6 + $0x7c] sm:$0xf]
        %v5138 = vld [vmem:[%s6 + $0x80] sm:$0xf]
        %v5139 = vld [vmem:[%s6 + $0x84] sm:$0xf]
        %v5140 = vld [vmem:[%s6 + $0x88] sm:$0xf]
        %v5141 = vld [vmem:[%s6 + $0x8c] sm:$0xf]
        %v5142 = vld [vmem:[%s6 + $0x90] sm:$0xf]
        %v5143 = vld [vmem:[%s6 + $0x94] sm:$0xf]
        %v5144 = vld [vmem:[%s6 + $0x98] sm:$0xf]
        %v5145 = vld [vmem:[%s6 + $0x9c] sm:$0xf]
        %v5146 = vld [vmem:[%s6 + $0xa0] sm:$0xf]
        %v5147 = vld [vmem:[%s6 + $0xa4] sm:$0xf]
        %v5148 = vld [vmem:[%s6 + $0xa8] sm:$0xf]
        %v5149 = vld [vmem:[%s6 + $0xac] sm:$0xf]
        %v5150 = vld [vmem:[%s6 + $0xb0] sm:$0xf]
        %v5151 = vld [vmem:[%s6 + $0xb4] sm:$0xf]
        %v5152 = vld [vmem:[%s6 + $0xb8] sm:$0xf]
        %v5153 = vld [vmem:[%s6 + $0xbc] sm:$0xf]
        %v5154 = vld [vmem:[%s6 + $0xc0] sm:$0xf]
        %v5155 = vld [vmem:[%s6 + $0xc4] sm:$0xf]
        %v5156 = vld [vmem:[%s6 + $0xc8] sm:$0xf]
        %v5157 = vld [vmem:[%s6 + $0xcc] sm:$0xf]
        %v5158 = vld [vmem:[%s6 + $0xd0] sm:$0xf]
        %v5159 = vld [vmem:[%s6 + $0xd4] sm:$0xf]
        %v5160 = vld [vmem:[%s6 + $0xd8] sm:$0xf]
        %v5161 = vld [vmem:[%s6 + $0xdc] sm:$0xf]
        %v5162 = vld [vmem:[%s6 + $0xe0] sm:$0xf]
        %v5163 = vld [vmem:[%s6 + $0xe4] sm:$0xf]
        %v5164 = vld [vmem:[%s6 + $0xe8] sm:$0xf]
        %v5165 = vld [vmem:[%s6 + $0xec] sm:$0xf]
        %v5166 = vld [vmem:[%s6 + $0xf0] sm:$0xf]
        %v5167 = vld [vmem:[%s6 + $0xf4] sm:$0xf]
        %v5168 = vld [vmem:[%s6 + $0xf8] sm:$0xf]
        %v5169 = vld [vmem:[%s6 + $0xfc] sm:$0xf]
        %v5170 = vld [vmem:[%s6 + $0x100] sm:$0xf]
        %v5171 = vld [vmem:[%s6 + $0x104] sm:$0xf]
        %v5172 = vld [vmem:[%s6 + $0x108] sm:$0xf]
        %v5173 = vld [vmem:[%s6 + $0x10c] sm:$0xf]
        %v5174 = vld [vmem:[%s6 + $0x110] sm:$0xf]
        %v5175 = vld [vmem:[%s6 + $0x114] sm:$0xf]
        %v5176 = vld [vmem:[%s6 + $0x118] sm:$0xf]
        %v5177 = vld [vmem:[%s6 + $0x11c] sm:$0xf]
        %v5178 = vld [vmem:[%s6 + $0x120] sm:$0xf]
        %v5179 = vld [vmem:[%s6 + $0x124] sm:$0xf]
        %v5180 = vld [vmem:[%s6 + $0x128] sm:$0xf]
        %v5181 = vld [vmem:[%s6 + $0x12c] sm:$0xf]
        %v5182 = vld [vmem:[%s6 + $0x130] sm:$0xf]
        %v5183 = vld [vmem:[%s6 + $0x134] sm:$0xf]
        %v5184 = vld [vmem:[%s6 + $0x138] sm:$0xf]
        %v5185 = vld [vmem:[%s6 + $0x13c] sm:$0xf]
        %v5186 = vld [vmem:[%s6 + $0x140] sm:$0xf]
        %v5187 = vld [vmem:[%s6 + $0x144] sm:$0xf]
        %v5188 = vld [vmem:[%s6 + $0x148] sm:$0xf]
        %v5189 = vld [vmem:[%s6 + $0x14c] sm:$0xf]
        %v5190 = vld [vmem:[%s6 + $0x150] sm:$0xf]
        %v5191 = vld [vmem:[%s6 + $0x154] sm:$0xf]
        %v5192 = vld [vmem:[%s6 + $0x158] sm:$0xf]
        %v5193 = vld [vmem:[%s6 + $0x15c] sm:$0xf]
        %v5194 = vld [vmem:[%s6 + $0x160] sm:$0xf]
        %v5195 = vld [vmem:[%s6 + $0x164] sm:$0xf]
        %v5196 = vld [vmem:[%s6 + $0x168] sm:$0xf]
        %v5197 = vld [vmem:[%s6 + $0x16c] sm:$0xf]
        %v5198 = vld [vmem:[%s6 + $0x170] sm:$0xf]
        %v5199 = vld [vmem:[%s6 + $0x174] sm:$0xf]
        %v5200 = vld [vmem:[%s6 + $0x178] sm:$0xf]
        %v5201 = vld [vmem:[%s6 + $0x17c] sm:$0xf]
        %v5202 = vld [vmem:[%s6 + $0x180] sm:$0xf]
        %v5203 = vld [vmem:[%s6 + $0x184] sm:$0xf]
        %v5204 = vld [vmem:[%s6 + $0x188] sm:$0xf]
        %v5205 = vld [vmem:[%s6 + $0x18c] sm:$0xf]
        %v5206 = vld [vmem:[%s6 + $0x190] sm:$0xf]
        %v5207 = vld [vmem:[%s6 + $0x194] sm:$0xf]
        %v5208 = vld [vmem:[%s6 + $0x198] sm:$0xf]
        %v5209 = vld [vmem:[%s6 + $0x19c] sm:$0xf]
        %v5210 = vld [vmem:[%s6 + $0x1a0] sm:$0xf]
        %v5211 = vld [vmem:[%s6 + $0x1a4] sm:$0xf]
        %v5212 = vld [vmem:[%s6 + $0x1a8] sm:$0xf]
        %v5213 = vld [vmem:[%s6 + $0x1ac] sm:$0xf]
        %v5214 = vld [vmem:[%s6 + $0x1b0] sm:$0xf]
        %v5215 = vld [vmem:[%s6 + $0x1b4] sm:$0xf]
        %v5216 = vld [vmem:[%s6 + $0x1b8] sm:$0xf]
        %v5217 = vld [vmem:[%s6 + $0x1bc] sm:$0xf]
        %v5218 = vld [vmem:[%s6 + $0x1c0] sm:$0xf]
        %v5219 = vld [vmem:[%s6 + $0x1c4] sm:$0xf]
        %v5220 = vld [vmem:[%s6 + $0x1c8] sm:$0xf]
        %v5221 = vld [vmem:[%s6 + $0x1cc] sm:$0xf]
        %v5222 = vld [vmem:[%s6 + $0x1d0] sm:$0xf]
        %v5223 = vld [vmem:[%s6 + $0x1d4] sm:$0xf]
        %v5224 = vld [vmem:[%s6 + $0x1d8] sm:$0xf]
        %v5225 = vld [vmem:[%s6 + $0x1dc] sm:$0xf]
        %v5226 = vld [vmem:[%s6 + $0x1e0] sm:$0xf]
        %v5227 = vld [vmem:[%s6 + $0x1e4] sm:$0xf]
        %v5228 = vld [vmem:[%s6 + $0x1e8] sm:$0xf]
        %v5229 = vld [vmem:[%s6 + $0x1ec] sm:$0xf]
        %v5230 = vld [vmem:[%s6 + $0x1f0] sm:$0xf]
        %v5231 = vld [vmem:[%s6 + $0x1f4] sm:$0xf]
        %v5232 = vld [vmem:[%s6 + $0x1f8] sm:$0xf]
        %v5233 = vld [vmem:[%s6 + $0x1fc] sm:$0xf]
        %v5234 = vld [vmem:[%s7] sm:$0x1]
        %v5236 = vlaneseq
        %v5237 = vshrl.u32 %v5236, 7
        %v5238 = vsub.s32 0, %v5237
        %v5239 = vrot.slane %v5234, %v5238
        %v5369 = vunpack.c.l.b16 %v5106
        %v5370 = vunpack.c.l.b16 %v5107
        %v5371 = vunpack.c.l.b16 %v5108
        %v5372 = vunpack.c.l.b16 %v5109
        %v5373 = vunpack.c.l.b16 %v5110
        %v5374 = vunpack.c.l.b16 %v5111
        %v5375 = vunpack.c.l.b16 %v5112
        %v5376 = vunpack.c.l.b16 %v5113
        %v5377 = vunpack.c.l.b16 %v5114
        %v5378 = vunpack.c.l.b16 %v5115
        %v5379 = vunpack.c.l.b16 %v5116
        %v5380 = vunpack.c.l.b16 %v5117
        %v5381 = vunpack.c.l.b16 %v5118
        %v5382 = vunpack.c.l.b16 %v5119
        %v5383 = vunpack.c.l.b16 %v5120
        %v5384 = vunpack.c.l.b16 %v5121
        %v5385 = vunpack.c.l.b16 %v5122
        %v5386 = vunpack.c.l.b16 %v5123
        %v5387 = vunpack.c.l.b16 %v5124
        %v5388 = vunpack.c.l.b16 %v5125
        %v5389 = vunpack.c.l.b16 %v5126
        %v5390 = vunpack.c.l.b16 %v5127
        %v5391 = vunpack.c.l.b16 %v5128
        %v5392 = vunpack.c.l.b16 %v5129
        %v5393 = vunpack.c.l.b16 %v5130
        %v5394 = vunpack.c.l.b16 %v5131
        %v5395 = vunpack.c.l.b16 %v5132
        %v5396 = vunpack.c.l.b16 %v5133
        %v5397 = vunpack.c.l.b16 %v5134
        %v5398 = vunpack.c.l.b16 %v5135
        %v5399 = vunpack.c.l.b16 %v5136
        %v5400 = vunpack.c.l.b16 %v5137
        %v5401 = vunpack.c.l.b16 %v5138
        %v5402 = vunpack.c.l.b16 %v5139
        %v5403 = vunpack.c.l.b16 %v5140
        %v5404 = vunpack.c.l.b16 %v5141
        %v5405 = vunpack.c.l.b16 %v5142
        %v5406 = vunpack.c.l.b16 %v5143
        %v5407 = vunpack.c.l.b16 %v5144
        %v5408 = vunpack.c.l.b16 %v5145
        %v5409 = vunpack.c.l.b16 %v5146
        %v5410 = vunpack.c.l.b16 %v5147
        %v5411 = vunpack.c.l.b16 %v5148
        %v5412 = vunpack.c.l.b16 %v5149
        %v5413 = vunpack.c.l.b16 %v5150
        %v5414 = vunpack.c.l.b16 %v5151
        %v5415 = vunpack.c.l.b16 %v5152
        %v5416 = vunpack.c.l.b16 %v5153
        %v5417 = vunpack.c.l.b16 %v5154
        %v5418 = vunpack.c.l.b16 %v5155
        %v5419 = vunpack.c.l.b16 %v5156
        %v5420 = vunpack.c.l.b16 %v5157
        %v5421 = vunpack.c.l.b16 %v5158
        %v5422 = vunpack.c.l.b16 %v5159
        %v5423 = vunpack.c.l.b16 %v5160
        %v5424 = vunpack.c.l.b16 %v5161
        %v5425 = vunpack.c.l.b16 %v5162
        %v5426 = vunpack.c.l.b16 %v5163
        %v5427 = vunpack.c.l.b16 %v5164
        %v5428 = vunpack.c.l.b16 %v5165
        %v5429 = vunpack.c.l.b16 %v5166
        %v5430 = vunpack.c.l.b16 %v5167
        %v5431 = vunpack.c.l.b16 %v5168
        %v5432 = vunpack.c.l.b16 %v5169
        %v5433 = vunpack.c.l.b16 %v5170
        %v5434 = vunpack.c.l.b16 %v5171
        %v5435 = vunpack.c.l.b16 %v5172
        %v5436 = vunpack.c.l.b16 %v5173
        %v5437 = vunpack.c.l.b16 %v5174
        %v5438 = vunpack.c.l.b16 %v5175
        %v5439 = vunpack.c.l.b16 %v5176
        %v5440 = vunpack.c.l.b16 %v5177
        %v5441 = vunpack.c.l.b16 %v5178
        %v5442 = vunpack.c.l.b16 %v5179
        %v5443 = vunpack.c.l.b16 %v5180
        %v5444 = vunpack.c.l.b16 %v5181
        %v5445 = vunpack.c.l.b16 %v5182
        %v5446 = vunpack.c.l.b16 %v5183
        %v5447 = vunpack.c.l.b16 %v5184
        %v5448 = vunpack.c.l.b16 %v5185
        %v5449 = vunpack.c.l.b16 %v5186
        %v5450 = vunpack.c.l.b16 %v5187
        %v5451 = vunpack.c.l.b16 %v5188
        %v5452 = vunpack.c.l.b16 %v5189
        %v5453 = vunpack.c.l.b16 %v5190
        %v5454 = vunpack.c.l.b16 %v5191
        %v5455 = vunpack.c.l.b16 %v5192
        %v5456 = vunpack.c.l.b16 %v5193
        %v5457 = vunpack.c.l.b16 %v5194
        %v5458 = vunpack.c.l.b16 %v5195
        %v5459 = vunpack.c.l.b16 %v5196
        %v5460 = vunpack.c.l.b16 %v5197
        %v5461 = vunpack.c.l.b16 %v5198
        %v5462 = vunpack.c.l.b16 %v5199
        %v5463 = vunpack.c.l.b16 %v5200
        %v5464 = vunpack.c.l.b16 %v5201
        %v5465 = vunpack.c.l.b16 %v5202
        %v5466 = vunpack.c.l.b16 %v5203
        %v5467 = vunpack.c.l.b16 %v5204
        %v5468 = vunpack.c.l.b16 %v5205
        %v5469 = vunpack.c.l.b16 %v5206
        %v5470 = vunpack.c.l.b16 %v5207
        %v5471 = vunpack.c.l.b16 %v5208
        %v5472 = vunpack.c.l.b16 %v5209
        %v5473 = vunpack.c.l.b16 %v5210
        %v5474 = vunpack.c.l.b16 %v5211
        %v5475 = vunpack.c.l.b16 %v5212
        %v5476 = vunpack.c.l.b16 %v5213
        %v5477 = vunpack.c.l.b16 %v5214
        %v5478 = vunpack.c.l.b16 %v5215
        %v5479 = vunpack.c.l.b16 %v5216
        %v5480 = vunpack.c.l.b16 %v5217
        %v5481 = vunpack.c.l.b16 %v5218
        %v5482 = vunpack.c.l.b16 %v5219
        %v5483 = vunpack.c.l.b16 %v5220
        %v5484 = vunpack.c.l.b16 %v5221
        %v5485 = vunpack.c.l.b16 %v5222
        %v5486 = vunpack.c.l.b16 %v5223
        %v5487 = vunpack.c.l.b16 %v5224
        %v5488 = vunpack.c.l.b16 %v5225
        %v5489 = vunpack.c.l.b16 %v5226
        %v5490 = vunpack.c.l.b16 %v5227
        %v5491 = vunpack.c.l.b16 %v5228
        %v5492 = vunpack.c.l.b16 %v5229
        %v5493 = vunpack.c.l.b16 %v5230
        %v5494 = vunpack.c.l.b16 %v5231
        %v5495 = vunpack.c.l.b16 %v5232
        %v5496 = vunpack.c.l.b16 %v5233
        %v5497 = vpack.c.b16 %v5370, %v5369
        %v5498 = vpack.c.b16 %v5372, %v5371
        %v5499 = vpack.c.b16 %v5374, %v5373
        %v5500 = vpack.c.b16 %v5376, %v5375
        %v5501 = vpack.c.b16 %v5378, %v5377
        %v5502 = vpack.c.b16 %v5380, %v5379
        %v5503 = vpack.c.b16 %v5382, %v5381
        %v5504 = vpack.c.b16 %v5384, %v5383
        %v5505 = vpack.c.b16 %v5386, %v5385
        %v5506 = vpack.c.b16 %v5388, %v5387
        %v5507 = vpack.c.b16 %v5390, %v5389
        %v5508 = vpack.c.b16 %v5392, %v5391
        %v5509 = vpack.c.b16 %v5394, %v5393
        %v5510 = vpack.c.b16 %v5396, %v5395
        %v5511 = vpack.c.b16 %v5398, %v5397
        %v5512 = vpack.c.b16 %v5400, %v5399
        %v5513 = vpack.c.b16 %v5402, %v5401
        %v5514 = vpack.c.b16 %v5404, %v5403
        %v5515 = vpack.c.b16 %v5406, %v5405
        %v5516 = vpack.c.b16 %v5408, %v5407
        %v5517 = vpack.c.b16 %v5410, %v5409
        %v5518 = vpack.c.b16 %v5412, %v5411
        %v5519 = vpack.c.b16 %v5414, %v5413
        %v5520 = vpack.c.b16 %v5416, %v5415
        %v5521 = vpack.c.b16 %v5418, %v5417
        %v5522 = vpack.c.b16 %v5420, %v5419
        %v5523 = vpack.c.b16 %v5422, %v5421
        %v5524 = vpack.c.b16 %v5424, %v5423
        %v5525 = vpack.c.b16 %v5426, %v5425
        %v5526 = vpack.c.b16 %v5428, %v5427
        %v5527 = vpack.c.b16 %v5430, %v5429
        %v5528 = vpack.c.b16 %v5432, %v5431
        %v5529 = vpack.c.b16 %v5434, %v5433
        %v5530 = vpack.c.b16 %v5436, %v5435
        %v5531 = vpack.c.b16 %v5438, %v5437
        %v5532 = vpack.c.b16 %v5440, %v5439
        %v5533 = vpack.c.b16 %v5442, %v5441
        %v5534 = vpack.c.b16 %v5444, %v5443
        %v5535 = vpack.c.b16 %v5446, %v5445
        %v5536 = vpack.c.b16 %v5448, %v5447
        %v5537 = vpack.c.b16 %v5450, %v5449
        %v5538 = vpack.c.b16 %v5452, %v5451
        %v5539 = vpack.c.b16 %v5454, %v5453
        %v5540 = vpack.c.b16 %v5456, %v5455
        %v5541 = vpack.c.b16 %v5458, %v5457
        %v5542 = vpack.c.b16 %v5460, %v5459
        %v5543 = vpack.c.b16 %v5462, %v5461
        %v5544 = vpack.c.b16 %v5464, %v5463
        %v5545 = vpack.c.b16 %v5466, %v5465
        %v5546 = vpack.c.b16 %v5468, %v5467
        %v5547 = vpack.c.b16 %v5470, %v5469
        %v5548 = vpack.c.b16 %v5472, %v5471
        %v5549 = vpack.c.b16 %v5474, %v5473
        %v5550 = vpack.c.b16 %v5476, %v5475
        %v5551 = vpack.c.b16 %v5478, %v5477
        %v5552 = vpack.c.b16 %v5480, %v5479
        %v5553 = vpack.c.b16 %v5482, %v5481
        %v5554 = vpack.c.b16 %v5484, %v5483
        %v5555 = vpack.c.b16 %v5486, %v5485
        %v5556 = vpack.c.b16 %v5488, %v5487
        %v5557 = vpack.c.b16 %v5490, %v5489
        %v5558 = vpack.c.b16 %v5492, %v5491
        %v5559 = vpack.c.b16 %v5494, %v5493
        %v5560 = vpack.c.b16 %v5496, %v5495
        %5625 = vmatprep.subr.bf16.mxu0 0
        %5626 = vmatpush1.bf16.msra.mxu0 %v5504
        %5627 = vmatprep.subr.bf16.mxu0 0
        %5628 = vmatpush1.bf16.msra.mxu0 %v5503
        %5629 = vmatprep.subr.bf16.mxu0 0
        %5630 = vmatpush1.bf16.msra.mxu0 %v5502
        %5631 = vmatprep.subr.bf16.mxu0 0
        %5632 = vmatpush1.bf16.msra.mxu0 %v5501
        %5633 = vmatprep.subr.bf16.mxu0 0
        %5634 = vmatpush1.bf16.msra.mxu0 %v5500
        %5635 = vmatprep.subr.bf16.mxu0 0
        %5636 = vmatpush1.bf16.msra.mxu0 %v5499
        %5637 = vmatprep.subr.bf16.mxu0 0
        %5638 = vmatpush1.bf16.msra.mxu0 %v5498
        %5639 = vmatprep.subr.bf16.mxu0 0
        %5640 = vmatpush1.bf16.msra.mxu0 %v5497
        %5641 = vmatprep.subr.bf16.mxu0 0
        %5642 = vmatpush2.bf16.msra.mxu0 %v5512
        %5643 = vmatprep.subr.bf16.mxu0 0
        %5644 = vmatpush2.bf16.msra.mxu0 %v5511
        %5645 = vmatprep.subr.bf16.mxu0 0
        %5646 = vmatpush2.bf16.msra.mxu0 %v5510
        %5647 = vmatprep.subr.bf16.mxu0 0
        %5648 = vmatpush2.bf16.msra.mxu0 %v5509
        %5649 = vmatprep.subr.bf16.mxu0 0
        %5650 = vmatpush2.bf16.msra.mxu0 %v5508
        %5651 = vmatprep.subr.bf16.mxu0 0
        %5652 = vmatpush2.bf16.msra.mxu0 %v5507
        %5653 = vmatprep.subr.bf16.mxu0 0
        %5654 = vmatpush2.bf16.msra.mxu0 %v5506
        %5655 = vmatprep.subr.bf16.mxu0 0
        %5656 = vmatpush2.bf16.msra.mxu0 %v5505
        %5657 = vmatprep.mubr.bf16.mxu0 %v5099
        %5658 = vmatmul.mubr.bf16.gmra.mxu0 %v5098
        %v5659 = vpop.f32.mrf.mxu0
        %v5660 = vadd.f32 %v5239, %v5659
        %v5661 = vpop.f32.mrf.mxu0
        %v5662 = vpop.f32.mrf.mxu0
        %v5663 = vpop.f32.mrf.mxu0
        %5664 = vdwg.mxu0
        %5665 = vmatprep.subr.bf16.mxu0 0
        %5666 = vmatpush1.bf16.msra.mxu0 %v5520
        %5667 = vmatprep.subr.bf16.mxu0 0
        %5668 = vmatpush1.bf16.msra.mxu0 %v5519
        %5669 = vmatprep.subr.bf16.mxu0 0
        %5670 = vmatpush1.bf16.msra.mxu0 %v5518
        %5671 = vmatprep.subr.bf16.mxu0 0
        %5672 = vmatpush1.bf16.msra.mxu0 %v5517
        %5673 = vmatprep.subr.bf16.mxu0 0
        %5674 = vmatpush1.bf16.msra.mxu0 %v5516
        %5675 = vmatprep.subr.bf16.mxu0 0
        %5676 = vmatpush1.bf16.msra.mxu0 %v5515
        %5677 = vmatprep.subr.bf16.mxu0 0
        %5678 = vmatpush1.bf16.msra.mxu0 %v5514
        %5679 = vmatprep.subr.bf16.mxu0 0
        %5680 = vmatpush1.bf16.msra.mxu0 %v5513
        %5681 = vmatprep.subr.bf16.mxu0 0
        %5682 = vmatpush2.bf16.msra.mxu0 %v5528
        %5683 = vmatprep.subr.bf16.mxu0 0
        %5684 = vmatpush2.bf16.msra.mxu0 %v5527
        %5685 = vmatprep.subr.bf16.mxu0 0
        %5686 = vmatpush2.bf16.msra.mxu0 %v5526
        %5687 = vmatprep.subr.bf16.mxu0 0
        %5688 = vmatpush2.bf16.msra.mxu0 %v5525
        %5689 = vmatprep.subr.bf16.mxu0 0
        %5690 = vmatpush2.bf16.msra.mxu0 %v5524
        %5691 = vmatprep.subr.bf16.mxu0 0
        %5692 = vmatpush2.bf16.msra.mxu0 %v5523
        %5693 = vmatprep.subr.bf16.mxu0 0
        %5694 = vmatpush2.bf16.msra.mxu0 %v5522
        %5695 = vmatprep.subr.bf16.mxu0 0
        %5696 = vmatpush2.bf16.msra.mxu0 %v5521
        %5697 = vmatprep.mubr.bf16.mxu0 %v5101
        %5698 = vmatmul.mubr.bf16.gmra.mxu0 %v5100
        %v5699 = vpop.f32.mrf.mxu0
        %v5700 = vadd.f32 %v5660, %v5699
        %v5701 = vpop.f32.mrf.mxu0
        %v5702 = vpop.f32.mrf.mxu0
        %v5703 = vpop.f32.mrf.mxu0
        %5704 = vdwg.mxu0
        %5705 = vmatprep.subr.bf16.mxu0 0
        %5706 = vmatpush1.bf16.msra.mxu0 %v5536
        %5707 = vmatprep.subr.bf16.mxu0 0
        %5708 = vmatpush1.bf16.msra.mxu0 %v5535
        %5709 = vmatprep.subr.bf16.mxu0 0
        %5710 = vmatpush1.bf16.msra.mxu0 %v5534
        %5711 = vmatprep.subr.bf16.mxu0 0
        %5712 = vmatpush1.bf16.msra.mxu0 %v5533
        %5713 = vmatprep.subr.bf16.mxu0 0
        %5714 = vmatpush1.bf16.msra.mxu0 %v5532
        %5715 = vmatprep.subr.bf16.mxu0 0
        %5716 = vmatpush1.bf16.msra.mxu0 %v5531
        %5717 = vmatprep.subr.bf16.mxu0 0
        %5718 = vmatpush1.bf16.msra.mxu0 %v5530
        %5719 = vmatprep.subr.bf16.mxu0 0
        %5720 = vmatpush1.bf16.msra.mxu0 %v5529
        %5721 = vmatprep.subr.bf16.mxu0 0
        %5722 = vmatpush2.bf16.msra.mxu0 %v5544
        %5723 = vmatprep.subr.bf16.mxu0 0
        %5724 = vmatpush2.bf16.msra.mxu0 %v5543
        %5725 = vmatprep.subr.bf16.mxu0 0
        %5726 = vmatpush2.bf16.msra.mxu0 %v5542
        %5727 = vmatprep.subr.bf16.mxu0 0
        %5728 = vmatpush2.bf16.msra.mxu0 %v5541
        %5729 = vmatprep.subr.bf16.mxu0 0
        %5730 = vmatpush2.bf16.msra.mxu0 %v5540
        %5731 = vmatprep.subr.bf16.mxu0 0
        %5732 = vmatpush2.bf16.msra.mxu0 %v5539
        %5733 = vmatprep.subr.bf16.mxu0 0
        %5734 = vmatpush2.bf16.msra.mxu0 %v5538
        %5735 = vmatprep.subr.bf16.mxu0 0
        %5736 = vmatpush2.bf16.msra.mxu0 %v5537
        %5737 = vmatprep.mubr.bf16.mxu0 %v5103
        %5738 = vmatmul.mubr.bf16.gmra.mxu0 %v5102
        %v5739 = vpop.f32.mrf.mxu0
        %v5740 = vadd.f32 %v5700, %v5739
        %v5741 = vpop.f32.mrf.mxu0
        %v5742 = vpop.f32.mrf.mxu0
        %v5743 = vpop.f32.mrf.mxu0
        %5744 = vdwg.mxu0
        %5745 = vmatprep.subr.bf16.mxu0 0
        %5746 = vmatpush1.bf16.msra.mxu0 %v5552
        %5747 = vmatprep.subr.bf16.mxu0 0
        %5748 = vmatpush1.bf16.msra.mxu0 %v5551
        %5749 = vmatprep.subr.bf16.mxu0 0
        %5750 = vmatpush1.bf16.msra.mxu0 %v5550
        %5751 = vmatprep.subr.bf16.mxu0 0
        %5752 = vmatpush1.bf16.msra.mxu0 %v5549
        %5753 = vmatprep.subr.bf16.mxu0 0
        %5754 = vmatpush1.bf16.msra.mxu0 %v5548
        %5755 = vmatprep.subr.bf16.mxu0 0
        %5756 = vmatpush1.bf16.msra.mxu0 %v5547
        %5757 = vmatprep.subr.bf16.mxu0 0
        %5758 = vmatpush1.bf16.msra.mxu0 %v5546
        %5759 = vmatprep.subr.bf16.mxu0 0
        %5760 = vmatpush1.bf16.msra.mxu0 %v5545
        %5761 = vmatprep.subr.bf16.mxu0 0
        %5762 = vmatpush2.bf16.msra.mxu0 %v5560
        %5763 = vmatprep.subr.bf16.mxu0 0
        %5764 = vmatpush2.bf16.msra.mxu0 %v5559
        %5765 = vmatprep.subr.bf16.mxu0 0
        %5766 = vmatpush2.bf16.msra.mxu0 %v5558
        %5767 = vmatprep.subr.bf16.mxu0 0
        %5768 = vmatpush2.bf16.msra.mxu0 %v5557
        %5769 = vmatprep.subr.bf16.mxu0 0
        %5770 = vmatpush2.bf16.msra.mxu0 %v5556
        %5771 = vmatprep.subr.bf16.mxu0 0
        %5772 = vmatpush2.bf16.msra.mxu0 %v5555
        %5773 = vmatprep.subr.bf16.mxu0 0
        %5774 = vmatpush2.bf16.msra.mxu0 %v5554
        %5775 = vmatprep.subr.bf16.mxu0 0
        %5776 = vmatpush2.bf16.msra.mxu0 %v5553
        %5777 = vmatprep.mubr.bf16.mxu0 %v5105
        %5778 = vmatmul.mubr.bf16.gmra.mxu0 %v5104
        %v5779 = vpop.f32.mrf.mxu0
        %v5780 = vadd.f32 %v5740, %v5779
        %v5781 = vpop.f32.mrf.mxu0
        %v5782 = vpop.f32.mrf.mxu0
        %v5783 = vpop.f32.mrf.mxu0
        %5784 = vdwg.mxu0
        %5785 = vst [vmem:[%s301] sm:$0xff] %v5780
        %s5786 = sand.u32 %s203, 1
        %s5787 = scalar_lea.sflag [#allocation4], %s5786
        %s5788 = sand.u32 %s203, 1
        %s5789 = smul.addr %s5788, 8
        %s5790 = scalar_lea.vmem [#allocation3], %s5789
        // Predicated region
        $region53: #{inception_aux_forward.1} parent=51 // pred_check
          %p5791 = pneg %p213
        $region54: #{inception_aux_forward.1} parent=51 // pred_check_branch
          %5793 = sbr.rel (%p5791) target = $region56
        $region55: #{inception_aux_forward.1} parent=51 // pred_region
          %s5795 = ssub.s32 128, 128
          %5796 = vsyncadd %s5787, %s5795
          %s5797 = smul.addr %s22, 128
          %s5798 = scalar_lea.hbm %s8, %s5797
          %s5800 = sshll.u32 %s5790, 4
          %s5801 = int_to_ptr.vmem [resolvable:$true] %s5800
          %5803 = dma.vmem_to_hbm [thread:$0]  %s5801, 128, %s5798, %s5787
        $region56: #{inception_aux_forward.1} parent=51 // pred_fallthru
          _
      $region52: #{inception_aux_forward.1} parent=5 // pred_fallthru
        _
      %p5804 = scmp.le.s32.totalorder 2, %s17
      // Predicated region
      $region57: #{inception_aux_forward.1} parent=5 // pred_check
        %p5805 = pneg %p5804
      $region58: #{inception_aux_forward.1} parent=5 // pred_check_branch
        %5807 = sbr.rel (%p5805) target = $region60
      $region59: #{inception_aux_forward.1} parent=5 // pred_region
        %s5808 = ssub.s32 %s17, 2
        // Predicated region
        $region61: #{inception_aux_forward.1} parent=59 // pred_check
          %p5809 = pneg %p219
        $region62: #{inception_aux_forward.1} parent=59 // pred_check_branch
          %5811 = sbr.rel (%p5809) target = $region64
        $region63: #{inception_aux_forward.1} parent=59 // pred_region
          %s5812 = sand.u32 %s204, 1
          %s5813 = scalar_lea.sflag [#allocation4], %s5812
          %s5814 = sand.u32 %s204, 1
          %s5815 = smul.addr %s5814, 8
          %s5816 = scalar_lea.vmem [#allocation3], %s5815
          %5817 = dma.done %s5813, 128
        $region64: #{inception_aux_forward.1} parent=59 // pred_fallthru
          _
      $region60: #{inception_aux_forward.1} parent=5 // pred_fallthru
        _
    $region6: #{inception_aux_forward.1} parent=1 // loop_footer
      %s21 = sadd.s32 1, %s17
    $region7: #{inception_aux_forward.1} parent=1 // loop_footer_branch
      %16 = sbr.rel target = $region3
    $region8: #{inception_aux_forward.1} parent=1 // loop_exit
      _
    %5818 = vsyncpa [#allocation4], 1
    %s5819 = scalar_lea.sflag [#allocation4], 1
    %5820 = vsyncpa %s5819, 1

</llo_original>
